<compile_context>
chip_gen: v6e
topology: v6e:2x2x1
jax: 0.10.0
libtpu: 0.0.40
codegen_flags: <defaults>
</compile_context>

<pallas_src>
import functools

import numpy as np

import jax
import jax.numpy as jnp
from jax.experimental import pallas as pl
from jax.experimental.pallas import tpu as pltpu

IN_FEATS = 3 * 28 * 28          # 2352 (true fan_in, PyTorch semantics)
HIDDEN = 512
OUT_FEATS = 1
DEFAULT_TM = 512                # batch tile; ~16-18 MiB VMEM peak w/ f32 x


def _round_up(x, m):
    return ((x + m - 1) // m) * m


def _choose_batch_tile(b_pad8, tm_max):
    """Largest power-of-two tile <= min(tm_max, b_pad8) with <=~12.5% pad waste."""
    tm_max = min(tm_max, b_pad8)
    cand = 8
    while cand * 2 <= tm_max:
        cand *= 2
    while cand > 8:
        waste = _round_up(b_pad8, cand) - b_pad8
        if waste <= max(b_pad8 // 8, 8):
            break
        cand //= 2
    return cand


def mlp_kernel(x_ref, w1_ref, b1_ref, w2_ref, b2_ref, w3_ref, b3_ref, out_ref):
    # In-kernel cast: a handful of VPU ops hidden under the fc1 MXU work.
    x_bf16 = x_ref[...].astype(jnp.bfloat16)
    # fc1 + ReLU : bf16 x bf16 -> f32 accumulate on the MXU (unaligned K=2352
    # handled by Mosaic's internal layout padding/masking).
    h1 = jnp.dot(x_bf16, w1_ref[...], preferred_element_type=jnp.float32)
    h1 = jnp.maximum(h1 + b1_ref[...], 0.0)
    # fc2 + ReLU : cast activation back to bf16 for the native MXU path.
    h2 = jnp.dot(h1.astype(w2_ref.dtype), w2_ref[...],
                 preferred_element_type=jnp.float32)
    h2 = jnp.maximum(h2 + b2_ref[...], 0.0)
    # fc3 : N=1 matmul replaced by VPU multiply + cross-lane reduce (XLU),
    # keeping the MXU slot entirely for fc1/fc2.
    logits = jnp.sum(h2 * w3_ref[...], axis=-1, keepdims=True) + b3_ref[...]
    out_ref[...] = logits.astype(out_ref.dtype)


@functools.partial(jax.jit, static_argnames=("tm",))
def net_forward(x, params, tm=DEFAULT_TM):
    """x: (B, 3, 28, 28) float32 -> logits: (B,) float32."""
    w1, b1, w2, b2, w3, b3 = params
    B = x.shape[0]

    # torch .view(-1, 3*28*28) semantics (row-major NCHW flatten); stays f32.
    x_flat = x.reshape(B, IN_FEATS)

    # Pad batch only to a multiple of 8, then pick a tile with bounded waste.
    b_pad8 = _round_up(max(B, 8), 8)
    tile = _choose_batch_tile(b_pad8, tm)
    b_pad = _round_up(b_pad8, tile)
    # Prefer >= 2 grid steps when the batch is big enough (v7x megacore).
    if b_pad // tile < 2 and tile >= 256:
        tile //= 2
        b_pad = _round_up(b_pad8, tile)
    if b_pad != B:
        x_flat = jnp.pad(x_flat, ((0, b_pad - B), (0, 0)))

    grid = (b_pad // tile,)
    const = lambda i: (0, 0)  # weights/biases: resident across all grid steps

    flops = 2 * b_pad * (IN_FEATS * HIDDEN + HIDDEN * HIDDEN + HIDDEN)
    bytes_accessed = (b_pad * IN_FEATS * 4                 # x (f32 stream)
                      + IN_FEATS * HIDDEN * 2              # w1 (bf16)
                      + HIDDEN * HIDDEN * 2                # w2 (bf16)
                      + 3 * HIDDEN * 4 + 4                 # b1, b2, w3, b3
                      + b_pad * OUT_FEATS * 4)             # out

    out = pl.pallas_call(
        mlp_kernel,
        out_shape=jax.ShapeDtypeStruct((b_pad, OUT_FEATS), jnp.float32),
        grid=grid,
        in_specs=[
            pl.BlockSpec((tile, IN_FEATS), lambda i: (i, 0)),   # x tile (streamed, f32)
            pl.BlockSpec((IN_FEATS, HIDDEN), const),            # w1 (resident, bf16)
            pl.BlockSpec((1, HIDDEN), const),                   # b1 (f32)
            pl.BlockSpec((HIDDEN, HIDDEN), const),              # w2 (resident, bf16)
            pl.BlockSpec((1, HIDDEN), const),                   # b2 (f32)
            pl.BlockSpec((1, HIDDEN), const),                   # w3 as row vector (f32)
            pl.BlockSpec((1, 1), const),                        # b3 (f32)
        ],
        out_specs=pl.BlockSpec((tile, OUT_FEATS), lambda i: (i, 0)),
        compiler_params=pltpu.CompilerParams(
            dimension_semantics=("parallel",),          # megacore sharding on v7x
            vmem_limit_bytes=48 << 20,                  # explicit (v5e default is 16 MiB)
        ),
        cost_estimate=pl.CostEstimate(
            flops=flops, transcendentals=0, bytes_accessed=bytes_accessed),
    )(x_flat, w1, b1, w2, b2, w3, b3)

    return out[:B, 0]  # .flatten() of the (B, 1) logits


def init_params(key):
    """PyTorch-default-style init (uniform +-1/sqrt(fan_in)).
    Weights stored as (in, out); w1/w2 in bf16, biases/w3 in f32."""
    k1, k2, k3, k4, k5, k6 = jax.random.split(key, 6)

    def lin(kw, kb, fan_in, fan_out):
        bound = 1.0 / np.sqrt(fan_in)
        w = jax.random.uniform(kw, (fan_in, fan_out), jnp.float32, -bound, bound)
        b = jax.random.uniform(kb, (1, fan_out), jnp.float32, -bound, bound)
        return w, b

    w1, b1 = lin(k1, k2, IN_FEATS, HIDDEN)
    w2, b2 = lin(k3, k4, HIDDEN, HIDDEN)
    w3, b3 = lin(k5, k6, HIDDEN, OUT_FEATS)

    return (w1.astype(jnp.bfloat16), b1,
            w2.astype(jnp.bfloat16), b2,
            w3.reshape(1, HIDDEN),              # row vector for the VPU reduction
            b3.reshape(1, 1))


def reference_forward(x, params):
    """Pure-numpy reference matching the kernel's bf16 rounding points."""
    w1, b1, w2, b2, w3, b3 = params
    B = x.shape[0]

    def f32(a):
        return np.asarray(a).astype(np.float32)

    def round_bf16(a_np):
        return np.asarray(jnp.asarray(a_np).astype(jnp.bfloat16)).astype(np.float32)

    xf = round_bf16(np.asarray(x).reshape(B, IN_FEATS))        # kernel casts x -> bf16
    h1 = np.maximum(xf @ f32(w1) + f32(b1), 0.0)
    h1 = round_bf16(h1)                                        # kernel casts h1 -> bf16
    h2 = np.maximum(h1 @ f32(w2) + f32(b2), 0.0)
    logits = (h2 * f32(w3)).sum(axis=-1) + f32(b3).reshape(())
    return logits


if __name__ == "__main__":
    key = jax.random.PRNGKey(0)
    k_params, k_x = jax.random.split(key)

    params = init_params(k_params)
    # small batch; input shape implied by the forward: (B, 3, 28, 28)
    x = jax.random.normal(k_x, (4, 3, 28, 28), dtype=jnp.float32)

    logits = net_forward(x, params)
    logits = jax.block_until_ready(logits)

    ref = reference_forward(x, params)

    assert logits.shape == (4,), logits.shape
    assert np.allclose(np.asarray(logits), ref, atol=2e-3, rtol=2e-3), (logits, ref)

    print("KERNEL_OK")
</pallas_src>

<mosaic_0001>
module attributes {stable_mosaic.version = 11 : i64} {
  func.func @mlp_kernel(%arg0: i32, %arg1: memref<8x2352xf32, #tpu.memory_space<vmem>>, %arg2: memref<2352x512xbf16, #tpu.memory_space<vmem>>, %arg3: memref<1x512xf32, #tpu.memory_space<vmem>>, %arg4: memref<512x512xbf16, #tpu.memory_space<vmem>>, %arg5: memref<1x512xf32, #tpu.memory_space<vmem>>, %arg6: memref<1x512xf32, #tpu.memory_space<vmem>>, %arg7: memref<1x1xf32, #tpu.memory_space<vmem>>, %arg8: memref<8x1xf32, #tpu.memory_space<vmem>>) attributes {dimension_semantics = [#tpu.dimension_semantics<parallel>], iteration_bounds = array<i64: 1>, scalar_prefetch = 0 : i64, scratch_operands = 0 : i64, tpu.core_type = #tpu.core_type<tc>, window_params = [{transform_indices = @transform_0, window_bounds = array<i64: 8, 2352>}, {pipeline_mode = #tpu.pipeline_mode<synchronous>, transform_indices = @transform_1, window_bounds = array<i64: 2352, 512>}, {pipeline_mode = #tpu.pipeline_mode<synchronous>, transform_indices = @transform_2, window_bounds = array<i64: 1, 512>}, {pipeline_mode = #tpu.pipeline_mode<synchronous>, transform_indices = @transform_3, window_bounds = array<i64: 512, 512>}, {pipeline_mode = #tpu.pipeline_mode<synchronous>, transform_indices = @transform_4, window_bounds = array<i64: 1, 512>}, {pipeline_mode = #tpu.pipeline_mode<synchronous>, transform_indices = @transform_5, window_bounds = array<i64: 1, 512>}, {pipeline_mode = #tpu.pipeline_mode<synchronous>, transform_indices = @transform_6, window_bounds = array<i64: 1, 1>}, {transform_indices = @transform_7, window_bounds = array<i64: 8, 1>}]} {
    %c0 = arith.constant 0 : index
    %c0_0 = arith.constant 0 : index
    %0 = vector.load %arg1[%c0, %c0_0] : memref<8x2352xf32, #tpu.memory_space<vmem>>, vector<8x2352xf32>
    %1 = arith.truncf %0 : vector<8x2352xf32> to vector<8x2352xbf16>
    %c0_1 = arith.constant 0 : index
    %c0_2 = arith.constant 0 : index
    %2 = vector.load %arg2[%c0_1, %c0_2] : memref<2352x512xbf16, #tpu.memory_space<vmem>>, vector<2352x512xbf16>
    %cst = arith.constant dense<0.000000e+00> : vector<8x512xf32>
    %3 = tpu.matmul %1, %2, %cst {dimension_numbers = #tpu.dot_dimension_numbers<[1], [0], [0], [1], [0, 0, 1, 1], [], []>} : vector<8x2352xbf16>, vector<2352x512xbf16>, vector<8x512xf32> -> vector<8x512xf32>
    %c0_3 = arith.constant 0 : index
    %c0_4 = arith.constant 0 : index
    %4 = vector.load %arg3[%c0_3, %c0_4] : memref<1x512xf32, #tpu.memory_space<vmem>>, vector<1x512xf32>
    %5 = vector.broadcast %4 : vector<1x512xf32> to vector<8x512xf32>
    %6 = arith.addf %3, %5 : vector<8x512xf32>
    %cst_5 = arith.constant 0.000000e+00 : f32
    %7 = vector.broadcast %cst_5 : f32 to vector<8x512xf32>
    %8 = arith.maximumf %6, %7 : vector<8x512xf32>
    %9 = arith.truncf %8 : vector<8x512xf32> to vector<8x512xbf16>
    %c0_6 = arith.constant 0 : index
    %c0_7 = arith.constant 0 : index
    %10 = vector.load %arg4[%c0_6, %c0_7] : memref<512x512xbf16, #tpu.memory_space<vmem>>, vector<512x512xbf16>
    %cst_8 = arith.constant dense<0.000000e+00> : vector<8x512xf32>
    %11 = tpu.matmul %9, %10, %cst_8 {dimension_numbers = #tpu.dot_dimension_numbers<[1], [0], [0], [1], [0, 0, 1, 1], [], []>} : vector<8x512xbf16>, vector<512x512xbf16>, vector<8x512xf32> -> vector<8x512xf32>
    %c0_9 = arith.constant 0 : index
    %c0_10 = arith.constant 0 : index
    %12 = vector.load %arg5[%c0_9, %c0_10] : memref<1x512xf32, #tpu.memory_space<vmem>>, vector<1x512xf32>
    %13 = vector.broadcast %12 : vector<1x512xf32> to vector<8x512xf32>
    %14 = arith.addf %11, %13 : vector<8x512xf32>
    %cst_11 = arith.constant 0.000000e+00 : f32
    %15 = vector.broadcast %cst_11 : f32 to vector<8x512xf32>
    %16 = arith.maximumf %14, %15 : vector<8x512xf32>
    %c0_12 = arith.constant 0 : index
    %c0_13 = arith.constant 0 : index
    %17 = vector.load %arg6[%c0_12, %c0_13] : memref<1x512xf32, #tpu.memory_space<vmem>>, vector<1x512xf32>
    %18 = vector.broadcast %17 : vector<1x512xf32> to vector<8x512xf32>
    %19 = arith.mulf %16, %18 : vector<8x512xf32>
    %cst_14 = arith.constant dense<0.000000e+00> : vector<8xf32>
    %20 = vector.multi_reduction <add>, %19, %cst_14 [1] : vector<8x512xf32> to vector<8xf32>
    %21 = vector.shape_cast %20 : vector<8xf32> to vector<8x1xf32>
    %c0_15 = arith.constant 0 : index
    %c0_16 = arith.constant 0 : index
    %22 = vector.load %arg7[%c0_15, %c0_16] : memref<1x1xf32, #tpu.memory_space<vmem>>, vector<1x1xf32>
    %23 = vector.broadcast %22 : vector<1x1xf32> to vector<8x1xf32>
    %24 = arith.addf %21, %23 : vector<8x1xf32>
    %c0_17 = arith.constant 0 : index
    %c0_18 = arith.constant 0 : index
    %25 = vector.load %arg8[%c0_17, %c0_18] : memref<8x1xf32, #tpu.memory_space<vmem>>, vector<8x1xf32>
    tpu.vector_store %arg8[%c0_17, %c0_18], %24 {strides = array<i32>} : memref<8x1xf32, #tpu.memory_space<vmem>>, vector<8x1xf32>,
    return
  }
  func.func @transform_0(%arg0: i32) -> (i32, i32) {
    %c0_i32 = arith.constant 0 : i32
    %c0_i32_0 = arith.constant 0 : i32
    return %arg0, %c0_i32 : i32, i32
  }
  func.func @transform_1(%arg0: i32) -> (i32, i32) {
    %c0_i32 = arith.constant 0 : i32
    %c0_i32_0 = arith.constant 0 : i32
    %c0_i32_1 = arith.constant 0 : i32
    return %c0_i32, %c0_i32_0 : i32, i32
  }
  func.func @transform_2(%arg0: i32) -> (i32, i32) {
    %c0_i32 = arith.constant 0 : i32
    %c0_i32_0 = arith.constant 0 : i32
    %c0_i32_1 = arith.constant 0 : i32
    return %c0_i32, %c0_i32_0 : i32, i32
  }
  func.func @transform_3(%arg0: i32) -> (i32, i32) {
    %c0_i32 = arith.constant 0 : i32
    %c0_i32_0 = arith.constant 0 : i32
    %c0_i32_1 = arith.constant 0 : i32
    return %c0_i32, %c0_i32_0 : i32, i32
  }
  func.func @transform_4(%arg0: i32) -> (i32, i32) {
    %c0_i32 = arith.constant 0 : i32
    %c0_i32_0 = arith.constant 0 : i32
    %c0_i32_1 = arith.constant 0 : i32
    return %c0_i32, %c0_i32_0 : i32, i32
  }
  func.func @transform_5(%arg0: i32) -> (i32, i32) {
    %c0_i32 = arith.constant 0 : i32
    %c0_i32_0 = arith.constant 0 : i32
    %c0_i32_1 = arith.constant 0 : i32
    return %c0_i32, %c0_i32_0 : i32, i32
  }
  func.func @transform_6(%arg0: i32) -> (i32, i32) {
    %c0_i32 = arith.constant 0 : i32
    %c0_i32_0 = arith.constant 0 : i32
    %c0_i32_1 = arith.constant 0 : i32
    return %c0_i32, %c0_i32_0 : i32, i32
  }
  func.func @transform_7(%arg0: i32) -> (i32, i32) {
    %c0_i32 = arith.constant 0 : i32
    %c0_i32_0 = arith.constant 0 : i32
    return %arg0, %c0_i32 : i32, i32
  }
}

</mosaic_0001>

<llo_original>
// kernel: net_forward.1
$region0: #{net_forward.1}
  #allocation0 [shape = 'u32[]', space=smem, size = 0x4, offset = 0x4, fixed_abs, tag = 'smem constant byte address 0x4 - core index']
  #allocation1 [shape = 'u32[144,128]{1,0:T(1,128)}', space=vmem, size = 0x12000, scoped, tag = 'internal scratch']
  #allocation2 [shape = 'f32[1,1]{1,0:T(1,128)S(1)}', space=vmem, size = 0x200, scoped, tag = 'scoped memory for net_forward.1']
  %s0 = inlined_call_operand.vmem [shape: f32[8,2352], index: 0, kind: input, shape index: {}]
  %s1 = inlined_call_operand.hbm [shape: bf16[2352,512], index: 1, kind: input, shape index: {}]
  %s2 = inlined_call_operand.hbm [shape: f32[1,512], index: 2, kind: input, shape index: {}]
  %s3 = inlined_call_operand.hbm [shape: bf16[512,512], index: 3, kind: input, shape index: {}]
  %s4 = inlined_call_operand.hbm [shape: f32[1,512], index: 4, kind: input, shape index: {}]
  %s5 = inlined_call_operand.hbm [shape: f32[1,512], index: 5, kind: input, shape index: {}]
  %s6 = inlined_call_operand.<no memory space> [shape: f32[1,1], index: 6, kind: input, shape index: {}]
  %s7 = inlined_call_operand.vmem [shape: f32[8,1], index: 7, kind: output, shape index: {}]
  %s8 = sld [smem:[#allocation0]]
  $region58: #{net_forward.1} parent=0
    _
  %s10 = ssub.s32 1, %s8
  %s11 = scalar_select 0, %s10, %s8
  %v12 = vstv %s6
  %13 = vst [vmem:[#allocation2] sm:$0x1] %v12
  $region1: #{net_forward.1} parent=0
    #allocation3 [shape = 'u8[2408448]{0}', space=vmem, size = 0x24c000, scoped, tag = 'input window, operand 1, single buffered']
    #allocation4 [shape = 's32[1]{0}', space=sflag, size = 0x4, scoped, tag = 'scoped memory for net_forward.1']
    #allocation5 [shape = 'u8[2048]{0}', space=vmem, size = 0x800, scoped, tag = 'input window, operand 2, single buffered']
    #allocation6 [shape = 's32[1]{0}', space=sflag, size = 0x4, scoped, tag = 'scoped memory for net_forward.1']
    #allocation7 [shape = 'u8[524288]{0}', space=vmem, size = 0x80000, scoped, tag = 'input window, operand 3, single buffered']
    #allocation8 [shape = 'u8[2048]{0}', space=vmem, size = 0x800, scoped, tag = 'input window, operand 4, single buffered']
    #allocation9 [shape = 's32[1]{0}', space=sflag, size = 0x4, scoped, tag = 'scoped memory for net_forward.1']
    #allocation10 [shape = 'u8[2048]{0}', space=vmem, size = 0x800, scoped, tag = 'input window, operand 5, single buffered']
    %14 = vsyncpa [#allocation4], 0
    %15 = vsyncpa [#allocation6], 0
    %16 = vsyncpa [#allocation9], 0
    // Predicated region
    $region2: #{net_forward.1} parent=1 // pred_check
      _
    $region3: #{net_forward.1} parent=1 // pred_check_branch
      %18 = sbr.rel (0) target = $region5
    $region4: #{net_forward.1} parent=1 // pred_region
      _
    $region5: #{net_forward.1} parent=1 // pred_fallthru
      _
    // Predicated region
    $region6: #{net_forward.1} parent=1 // pred_check
      _
    $region7: #{net_forward.1} parent=1 // pred_check_branch
      %20 = sbr.rel (0) target = $region9
    $region8: #{net_forward.1} parent=1 // pred_region
      %s22 = ssub.s32 75264, 75264
      %23 = vsyncadd [#allocation4], %s22
      %s24 = sshll.u32 [#allocation3], 4
      %s25 = int_to_ptr.vmem [resolvable:$true] %s24
      %30 = dma.hbm_to_vmem [thread:$0]  %s1, 75264, %s25, [#allocation4], 256, 256, 16
    $region9: #{net_forward.1} parent=1 // pred_fallthru
      _
    // Predicated region
    $region10: #{net_forward.1} parent=1 // pred_check
      _
    $region11: #{net_forward.1} parent=1 // pred_check_branch
      %32 = sbr.rel (0) target = $region13
    $region12: #{net_forward.1} parent=1 // pred_region
      %s34 = ssub.s32 64, 64
      %35 = vsyncadd [#allocation6], %s34
      %s37 = sshll.u32 [#allocation5], 4
      %s38 = int_to_ptr.vmem [resolvable:$true] %s37
      %40 = dma.hbm_to_vmem [thread:$0]  %s2, 64, %s38, [#allocation6]
    $region13: #{net_forward.1} parent=1 // pred_fallthru
      _
    // Predicated region
    $region14: #{net_forward.1} parent=1 // pred_check
      _
    $region15: #{net_forward.1} parent=1 // pred_check_branch
      %42 = sbr.rel (0) target = $region17
    $region16: #{net_forward.1} parent=1 // pred_region
      %s44 = ssub.s32 16384, 16384
      %45 = vsyncadd [#allocation6], %s44
      %s46 = sshll.u32 [#allocation7], 4
      %s47 = int_to_ptr.vmem [resolvable:$true] %s46
      %52 = dma.hbm_to_vmem [thread:$0]  %s3, 16384, %s47, [#allocation6], 256, 256, 16
    $region17: #{net_forward.1} parent=1 // pred_fallthru
      _
    // Predicated region
    $region18: #{net_forward.1} parent=1 // pred_check
      _
    $region19: #{net_forward.1} parent=1 // pred_check_branch
      %54 = sbr.rel (0) target = $region21
    $region20: #{net_forward.1} parent=1 // pred_region
      %s56 = ssub.s32 64, 64
      %57 = vsyncadd [#allocation9], %s56
      %s59 = sshll.u32 [#allocation8], 4
      %s60 = int_to_ptr.vmem [resolvable:$true] %s59
      %62 = dma.hbm_to_vmem [thread:$0]  %s4, 64, %s60, [#allocation9]
    $region21: #{net_forward.1} parent=1 // pred_fallthru
      _
    // Predicated region
    $region22: #{net_forward.1} parent=1 // pred_check
      _
    $region23: #{net_forward.1} parent=1 // pred_check_branch
      %64 = sbr.rel (0) target = $region25
    $region24: #{net_forward.1} parent=1 // pred_region
      %s66 = ssub.s32 64, 64
      %67 = vsyncadd [#allocation9], %s66
      %s69 = sshll.u32 [#allocation10], 4
      %s70 = int_to_ptr.vmem [resolvable:$true] %s69
      %72 = dma.hbm_to_vmem [thread:$0]  %s5, 64, %s70, [#allocation9]
    $region25: #{net_forward.1} parent=1 // pred_fallthru
      _
    // Predicated region
    $region26: #{net_forward.1} parent=1 // pred_check
      _
    $region27: #{net_forward.1} parent=1 // pred_check_branch
      %74 = sbr.rel (0) target = $region29
    $region28: #{net_forward.1} parent=1 // pred_region
      _
    $region29: #{net_forward.1} parent=1 // pred_fallthru
      _
    // Predicated region
    $region30: #{net_forward.1} parent=1 // pred_check
      _
    $region31: #{net_forward.1} parent=1 // pred_check_branch
      %76 = sbr.rel (0) target = $region33
    $region32: #{net_forward.1} parent=1 // pred_region
      %77 = dma.done [#allocation4], 75264
    $region33: #{net_forward.1} parent=1 // pred_fallthru
      _
    // Predicated region
    $region34: #{net_forward.1} parent=1 // pred_check
      _
    $region35: #{net_forward.1} parent=1 // pred_check_branch
      %79 = sbr.rel (0) target = $region37
    $region36: #{net_forward.1} parent=1 // pred_region
      %80 = dma.done [#allocation6], 64
    $region37: #{net_forward.1} parent=1 // pred_fallthru
      _
    // Predicated region
    $region38: #{net_forward.1} parent=1 // pred_check
      _
    $region39: #{net_forward.1} parent=1 // pred_check_branch
      %82 = sbr.rel (0) target = $region41
    $region40: #{net_forward.1} parent=1 // pred_region
      %83 = dma.done [#allocation6], 16384
    $region41: #{net_forward.1} parent=1 // pred_fallthru
      _
    // Predicated region
    $region42: #{net_forward.1} parent=1 // pred_check
      _
    $region43: #{net_forward.1} parent=1 // pred_check_branch
      %85 = sbr.rel (0) target = $region45
    $region44: #{net_forward.1} parent=1 // pred_region
      %86 = dma.done [#allocation9], 64
    $region45: #{net_forward.1} parent=1 // pred_fallthru
      _
    // Predicated region
    $region46: #{net_forward.1} parent=1 // pred_check
      _
    $region47: #{net_forward.1} parent=1 // pred_check_branch
      %88 = sbr.rel (0) target = $region49
    $region48: #{net_forward.1} parent=1 // pred_region
      %89 = dma.done [#allocation9], 64
    $region49: #{net_forward.1} parent=1 // pred_fallthru
      _
    %v91 = vld [vmem:[%s0] sm:$0xff]
    %v92 = vld [vmem:[%s0 + $0x8] sm:$0xff]
    %v93 = vld [vmem:[%s0 + $0x10] sm:$0xff]
    %v94 = vld [vmem:[%s0 + $0x18] sm:$0xff]
    %v95 = vld [vmem:[%s0 + $0x20] sm:$0xff]
    %v96 = vld [vmem:[%s0 + $0x28] sm:$0xff]
    %v97 = vld [vmem:[%s0 + $0x30] sm:$0xff]
    %v98 = vld [vmem:[%s0 + $0x38] sm:$0xff]
    %v99 = vld [vmem:[%s0 + $0x40] sm:$0xff]
    %v100 = vld [vmem:[%s0 + $0x48] sm:$0xff]
    %v101 = vld [vmem:[%s0 + $0x50] sm:$0xff]
    %v102 = vld [vmem:[%s0 + $0x58] sm:$0xff]
    %v103 = vld [vmem:[%s0 + $0x60] sm:$0xff]
    %v104 = vld [vmem:[%s0 + $0x68] sm:$0xff]
    %v105 = vld [vmem:[%s0 + $0x70] sm:$0xff]
    %v106 = vld [vmem:[%s0 + $0x78] sm:$0xff]
    %v107 = vld [vmem:[%s0 + $0x80] sm:$0xff]
    %v108 = vld [vmem:[%s0 + $0x88] sm:$0xff]
    %v109 = vld [vmem:[%s0 + $0x90] sm:$0xff]
    %v110 = vpack.c.bf16 %v91, %v91
    %v111 = vpack.c.bf16 %v92, %v92
    %v112 = vpack.c.bf16 %v93, %v93
    %v113 = vpack.c.bf16 %v94, %v94
    %v114 = vpack.c.bf16 %v95, %v95
    %v115 = vpack.c.bf16 %v96, %v96
    %v116 = vpack.c.bf16 %v97, %v97
    %v117 = vpack.c.bf16 %v98, %v98
    %v118 = vpack.c.bf16 %v99, %v99
    %v119 = vpack.c.bf16 %v100, %v100
    %v120 = vpack.c.bf16 %v101, %v101
    %v121 = vpack.c.bf16 %v102, %v102
    %v122 = vpack.c.bf16 %v103, %v103
    %v123 = vpack.c.bf16 %v104, %v104
    %v124 = vpack.c.bf16 %v105, %v105
    %v125 = vpack.c.bf16 %v106, %v106
    %v126 = vpack.c.bf16 %v107, %v107
    %v127 = vpack.c.bf16 %v108, %v108
    %v128 = vpack.c.bf16 %v109, %v109
    %v129 = vld [vmem:[#allocation3] sm:$0xff]
    %v130 = vld [vmem:[#allocation3 + $0x8] sm:$0xff]
    %v131 = vld [vmem:[#allocation3 + $0x10] sm:$0xff]
    %v132 = vld [vmem:[#allocation3 + $0x18] sm:$0xff]
    %v133 = vld [vmem:[#allocation3 + $0x20] sm:$0xff]
    %v134 = vld [vmem:[#allocation3 + $0x28] sm:$0xff]
    %v135 = vld [vmem:[#allocation3 + $0x30] sm:$0xff]
    %v136 = vld [vmem:[#allocation3 + $0x38] sm:$0xff]
    %v137 = vld [vmem:[#allocation3 + $0x40] sm:$0xff]
    %v138 = vld [vmem:[#allocation3 + $0x48] sm:$0xff]
    %v139 = vld [vmem:[#allocation3 + $0x50] sm:$0xff]
    %v140 = vld [vmem:[#allocation3 + $0x58] sm:$0xff]
    %v141 = vld [vmem:[#allocation3 + $0x60] sm:$0xff]
    %v142 = vld [vmem:[#allocation3 + $0x68] sm:$0xff]
    %v143 = vld [vmem:[#allocation3 + $0x70] sm:$0xff]
    %v144 = vld [vmem:[#allocation3 + $0x78] sm:$0xff]
    %v145 = vld [vmem:[#allocation3 + $0x80] sm:$0xff]
    %v146 = vld [vmem:[#allocation3 + $0x88] sm:$0xff]
    %v147 = vld [vmem:[#allocation3 + $0x90] sm:$0xff]
    %v148 = vld [vmem:[#allocation3 + $0x98] sm:$0xff]
    %v149 = vld [vmem:[#allocation3 + $0xa0] sm:$0xff]
    %v150 = vld [vmem:[#allocation3 + $0xa8] sm:$0xff]
    %v151 = vld [vmem:[#allocation3 + $0xb0] sm:$0xff]
    %v152 = vld [vmem:[#allocation3 + $0xb8] sm:$0xff]
    %v153 = vld [vmem:[#allocation3 + $0xc0] sm:$0xff]
    %v154 = vld [vmem:[#allocation3 + $0xc8] sm:$0xff]
    %v155 = vld [vmem:[#allocation3 + $0xd0] sm:$0xff]
    %v156 = vld [vmem:[#allocation3 + $0xd8] sm:$0xff]
    %v157 = vld [vmem:[#allocation3 + $0xe0] sm:$0xff]
    %v158 = vld [vmem:[#allocation3 + $0xe8] sm:$0xff]
    %v159 = vld [vmem:[#allocation3 + $0xf0] sm:$0xff]
    %v160 = vld [vmem:[#allocation3 + $0xf8] sm:$0xff]
    %v161 = vld [vmem:[#allocation3 + $0x100] sm:$0xff]
    %v162 = vld [vmem:[#allocation3 + $0x108] sm:$0xff]
    %v163 = vld [vmem:[#allocation3 + $0x110] sm:$0xff]
    %v164 = vld [vmem:[#allocation3 + $0x118] sm:$0xff]
    %v165 = vld [vmem:[#allocation3 + $0x120] sm:$0xff]
    %v166 = vld [vmem:[#allocation3 + $0x128] sm:$0xff]
    %v167 = vld [vmem:[#allocation3 + $0x130] sm:$0xff]
    %v168 = vld [vmem:[#allocation3 + $0x138] sm:$0xff]
    %v169 = vld [vmem:[#allocation3 + $0x140] sm:$0xff]
    %v170 = vld [vmem:[#allocation3 + $0x148] sm:$0xff]
    %v171 = vld [vmem:[#allocation3 + $0x150] sm:$0xff]
    %v172 = vld [vmem:[#allocation3 + $0x158] sm:$0xff]
    %v173 = vld [vmem:[#allocation3 + $0x160] sm:$0xff]
    %v174 = vld [vmem:[#allocation3 + $0x168] sm:$0xff]
    %v175 = vld [vmem:[#allocation3 + $0x170] sm:$0xff]
    %v176 = vld [vmem:[#allocation3 + $0x178] sm:$0xff]
    %v177 = vld [vmem:[#allocation3 + $0x180] sm:$0xff]
    %v178 = vld [vmem:[#allocation3 + $0x188] sm:$0xff]
    %v179 = vld [vmem:[#allocation3 + $0x190] sm:$0xff]
    %v180 = vld [vmem:[#allocation3 + $0x198] sm:$0xff]
    %v181 = vld [vmem:[#allocation3 + $0x1a0] sm:$0xff]
    %v182 = vld [vmem:[#allocation3 + $0x1a8] sm:$0xff]
    %v183 = vld [vmem:[#allocation3 + $0x1b0] sm:$0xff]
    %v184 = vld [vmem:[#allocation3 + $0x1b8] sm:$0xff]
    %v185 = vld [vmem:[#allocation3 + $0x1c0] sm:$0xff]
    %v186 = vld [vmem:[#allocation3 + $0x1c8] sm:$0xff]
    %v187 = vld [vmem:[#allocation3 + $0x1d0] sm:$0xff]
    %v188 = vld [vmem:[#allocation3 + $0x1d8] sm:$0xff]
    %v189 = vld [vmem:[#allocation3 + $0x1e0] sm:$0xff]
    %v190 = vld [vmem:[#allocation3 + $0x1e8] sm:$0xff]
    %v191 = vld [vmem:[#allocation3 + $0x1f0] sm:$0xff]
    %v192 = vld [vmem:[#allocation3 + $0x1f8] sm:$0xff]
    %v193 = vld [vmem:[#allocation3 + $0x200] sm:$0xff]
    %v194 = vld [vmem:[#allocation3 + $0x208] sm:$0xff]
    %v195 = vld [vmem:[#allocation3 + $0x210] sm:$0xff]
    %v196 = vld [vmem:[#allocation3 + $0x218] sm:$0xff]
    %v197 = vld [vmem:[#allocation3 + $0x220] sm:$0xff]
    %v198 = vld [vmem:[#allocation3 + $0x228] sm:$0xff]
    %v199 = vld [vmem:[#allocation3 + $0x230] sm:$0xff]
    %v200 = vld [vmem:[#allocation3 + $0x238] sm:$0xff]
    %v201 = vld [vmem:[#allocation3 + $0x240] sm:$0xff]
    %v202 = vld [vmem:[#allocation3 + $0x248] sm:$0xff]
    %v203 = vld [vmem:[#allocation3 + $0x250] sm:$0xff]
    %v204 = vld [vmem:[#allocation3 + $0x258] sm:$0xff]
    %v205 = vld [vmem:[#allocation3 + $0x260] sm:$0xff]
    %v206 = vld [vmem:[#allocation3 + $0x268] sm:$0xff]
    %v207 = vld [vmem:[#allocation3 + $0x270] sm:$0xff]
    %v208 = vld [vmem:[#allocation3 + $0x278] sm:$0xff]
    %v209 = vld [vmem:[#allocation3 + $0x280] sm:$0xff]
    %v210 = vld [vmem:[#allocation3 + $0x288] sm:$0xff]
    %v211 = vld [vmem:[#allocation3 + $0x290] sm:$0xff]
    %v212 = vld [vmem:[#allocation3 + $0x298] sm:$0xff]
    %v213 = vld [vmem:[#allocation3 + $0x2a0] sm:$0xff]
    %v214 = vld [vmem:[#allocation3 + $0x2a8] sm:$0xff]
    %v215 = vld [vmem:[#allocation3 + $0x2b0] sm:$0xff]
    %v216 = vld [vmem:[#allocation3 + $0x2b8] sm:$0xff]
    %v217 = vld [vmem:[#allocation3 + $0x2c0] sm:$0xff]
    %v218 = vld [vmem:[#allocation3 + $0x2c8] sm:$0xff]
    %v219 = vld [vmem:[#allocation3 + $0x2d0] sm:$0xff]
    %v220 = vld [vmem:[#allocation3 + $0x2d8] sm:$0xff]
    %v221 = vld [vmem:[#allocation3 + $0x2e0] sm:$0xff]
    %v222 = vld [vmem:[#allocation3 + $0x2e8] sm:$0xff]
    %v223 = vld [vmem:[#allocation3 + $0x2f0] sm:$0xff]
    %v224 = vld [vmem:[#allocation3 + $0x2f8] sm:$0xff]
    %v225 = vld [vmem:[#allocation3 + $0x300] sm:$0xff]
    %v226 = vld [vmem:[#allocation3 + $0x308] sm:$0xff]
    %v227 = vld [vmem:[#allocation3 + $0x310] sm:$0xff]
    %v228 = vld [vmem:[#allocation3 + $0x318] sm:$0xff]
    %v229 = vld [vmem:[#allocation3 + $0x320] sm:$0xff]
    %v230 = vld [vmem:[#allocation3 + $0x328] sm:$0xff]
    %v231 = vld [vmem:[#allocation3 + $0x330] sm:$0xff]
    %v232 = vld [vmem:[#allocation3 + $0x338] sm:$0xff]
    %v233 = vld [vmem:[#allocation3 + $0x340] sm:$0xff]
    %v234 = vld [vmem:[#allocation3 + $0x348] sm:$0xff]
    %v235 = vld [vmem:[#allocation3 + $0x350] sm:$0xff]
    %v236 = vld [vmem:[#allocation3 + $0x358] sm:$0xff]
    %v237 = vld [vmem:[#allocation3 + $0x360] sm:$0xff]
    %v238 = vld [vmem:[#allocation3 + $0x368] sm:$0xff]
    %v239 = vld [vmem:[#allocation3 + $0x370] sm:$0xff]
    %v240 = vld [vmem:[#allocation3 + $0x378] sm:$0xff]
    %v241 = vld [vmem:[#allocation3 + $0x380] sm:$0xff]
    %v242 = vld [vmem:[#allocation3 + $0x388] sm:$0xff]
    %v243 = vld [vmem:[#allocation3 + $0x390] sm:$0xff]
    %v244 = vld [vmem:[#allocation3 + $0x398] sm:$0xff]
    %v245 = vld [vmem:[#allocation3 + $0x3a0] sm:$0xff]
    %v246 = vld [vmem:[#allocation3 + $0x3a8] sm:$0xff]
    %v247 = vld [vmem:[#allocation3 + $0x3b0] sm:$0xff]
    %v248 = vld [vmem:[#allocation3 + $0x3b8] sm:$0xff]
    %v249 = vld [vmem:[#allocation3 + $0x3c0] sm:$0xff]
    %v250 = vld [vmem:[#allocation3 + $0x3c8] sm:$0xff]
    %v251 = vld [vmem:[#allocation3 + $0x3d0] sm:$0xff]
    %v252 = vld [vmem:[#allocation3 + $0x3d8] sm:$0xff]
    %v253 = vld [vmem:[#allocation3 + $0x3e0] sm:$0xff]
    %v254 = vld [vmem:[#allocation3 + $0x3e8] sm:$0xff]
    %v255 = vld [vmem:[#allocation3 + $0x3f0] sm:$0xff]
    %v256 = vld [vmem:[#allocation3 + $0x3f8] sm:$0xff]
    %v257 = vld [vmem:[#allocation3 + $0x400] sm:$0xff]
    %v258 = vld [vmem:[#allocation3 + $0x408] sm:$0xff]
    %v259 = vld [vmem:[#allocation3 + $0x410] sm:$0xff]
    %v260 = vld [vmem:[#allocation3 + $0x418] sm:$0xff]
    %v261 = vld [vmem:[#allocation3 + $0x420] sm:$0xff]
    %v262 = vld [vmem:[#allocation3 + $0x428] sm:$0xff]
    %v263 = vld [vmem:[#allocation3 + $0x430] sm:$0xff]
    %v264 = vld [vmem:[#allocation3 + $0x438] sm:$0xff]
    %v265 = vld [vmem:[#allocation3 + $0x440] sm:$0xff]
    %v266 = vld [vmem:[#allocation3 + $0x448] sm:$0xff]
    %v267 = vld [vmem:[#allocation3 + $0x450] sm:$0xff]
    %v268 = vld [vmem:[#allocation3 + $0x458] sm:$0xff]
    %v269 = vld [vmem:[#allocation3 + $0x460] sm:$0xff]
    %v270 = vld [vmem:[#allocation3 + $0x468] sm:$0xff]
    %v271 = vld [vmem:[#allocation3 + $0x470] sm:$0xff]
    %v272 = vld [vmem:[#allocation3 + $0x478] sm:$0xff]
    %v273 = vld [vmem:[#allocation3 + $0x480] sm:$0xff]
    %v274 = vld [vmem:[#allocation3 + $0x488] sm:$0xff]
    %v275 = vld [vmem:[#allocation3 + $0x490] sm:$0xff]
    %v276 = vld [vmem:[#allocation3 + $0x498] sm:$0xff]
    %v277 = vld [vmem:[#allocation3 + $0x4a0] sm:$0xff]
    %v278 = vld [vmem:[#allocation3 + $0x4a8] sm:$0xff]
    %v279 = vld [vmem:[#allocation3 + $0x4b0] sm:$0xff]
    %v280 = vld [vmem:[#allocation3 + $0x4b8] sm:$0xff]
    %v281 = vld [vmem:[#allocation3 + $0x4c0] sm:$0xff]
    %v282 = vld [vmem:[#allocation3 + $0x4c8] sm:$0xff]
    %v283 = vld [vmem:[#allocation3 + $0x4d0] sm:$0xff]
    %v284 = vld [vmem:[#allocation3 + $0x4d8] sm:$0xff]
    %v285 = vld [vmem:[#allocation3 + $0x4e0] sm:$0xff]
    %v286 = vld [vmem:[#allocation3 + $0x4e8] sm:$0xff]
    %v287 = vld [vmem:[#allocation3 + $0x4f0] sm:$0xff]
    %v288 = vld [vmem:[#allocation3 + $0x4f8] sm:$0xff]
    %v289 = vld [vmem:[#allocation3 + $0x500] sm:$0xff]
    %v290 = vld [vmem:[#allocation3 + $0x508] sm:$0xff]
    %v291 = vld [vmem:[#allocation3 + $0x510] sm:$0xff]
    %v292 = vld [vmem:[#allocation3 + $0x518] sm:$0xff]
    %v293 = vld [vmem:[#allocation3 + $0x520] sm:$0xff]
    %v294 = vld [vmem:[#allocation3 + $0x528] sm:$0xff]
    %v295 = vld [vmem:[#allocation3 + $0x530] sm:$0xff]
    %v296 = vld [vmem:[#allocation3 + $0x538] sm:$0xff]
    %v297 = vld [vmem:[#allocation3 + $0x540] sm:$0xff]
    %v298 = vld [vmem:[#allocation3 + $0x548] sm:$0xff]
    %v299 = vld [vmem:[#allocation3 + $0x550] sm:$0xff]
    %v300 = vld [vmem:[#allocation3 + $0x558] sm:$0xff]
    %v301 = vld [vmem:[#allocation3 + $0x560] sm:$0xff]
    %v302 = vld [vmem:[#allocation3 + $0x568] sm:$0xff]
    %v303 = vld [vmem:[#allocation3 + $0x570] sm:$0xff]
    %v304 = vld [vmem:[#allocation3 + $0x578] sm:$0xff]
    %v305 = vld [vmem:[#allocation3 + $0x580] sm:$0xff]
    %v306 = vld [vmem:[#allocation3 + $0x588] sm:$0xff]
    %v307 = vld [vmem:[#allocation3 + $0x590] sm:$0xff]
    %v308 = vld [vmem:[#allocation3 + $0x598] sm:$0xff]
    %v309 = vld [vmem:[#allocation3 + $0x5a0] sm:$0xff]
    %v310 = vld [vmem:[#allocation3 + $0x5a8] sm:$0xff]
    %v311 = vld [vmem:[#allocation3 + $0x5b0] sm:$0xff]
    %v312 = vld [vmem:[#allocation3 + $0x5b8] sm:$0xff]
    %v313 = vld [vmem:[#allocation3 + $0x5c0] sm:$0xff]
    %v314 = vld [vmem:[#allocation3 + $0x5c8] sm:$0xff]
    %v315 = vld [vmem:[#allocation3 + $0x5d0] sm:$0xff]
    %v316 = vld [vmem:[#allocation3 + $0x5d8] sm:$0xff]
    %v317 = vld [vmem:[#allocation3 + $0x5e0] sm:$0xff]
    %v318 = vld [vmem:[#allocation3 + $0x5e8] sm:$0xff]
    %v319 = vld [vmem:[#allocation3 + $0x5f0] sm:$0xff]
    %v320 = vld [vmem:[#allocation3 + $0x5f8] sm:$0xff]
    %v321 = vld [vmem:[#allocation3 + $0x600] sm:$0xff]
    %v322 = vld [vmem:[#allocation3 + $0x608] sm:$0xff]
    %v323 = vld [vmem:[#allocation3 + $0x610] sm:$0xff]
    %v324 = vld [vmem:[#allocation3 + $0x618] sm:$0xff]
    %v325 = vld [vmem:[#allocation3 + $0x620] sm:$0xff]
    %v326 = vld [vmem:[#allocation3 + $0x628] sm:$0xff]
    %v327 = vld [vmem:[#allocation3 + $0x630] sm:$0xff]
    %v328 = vld [vmem:[#allocation3 + $0x638] sm:$0xff]
    %v329 = vld [vmem:[#allocation3 + $0x640] sm:$0xff]
    %v330 = vld [vmem:[#allocation3 + $0x648] sm:$0xff]
    %v331 = vld [vmem:[#allocation3 + $0x650] sm:$0xff]
    %v332 = vld [vmem:[#allocation3 + $0x658] sm:$0xff]
    %v333 = vld [vmem:[#allocation3 + $0x660] sm:$0xff]
    %v334 = vld [vmem:[#allocation3 + $0x668] sm:$0xff]
    %v335 = vld [vmem:[#allocation3 + $0x670] sm:$0xff]
    %v336 = vld [vmem:[#allocation3 + $0x678] sm:$0xff]
    %v337 = vld [vmem:[#allocation3 + $0x680] sm:$0xff]
    %v338 = vld [vmem:[#allocation3 + $0x688] sm:$0xff]
    %v339 = vld [vmem:[#allocation3 + $0x690] sm:$0xff]
    %v340 = vld [vmem:[#allocation3 + $0x698] sm:$0xff]
    %v341 = vld [vmem:[#allocation3 + $0x6a0] sm:$0xff]
    %v342 = vld [vmem:[#allocation3 + $0x6a8] sm:$0xff]
    %v343 = vld [vmem:[#allocation3 + $0x6b0] sm:$0xff]
    %v344 = vld [vmem:[#allocation3 + $0x6b8] sm:$0xff]
    %v345 = vld [vmem:[#allocation3 + $0x6c0] sm:$0xff]
    %v346 = vld [vmem:[#allocation3 + $0x6c8] sm:$0xff]
    %v347 = vld [vmem:[#allocation3 + $0x6d0] sm:$0xff]
    %v348 = vld [vmem:[#allocation3 + $0x6d8] sm:$0xff]
    %v349 = vld [vmem:[#allocation3 + $0x6e0] sm:$0xff]
    %v350 = vld [vmem:[#allocation3 + $0x6e8] sm:$0xff]
    %v351 = vld [vmem:[#allocation3 + $0x6f0] sm:$0xff]
    %v352 = vld [vmem:[#allocation3 + $0x6f8] sm:$0xff]
    %v353 = vld [vmem:[#allocation3 + $0x700] sm:$0xff]
    %v354 = vld [vmem:[#allocation3 + $0x708] sm:$0xff]
    %v355 = vld [vmem:[#allocation3 + $0x710] sm:$0xff]
    %v356 = vld [vmem:[#allocation3 + $0x718] sm:$0xff]
    %v357 = vld [vmem:[#allocation3 + $0x720] sm:$0xff]
    %v358 = vld [vmem:[#allocation3 + $0x728] sm:$0xff]
    %v359 = vld [vmem:[#allocation3 + $0x730] sm:$0xff]
    %v360 = vld [vmem:[#allocation3 + $0x738] sm:$0xff]
    %v361 = vld [vmem:[#allocation3 + $0x740] sm:$0xff]
    %v362 = vld [vmem:[#allocation3 + $0x748] sm:$0xff]
    %v363 = vld [vmem:[#allocation3 + $0x750] sm:$0xff]
    %v364 = vld [vmem:[#allocation3 + $0x758] sm:$0xff]
    %v365 = vld [vmem:[#allocation3 + $0x760] sm:$0xff]
    %v366 = vld [vmem:[#allocation3 + $0x768] sm:$0xff]
    %v367 = vld [vmem:[#allocation3 + $0x770] sm:$0xff]
    %v368 = vld [vmem:[#allocation3 + $0x778] sm:$0xff]
    %v369 = vld [vmem:[#allocation3 + $0x780] sm:$0xff]
    %v370 = vld [vmem:[#allocation3 + $0x788] sm:$0xff]
    %v371 = vld [vmem:[#allocation3 + $0x790] sm:$0xff]
    %v372 = vld [vmem:[#allocation3 + $0x798] sm:$0xff]
    %v373 = vld [vmem:[#allocation3 + $0x7a0] sm:$0xff]
    %v374 = vld [vmem:[#allocation3 + $0x7a8] sm:$0xff]
    %v375 = vld [vmem:[#allocation3 + $0x7b0] sm:$0xff]
    %v376 = vld [vmem:[#allocation3 + $0x7b8] sm:$0xff]
    %v377 = vld [vmem:[#allocation3 + $0x7c0] sm:$0xff]
    %v378 = vld [vmem:[#allocation3 + $0x7c8] sm:$0xff]
    %v379 = vld [vmem:[#allocation3 + $0x7d0] sm:$0xff]
    %v380 = vld [vmem:[#allocation3 + $0x7d8] sm:$0xff]
    %v381 = vld [vmem:[#allocation3 + $0x7e0] sm:$0xff]
    %v382 = vld [vmem:[#allocation3 + $0x7e8] sm:$0xff]
    %v383 = vld [vmem:[#allocation3 + $0x7f0] sm:$0xff]
    %v384 = vld [vmem:[#allocation3 + $0x7f8] sm:$0xff]
    %v385 = vld [vmem:[#allocation3 + $0x800] sm:$0xff]
    %v386 = vld [vmem:[#allocation3 + $0x808] sm:$0xff]
    %v387 = vld [vmem:[#allocation3 + $0x810] sm:$0xff]
    %v388 = vld [vmem:[#allocation3 + $0x818] sm:$0xff]
    %v389 = vld [vmem:[#allocation3 + $0x820] sm:$0xff]
    %v390 = vld [vmem:[#allocation3 + $0x828] sm:$0xff]
    %v391 = vld [vmem:[#allocation3 + $0x830] sm:$0xff]
    %v392 = vld [vmem:[#allocation3 + $0x838] sm:$0xff]
    %v393 = vld [vmem:[#allocation3 + $0x840] sm:$0xff]
    %v394 = vld [vmem:[#allocation3 + $0x848] sm:$0xff]
    %v395 = vld [vmem:[#allocation3 + $0x850] sm:$0xff]
    %v396 = vld [vmem:[#allocation3 + $0x858] sm:$0xff]
    %v397 = vld [vmem:[#allocation3 + $0x860] sm:$0xff]
    %v398 = vld [vmem:[#allocation3 + $0x868] sm:$0xff]
    %v399 = vld [vmem:[#allocation3 + $0x870] sm:$0xff]
    %v400 = vld [vmem:[#allocation3 + $0x878] sm:$0xff]
    %v401 = vld [vmem:[#allocation3 + $0x880] sm:$0xff]
    %v402 = vld [vmem:[#allocation3 + $0x888] sm:$0xff]
    %v403 = vld [vmem:[#allocation3 + $0x890] sm:$0xff]
    %v404 = vld [vmem:[#allocation3 + $0x898] sm:$0xff]
    %v405 = vld [vmem:[#allocation3 + $0x8a0] sm:$0xff]
    %v406 = vld [vmem:[#allocation3 + $0x8a8] sm:$0xff]
    %v407 = vld [vmem:[#allocation3 + $0x8b0] sm:$0xff]
    %v408 = vld [vmem:[#allocation3 + $0x8b8] sm:$0xff]
    %v409 = vld [vmem:[#allocation3 + $0x8c0] sm:$0xff]
    %v410 = vld [vmem:[#allocation3 + $0x8c8] sm:$0xff]
    %v411 = vld [vmem:[#allocation3 + $0x8d0] sm:$0xff]
    %v412 = vld [vmem:[#allocation3 + $0x8d8] sm:$0xff]
    %v413 = vld [vmem:[#allocation3 + $0x8e0] sm:$0xff]
    %v414 = vld [vmem:[#allocation3 + $0x8e8] sm:$0xff]
    %v415 = vld [vmem:[#allocation3 + $0x8f0] sm:$0xff]
    %v416 = vld [vmem:[#allocation3 + $0x8f8] sm:$0xff]
    %v417 = vld [vmem:[#allocation3 + $0x900] sm:$0xff]
    %v418 = vld [vmem:[#allocation3 + $0x908] sm:$0xff]
    %v419 = vld [vmem:[#allocation3 + $0x910] sm:$0xff]
    %v420 = vld [vmem:[#allocation3 + $0x918] sm:$0xff]
    %v421 = vld [vmem:[#allocation3 + $0x920] sm:$0xff]
    %v422 = vld [vmem:[#allocation3 + $0x928] sm:$0xff]
    %v423 = vld [vmem:[#allocation3 + $0x930] sm:$0xff]
    %v424 = vld [vmem:[#allocation3 + $0x938] sm:$0xff]
    %v425 = vld [vmem:[#allocation3 + $0x940] sm:$0xff]
    %v426 = vld [vmem:[#allocation3 + $0x948] sm:$0xff]
    %v427 = vld [vmem:[#allocation3 + $0x950] sm:$0xff]
    %v428 = vld [vmem:[#allocation3 + $0x958] sm:$0xff]
    %v429 = vld [vmem:[#allocation3 + $0x960] sm:$0xff]
    %v430 = vld [vmem:[#allocation3 + $0x968] sm:$0xff]
    %v431 = vld [vmem:[#allocation3 + $0x970] sm:$0xff]
    %v432 = vld [vmem:[#allocation3 + $0x978] sm:$0xff]
    %v433 = vld [vmem:[#allocation3 + $0x980] sm:$0xff]
    %v434 = vld [vmem:[#allocation3 + $0x988] sm:$0xff]
    %v435 = vld [vmem:[#allocation3 + $0x990] sm:$0xff]
    %v436 = vld [vmem:[#allocation3 + $0x998] sm:$0xff]
    %v437 = vld [vmem:[#allocation3 + $0x9a0] sm:$0xff]
    %v438 = vld [vmem:[#allocation3 + $0x9a8] sm:$0xff]
    %v439 = vld [vmem:[#allocation3 + $0x9b0] sm:$0xff]
    %v440 = vld [vmem:[#allocation3 + $0x9b8] sm:$0xff]
    %v441 = vld [vmem:[#allocation3 + $0x9c0] sm:$0xff]
    %v442 = vld [vmem:[#allocation3 + $0x9c8] sm:$0xff]
    %v443 = vld [vmem:[#allocation3 + $0x9d0] sm:$0xff]
    %v444 = vld [vmem:[#allocation3 + $0x9d8] sm:$0xff]
    %v445 = vld [vmem:[#allocation3 + $0x9e0] sm:$0xff]
    %v446 = vld [vmem:[#allocation3 + $0x9e8] sm:$0xff]
    %v447 = vld [vmem:[#allocation3 + $0x9f0] sm:$0xff]
    %v448 = vld [vmem:[#allocation3 + $0x9f8] sm:$0xff]
    %v449 = vld [vmem:[#allocation3 + $0xa00] sm:$0xff]
    %v450 = vld [vmem:[#allocation3 + $0xa08] sm:$0xff]
    %v451 = vld [vmem:[#allocation3 + $0xa10] sm:$0xff]
    %v452 = vld [vmem:[#allocation3 + $0xa18] sm:$0xff]
    %v453 = vld [vmem:[#allocation3 + $0xa20] sm:$0xff]
    %v454 = vld [vmem:[#allocation3 + $0xa28] sm:$0xff]
    %v455 = vld [vmem:[#allocation3 + $0xa30] sm:$0xff]
    %v456 = vld [vmem:[#allocation3 + $0xa38] sm:$0xff]
    %v457 = vld [vmem:[#allocation3 + $0xa40] sm:$0xff]
    %v458 = vld [vmem:[#allocation3 + $0xa48] sm:$0xff]
    %v459 = vld [vmem:[#allocation3 + $0xa50] sm:$0xff]
    %v460 = vld [vmem:[#allocation3 + $0xa58] sm:$0xff]
    %v461 = vld [vmem:[#allocation3 + $0xa60] sm:$0xff]
    %v462 = vld [vmem:[#allocation3 + $0xa68] sm:$0xff]
    %v463 = vld [vmem:[#allocation3 + $0xa70] sm:$0xff]
    %v464 = vld [vmem:[#allocation3 + $0xa78] sm:$0xff]
    %v465 = vld [vmem:[#allocation3 + $0xa80] sm:$0xff]
    %v466 = vld [vmem:[#allocation3 + $0xa88] sm:$0xff]
    %v467 = vld [vmem:[#allocation3 + $0xa90] sm:$0xff]
    %v468 = vld [vmem:[#allocation3 + $0xa98] sm:$0xff]
    %v469 = vld [vmem:[#allocation3 + $0xaa0] sm:$0xff]
    %v470 = vld [vmem:[#allocation3 + $0xaa8] sm:$0xff]
    %v471 = vld [vmem:[#allocation3 + $0xab0] sm:$0xff]
    %v472 = vld [vmem:[#allocation3 + $0xab8] sm:$0xff]
    %v473 = vld [vmem:[#allocation3 + $0xac0] sm:$0xff]
    %v474 = vld [vmem:[#allocation3 + $0xac8] sm:$0xff]
    %v475 = vld [vmem:[#allocation3 + $0xad0] sm:$0xff]
    %v476 = vld [vmem:[#allocation3 + $0xad8] sm:$0xff]
    %v477 = vld [vmem:[#allocation3 + $0xae0] sm:$0xff]
    %v478 = vld [vmem:[#allocation3 + $0xae8] sm:$0xff]
    %v479 = vld [vmem:[#allocation3 + $0xaf0] sm:$0xff]
    %v480 = vld [vmem:[#allocation3 + $0xaf8] sm:$0xff]
    %v481 = vld [vmem:[#allocation3 + $0xb00] sm:$0xff]
    %v482 = vld [vmem:[#allocation3 + $0xb08] sm:$0xff]
    %v483 = vld [vmem:[#allocation3 + $0xb10] sm:$0xff]
    %v484 = vld [vmem:[#allocation3 + $0xb18] sm:$0xff]
    %v485 = vld [vmem:[#allocation3 + $0xb20] sm:$0xff]
    %v486 = vld [vmem:[#allocation3 + $0xb28] sm:$0xff]
    %v487 = vld [vmem:[#allocation3 + $0xb30] sm:$0xff]
    %v488 = vld [vmem:[#allocation3 + $0xb38] sm:$0xff]
    %v489 = vld [vmem:[#allocation3 + $0xb40] sm:$0xff]
    %v490 = vld [vmem:[#allocation3 + $0xb48] sm:$0xff]
    %v491 = vld [vmem:[#allocation3 + $0xb50] sm:$0xff]
    %v492 = vld [vmem:[#allocation3 + $0xb58] sm:$0xff]
    %v493 = vld [vmem:[#allocation3 + $0xb60] sm:$0xff]
    %v494 = vld [vmem:[#allocation3 + $0xb68] sm:$0xff]
    %v495 = vld [vmem:[#allocation3 + $0xb70] sm:$0xff]
    %v496 = vld [vmem:[#allocation3 + $0xb78] sm:$0xff]
    %v497 = vld [vmem:[#allocation3 + $0xb80] sm:$0xff]
    %v498 = vld [vmem:[#allocation3 + $0xb88] sm:$0xff]
    %v499 = vld [vmem:[#allocation3 + $0xb90] sm:$0xff]
    %v500 = vld [vmem:[#allocation3 + $0xb98] sm:$0xff]
    %v501 = vld [vmem:[#allocation3 + $0xba0] sm:$0xff]
    %v502 = vld [vmem:[#allocation3 + $0xba8] sm:$0xff]
    %v503 = vld [vmem:[#allocation3 + $0xbb0] sm:$0xff]
    %v504 = vld [vmem:[#allocation3 + $0xbb8] sm:$0xff]
    %v505 = vld [vmem:[#allocation3 + $0xbc0] sm:$0xff]
    %v506 = vld [vmem:[#allocation3 + $0xbc8] sm:$0xff]
    %v507 = vld [vmem:[#allocation3 + $0xbd0] sm:$0xff]
    %v508 = vld [vmem:[#allocation3 + $0xbd8] sm:$0xff]
    %v509 = vld [vmem:[#allocation3 + $0xbe0] sm:$0xff]
    %v510 = vld [vmem:[#allocation3 + $0xbe8] sm:$0xff]
    %v511 = vld [vmem:[#allocation3 + $0xbf0] sm:$0xff]
    %v512 = vld [vmem:[#allocation3 + $0xbf8] sm:$0xff]
    %v513 = vld [vmem:[#allocation3 + $0xc00] sm:$0xff]
    %v514 = vld [vmem:[#allocation3 + $0xc08] sm:$0xff]
    %v515 = vld [vmem:[#allocation3 + $0xc10] sm:$0xff]
    %v516 = vld [vmem:[#allocation3 + $0xc18] sm:$0xff]
    %v517 = vld [vmem:[#allocation3 + $0xc20] sm:$0xff]
    %v518 = vld [vmem:[#allocation3 + $0xc28] sm:$0xff]
    %v519 = vld [vmem:[#allocation3 + $0xc30] sm:$0xff]
    %v520 = vld [vmem:[#allocation3 + $0xc38] sm:$0xff]
    %v521 = vld [vmem:[#allocation3 + $0xc40] sm:$0xff]
    %v522 = vld [vmem:[#allocation3 + $0xc48] sm:$0xff]
    %v523 = vld [vmem:[#allocation3 + $0xc50] sm:$0xff]
    %v524 = vld [vmem:[#allocation3 + $0xc58] sm:$0xff]
    %v525 = vld [vmem:[#allocation3 + $0xc60] sm:$0xff]
    %v526 = vld [vmem:[#allocation3 + $0xc68] sm:$0xff]
    %v527 = vld [vmem:[#allocation3 + $0xc70] sm:$0xff]
    %v528 = vld [vmem:[#allocation3 + $0xc78] sm:$0xff]
    %v529 = vld [vmem:[#allocation3 + $0xc80] sm:$0xff]
    %v530 = vld [vmem:[#allocation3 + $0xc88] sm:$0xff]
    %v531 = vld [vmem:[#allocation3 + $0xc90] sm:$0xff]
    %v532 = vld [vmem:[#allocation3 + $0xc98] sm:$0xff]
    %v533 = vld [vmem:[#allocation3 + $0xca0] sm:$0xff]
    %v534 = vld [vmem:[#allocation3 + $0xca8] sm:$0xff]
    %v535 = vld [vmem:[#allocation3 + $0xcb0] sm:$0xff]
    %v536 = vld [vmem:[#allocation3 + $0xcb8] sm:$0xff]
    %v537 = vld [vmem:[#allocation3 + $0xcc0] sm:$0xff]
    %v538 = vld [vmem:[#allocation3 + $0xcc8] sm:$0xff]
    %v539 = vld [vmem:[#allocation3 + $0xcd0] sm:$0xff]
    %v540 = vld [vmem:[#allocation3 + $0xcd8] sm:$0xff]
    %v541 = vld [vmem:[#allocation3 + $0xce0] sm:$0xff]
    %v542 = vld [vmem:[#allocation3 + $0xce8] sm:$0xff]
    %v543 = vld [vmem:[#allocation3 + $0xcf0] sm:$0xff]
    %v544 = vld [vmem:[#allocation3 + $0xcf8] sm:$0xff]
    %v545 = vld [vmem:[#allocation3 + $0xd00] sm:$0xff]
    %v546 = vld [vmem:[#allocation3 + $0xd08] sm:$0xff]
    %v547 = vld [vmem:[#allocation3 + $0xd10] sm:$0xff]
    %v548 = vld [vmem:[#allocation3 + $0xd18] sm:$0xff]
    %v549 = vld [vmem:[#allocation3 + $0xd20] sm:$0xff]
    %v550 = vld [vmem:[#allocation3 + $0xd28] sm:$0xff]
    %v551 = vld [vmem:[#allocation3 + $0xd30] sm:$0xff]
    %v552 = vld [vmem:[#allocation3 + $0xd38] sm:$0xff]
    %v553 = vld [vmem:[#allocation3 + $0xd40] sm:$0xff]
    %v554 = vld [vmem:[#allocation3 + $0xd48] sm:$0xff]
    %v555 = vld [vmem:[#allocation3 + $0xd50] sm:$0xff]
    %v556 = vld [vmem:[#allocation3 + $0xd58] sm:$0xff]
    %v557 = vld [vmem:[#allocation3 + $0xd60] sm:$0xff]
    %v558 = vld [vmem:[#allocation3 + $0xd68] sm:$0xff]
    %v559 = vld [vmem:[#allocation3 + $0xd70] sm:$0xff]
    %v560 = vld [vmem:[#allocation3 + $0xd78] sm:$0xff]
    %v561 = vld [vmem:[#allocation3 + $0xd80] sm:$0xff]
    %v562 = vld [vmem:[#allocation3 + $0xd88] sm:$0xff]
    %v563 = vld [vmem:[#allocation3 + $0xd90] sm:$0xff]
    %v564 = vld [vmem:[#allocation3 + $0xd98] sm:$0xff]
    %v565 = vld [vmem:[#allocation3 + $0xda0] sm:$0xff]
    %v566 = vld [vmem:[#allocation3 + $0xda8] sm:$0xff]
    %v567 = vld [vmem:[#allocation3 + $0xdb0] sm:$0xff]
    %v568 = vld [vmem:[#allocation3 + $0xdb8] sm:$0xff]
    %v569 = vld [vmem:[#allocation3 + $0xdc0] sm:$0xff]
    %v570 = vld [vmem:[#allocation3 + $0xdc8] sm:$0xff]
    %v571 = vld [vmem:[#allocation3 + $0xdd0] sm:$0xff]
    %v572 = vld [vmem:[#allocation3 + $0xdd8] sm:$0xff]
    %v573 = vld [vmem:[#allocation3 + $0xde0] sm:$0xff]
    %v574 = vld [vmem:[#allocation3 + $0xde8] sm:$0xff]
    %v575 = vld [vmem:[#allocation3 + $0xdf0] sm:$0xff]
    %v576 = vld [vmem:[#allocation3 + $0xdf8] sm:$0xff]
    %v577 = vld [vmem:[#allocation3 + $0xe00] sm:$0xff]
    %v578 = vld [vmem:[#allocation3 + $0xe08] sm:$0xff]
    %v579 = vld [vmem:[#allocation3 + $0xe10] sm:$0xff]
    %v580 = vld [vmem:[#allocation3 + $0xe18] sm:$0xff]
    %v581 = vld [vmem:[#allocation3 + $0xe20] sm:$0xff]
    %v582 = vld [vmem:[#allocation3 + $0xe28] sm:$0xff]
    %v583 = vld [vmem:[#allocation3 + $0xe30] sm:$0xff]
    %v584 = vld [vmem:[#allocation3 + $0xe38] sm:$0xff]
    %v585 = vld [vmem:[#allocation3 + $0xe40] sm:$0xff]
    %v586 = vld [vmem:[#allocation3 + $0xe48] sm:$0xff]
    %v587 = vld [vmem:[#allocation3 + $0xe50] sm:$0xff]
    %v588 = vld [vmem:[#allocation3 + $0xe58] sm:$0xff]
    %v589 = vld [vmem:[#allocation3 + $0xe60] sm:$0xff]
    %v590 = vld [vmem:[#allocation3 + $0xe68] sm:$0xff]
    %v591 = vld [vmem:[#allocation3 + $0xe70] sm:$0xff]
    %v592 = vld [vmem:[#allocation3 + $0xe78] sm:$0xff]
    %v593 = vld [vmem:[#allocation3 + $0xe80] sm:$0xff]
    %v594 = vld [vmem:[#allocation3 + $0xe88] sm:$0xff]
    %v595 = vld [vmem:[#allocation3 + $0xe90] sm:$0xff]
    %v596 = vld [vmem:[#allocation3 + $0xe98] sm:$0xff]
    %v597 = vld [vmem:[#allocation3 + $0xea0] sm:$0xff]
    %v598 = vld [vmem:[#allocation3 + $0xea8] sm:$0xff]
    %v599 = vld [vmem:[#allocation3 + $0xeb0] sm:$0xff]
    %v600 = vld [vmem:[#allocation3 + $0xeb8] sm:$0xff]
    %v601 = vld [vmem:[#allocation3 + $0xec0] sm:$0xff]
    %v602 = vld [vmem:[#allocation3 + $0xec8] sm:$0xff]
    %v603 = vld [vmem:[#allocation3 + $0xed0] sm:$0xff]
    %v604 = vld [vmem:[#allocation3 + $0xed8] sm:$0xff]
    %v605 = vld [vmem:[#allocation3 + $0xee0] sm:$0xff]
    %v606 = vld [vmem:[#allocation3 + $0xee8] sm:$0xff]
    %v607 = vld [vmem:[#allocation3 + $0xef0] sm:$0xff]
    %v608 = vld [vmem:[#allocation3 + $0xef8] sm:$0xff]
    %v609 = vld [vmem:[#allocation3 + $0xf00] sm:$0xff]
    %v610 = vld [vmem:[#allocation3 + $0xf08] sm:$0xff]
    %v611 = vld [vmem:[#allocation3 + $0xf10] sm:$0xff]
    %v612 = vld [vmem:[#allocation3 + $0xf18] sm:$0xff]
    %v613 = vld [vmem:[#allocation3 + $0xf20] sm:$0xff]
    %v614 = vld [vmem:[#allocation3 + $0xf28] sm:$0xff]
    %v615 = vld [vmem:[#allocation3 + $0xf30] sm:$0xff]
    %v616 = vld [vmem:[#allocation3 + $0xf38] sm:$0xff]
    %v617 = vld [vmem:[#allocation3 + $0xf40] sm:$0xff]
    %v618 = vld [vmem:[#allocation3 + $0xf48] sm:$0xff]
    %v619 = vld [vmem:[#allocation3 + $0xf50] sm:$0xff]
    %v620 = vld [vmem:[#allocation3 + $0xf58] sm:$0xff]
    %v621 = vld [vmem:[#allocation3 + $0xf60] sm:$0xff]
    %v622 = vld [vmem:[#allocation3 + $0xf68] sm:$0xff]
    %v623 = vld [vmem:[#allocation3 + $0xf70] sm:$0xff]
    %v624 = vld [vmem:[#allocation3 + $0xf78] sm:$0xff]
    %v625 = vld [vmem:[#allocation3 + $0xf80] sm:$0xff]
    %v626 = vld [vmem:[#allocation3 + $0xf88] sm:$0xff]
    %v627 = vld [vmem:[#allocation3 + $0xf90] sm:$0xff]
    %v628 = vld [vmem:[#allocation3 + $0xf98] sm:$0xff]
    %v629 = vld [vmem:[#allocation3 + $0xfa0] sm:$0xff]
    %v630 = vld [vmem:[#allocation3 + $0xfa8] sm:$0xff]
    %v631 = vld [vmem:[#allocation3 + $0xfb0] sm:$0xff]
    %v632 = vld [vmem:[#allocation3 + $0xfb8] sm:$0xff]
    %v633 = vld [vmem:[#allocation3 + $0xfc0] sm:$0xff]
    %v634 = vld [vmem:[#allocation3 + $0xfc8] sm:$0xff]
    %v635 = vld [vmem:[#allocation3 + $0xfd0] sm:$0xff]
    %v636 = vld [vmem:[#allocation3 + $0xfd8] sm:$0xff]
    %v637 = vld [vmem:[#allocation3 + $0xfe0] sm:$0xff]
    %v638 = vld [vmem:[#allocation3 + $0xfe8] sm:$0xff]
    %v639 = vld [vmem:[#allocation3 + $0xff0] sm:$0xff]
    %v640 = vld [vmem:[#allocation3 + $0xff8] sm:$0xff]
    %v641 = vld [vmem:[#allocation3 + $0x1000] sm:$0xff]
    %v642 = vld [vmem:[#allocation3 + $0x1008] sm:$0xff]
    %v643 = vld [vmem:[#allocation3 + $0x1010] sm:$0xff]
    %v644 = vld [vmem:[#allocation3 + $0x1018] sm:$0xff]
    %v645 = vld [vmem:[#allocation3 + $0x1020] sm:$0xff]
    %v646 = vld [vmem:[#allocation3 + $0x1028] sm:$0xff]
    %v647 = vld [vmem:[#allocation3 + $0x1030] sm:$0xff]
    %v648 = vld [vmem:[#allocation3 + $0x1038] sm:$0xff]
    %v649 = vld [vmem:[#allocation3 + $0x1040] sm:$0xff]
    %v650 = vld [vmem:[#allocation3 + $0x1048] sm:$0xff]
    %v651 = vld [vmem:[#allocation3 + $0x1050] sm:$0xff]
    %v652 = vld [vmem:[#allocation3 + $0x1058] sm:$0xff]
    %v653 = vld [vmem:[#allocation3 + $0x1060] sm:$0xff]
    %v654 = vld [vmem:[#allocation3 + $0x1068] sm:$0xff]
    %v655 = vld [vmem:[#allocation3 + $0x1070] sm:$0xff]
    %v656 = vld [vmem:[#allocation3 + $0x1078] sm:$0xff]
    %v657 = vld [vmem:[#allocation3 + $0x1080] sm:$0xff]
    %v658 = vld [vmem:[#allocation3 + $0x1088] sm:$0xff]
    %v659 = vld [vmem:[#allocation3 + $0x1090] sm:$0xff]
    %v660 = vld [vmem:[#allocation3 + $0x1098] sm:$0xff]
    %v661 = vld [vmem:[#allocation3 + $0x10a0] sm:$0xff]
    %v662 = vld [vmem:[#allocation3 + $0x10a8] sm:$0xff]
    %v663 = vld [vmem:[#allocation3 + $0x10b0] sm:$0xff]
    %v664 = vld [vmem:[#allocation3 + $0x10b8] sm:$0xff]
    %v665 = vld [vmem:[#allocation3 + $0x10c0] sm:$0xff]
    %v666 = vld [vmem:[#allocation3 + $0x10c8] sm:$0xff]
    %v667 = vld [vmem:[#allocation3 + $0x10d0] sm:$0xff]
    %v668 = vld [vmem:[#allocation3 + $0x10d8] sm:$0xff]
    %v669 = vld [vmem:[#allocation3 + $0x10e0] sm:$0xff]
    %v670 = vld [vmem:[#allocation3 + $0x10e8] sm:$0xff]
    %v671 = vld [vmem:[#allocation3 + $0x10f0] sm:$0xff]
    %v672 = vld [vmem:[#allocation3 + $0x10f8] sm:$0xff]
    %v673 = vld [vmem:[#allocation3 + $0x1100] sm:$0xff]
    %v674 = vld [vmem:[#allocation3 + $0x1108] sm:$0xff]
    %v675 = vld [vmem:[#allocation3 + $0x1110] sm:$0xff]
    %v676 = vld [vmem:[#allocation3 + $0x1118] sm:$0xff]
    %v677 = vld [vmem:[#allocation3 + $0x1120] sm:$0xff]
    %v678 = vld [vmem:[#allocation3 + $0x1128] sm:$0xff]
    %v679 = vld [vmem:[#allocation3 + $0x1130] sm:$0xff]
    %v680 = vld [vmem:[#allocation3 + $0x1138] sm:$0xff]
    %v681 = vld [vmem:[#allocation3 + $0x1140] sm:$0xff]
    %v682 = vld [vmem:[#allocation3 + $0x1148] sm:$0xff]
    %v683 = vld [vmem:[#allocation3 + $0x1150] sm:$0xff]
    %v684 = vld [vmem:[#allocation3 + $0x1158] sm:$0xff]
    %v685 = vld [vmem:[#allocation3 + $0x1160] sm:$0xff]
    %v686 = vld [vmem:[#allocation3 + $0x1168] sm:$0xff]
    %v687 = vld [vmem:[#allocation3 + $0x1170] sm:$0xff]
    %v688 = vld [vmem:[#allocation3 + $0x1178] sm:$0xff]
    %v689 = vld [vmem:[#allocation3 + $0x1180] sm:$0xff]
    %v690 = vld [vmem:[#allocation3 + $0x1188] sm:$0xff]
    %v691 = vld [vmem:[#allocation3 + $0x1190] sm:$0xff]
    %v692 = vld [vmem:[#allocation3 + $0x1198] sm:$0xff]
    %v693 = vld [vmem:[#allocation3 + $0x11a0] sm:$0xff]
    %v694 = vld [vmem:[#allocation3 + $0x11a8] sm:$0xff]
    %v695 = vld [vmem:[#allocation3 + $0x11b0] sm:$0xff]
    %v696 = vld [vmem:[#allocation3 + $0x11b8] sm:$0xff]
    %v697 = vld [vmem:[#allocation3 + $0x11c0] sm:$0xff]
    %v698 = vld [vmem:[#allocation3 + $0x11c8] sm:$0xff]
    %v699 = vld [vmem:[#allocation3 + $0x11d0] sm:$0xff]
    %v700 = vld [vmem:[#allocation3 + $0x11d8] sm:$0xff]
    %v701 = vld [vmem:[#allocation3 + $0x11e0] sm:$0xff]
    %v702 = vld [vmem:[#allocation3 + $0x11e8] sm:$0xff]
    %v703 = vld [vmem:[#allocation3 + $0x11f0] sm:$0xff]
    %v704 = vld [vmem:[#allocation3 + $0x11f8] sm:$0xff]
    %v705 = vld [vmem:[#allocation3 + $0x1200] sm:$0xff]
    %v706 = vld [vmem:[#allocation3 + $0x1208] sm:$0xff]
    %v707 = vld [vmem:[#allocation3 + $0x1210] sm:$0xff]
    %v708 = vld [vmem:[#allocation3 + $0x1218] sm:$0xff]
    %v709 = vld [vmem:[#allocation3 + $0x1220] sm:$0xff]
    %v710 = vld [vmem:[#allocation3 + $0x1228] sm:$0xff]
    %v711 = vld [vmem:[#allocation3 + $0x1230] sm:$0xff]
    %v712 = vld [vmem:[#allocation3 + $0x1238] sm:$0xff]
    %v713 = vld [vmem:[#allocation3 + $0x1240] sm:$0xff]
    %v714 = vld [vmem:[#allocation3 + $0x1248] sm:$0xff]
    %v715 = vld [vmem:[#allocation3 + $0x1250] sm:$0xff]
    %v716 = vld [vmem:[#allocation3 + $0x1258] sm:$0xff]
    %v717 = vld [vmem:[#allocation5] sm:$0xf]
    %v719 = vlaneseq
    %v720 = vshrl.u32 %v719, 7
    %v721 = vsub.s32 0, %v720
    %v722 = vrot.slane %v717, %v721
    %v723 = vlaneseq
    %v724 = vshrl.u32 %v723, 7
    %v725 = vsub.s32 1, %v724
    %v726 = vrot.slane %v717, %v725
    %v727 = vlaneseq
    %v728 = vshrl.u32 %v727, 7
    %v729 = vsub.s32 2, %v728
    %v730 = vrot.slane %v717, %v729
    %v731 = vlaneseq
    %v732 = vshrl.u32 %v731, 7
    %v733 = vsub.s32 3, %v732
    %v734 = vrot.slane %v717, %v733
    %v1327 = vunpack.c.l.b16 %v129
    %v1328 = vunpack.c.h.b16 %v129
    %v1329 = vunpack.c.l.b16 %v130
    %v1330 = vunpack.c.h.b16 %v130
    %v1331 = vunpack.c.l.b16 %v131
    %v1332 = vunpack.c.h.b16 %v131
    %v1333 = vunpack.c.l.b16 %v132
    %v1334 = vunpack.c.h.b16 %v132
    %v1335 = vunpack.c.l.b16 %v133
    %v1336 = vunpack.c.h.b16 %v133
    %v1337 = vunpack.c.l.b16 %v134
    %v1338 = vunpack.c.h.b16 %v134
    %v1339 = vunpack.c.l.b16 %v135
    %v1340 = vunpack.c.h.b16 %v135
    %v1341 = vunpack.c.l.b16 %v136
    %v1342 = vunpack.c.h.b16 %v136
    %v1343 = vunpack.c.l.b16 %v137
    %v1344 = vunpack.c.h.b16 %v137
    %v1345 = vunpack.c.l.b16 %v138
    %v1346 = vunpack.c.h.b16 %v138
    %v1347 = vunpack.c.l.b16 %v139
    %v1348 = vunpack.c.h.b16 %v139
    %v1349 = vunpack.c.l.b16 %v140
    %v1350 = vunpack.c.h.b16 %v140
    %v1351 = vunpack.c.l.b16 %v141
    %v1352 = vunpack.c.h.b16 %v141
    %v1353 = vunpack.c.l.b16 %v142
    %v1354 = vunpack.c.h.b16 %v142
    %v1355 = vunpack.c.l.b16 %v143
    %v1356 = vunpack.c.h.b16 %v143
    %v1357 = vunpack.c.l.b16 %v144
    %v1358 = vunpack.c.h.b16 %v144
    %v1359 = vunpack.c.l.b16 %v145
    %v1360 = vunpack.c.h.b16 %v145
    %v1361 = vunpack.c.l.b16 %v146
    %v1362 = vunpack.c.h.b16 %v146
    %v1363 = vunpack.c.l.b16 %v147
    %v1364 = vunpack.c.h.b16 %v147
    %v1365 = vunpack.c.l.b16 %v148
    %v1366 = vunpack.c.h.b16 %v148
    %v1367 = vunpack.c.l.b16 %v149
    %v1368 = vunpack.c.h.b16 %v149
    %v1369 = vunpack.c.l.b16 %v150
    %v1370 = vunpack.c.h.b16 %v150
    %v1371 = vunpack.c.l.b16 %v151
    %v1372 = vunpack.c.h.b16 %v151
    %v1373 = vunpack.c.l.b16 %v152
    %v1374 = vunpack.c.h.b16 %v152
    %v1375 = vunpack.c.l.b16 %v153
    %v1376 = vunpack.c.h.b16 %v153
    %v1377 = vunpack.c.l.b16 %v154
    %v1378 = vunpack.c.h.b16 %v154
    %v1379 = vunpack.c.l.b16 %v155
    %v1380 = vunpack.c.h.b16 %v155
    %v1381 = vunpack.c.l.b16 %v156
    %v1382 = vunpack.c.h.b16 %v156
    %v1383 = vunpack.c.l.b16 %v157
    %v1384 = vunpack.c.h.b16 %v157
    %v1385 = vunpack.c.l.b16 %v158
    %v1386 = vunpack.c.h.b16 %v158
    %v1387 = vunpack.c.l.b16 %v159
    %v1388 = vunpack.c.h.b16 %v159
    %v1389 = vunpack.c.l.b16 %v160
    %v1390 = vunpack.c.h.b16 %v160
    %v1391 = vunpack.c.l.b16 %v161
    %v1392 = vunpack.c.h.b16 %v161
    %v1393 = vunpack.c.l.b16 %v162
    %v1394 = vunpack.c.h.b16 %v162
    %v1395 = vunpack.c.l.b16 %v163
    %v1396 = vunpack.c.h.b16 %v163
    %v1397 = vunpack.c.l.b16 %v164
    %v1398 = vunpack.c.h.b16 %v164
    %v1399 = vunpack.c.l.b16 %v165
    %v1400 = vunpack.c.h.b16 %v165
    %v1401 = vunpack.c.l.b16 %v166
    %v1402 = vunpack.c.h.b16 %v166
    %v1403 = vunpack.c.l.b16 %v167
    %v1404 = vunpack.c.h.b16 %v167
    %v1405 = vunpack.c.l.b16 %v168
    %v1406 = vunpack.c.h.b16 %v168
    %v1407 = vunpack.c.l.b16 %v169
    %v1408 = vunpack.c.h.b16 %v169
    %v1409 = vunpack.c.l.b16 %v170
    %v1410 = vunpack.c.h.b16 %v170
    %v1411 = vunpack.c.l.b16 %v171
    %v1412 = vunpack.c.h.b16 %v171
    %v1413 = vunpack.c.l.b16 %v172
    %v1414 = vunpack.c.h.b16 %v172
    %v1415 = vunpack.c.l.b16 %v173
    %v1416 = vunpack.c.h.b16 %v173
    %v1417 = vunpack.c.l.b16 %v174
    %v1418 = vunpack.c.h.b16 %v174
    %v1419 = vunpack.c.l.b16 %v175
    %v1420 = vunpack.c.h.b16 %v175
    %v1421 = vunpack.c.l.b16 %v176
    %v1422 = vunpack.c.h.b16 %v176
    %v1423 = vunpack.c.l.b16 %v177
    %v1424 = vunpack.c.h.b16 %v177
    %v1425 = vunpack.c.l.b16 %v178
    %v1426 = vunpack.c.h.b16 %v178
    %v1427 = vunpack.c.l.b16 %v179
    %v1428 = vunpack.c.h.b16 %v179
    %v1429 = vunpack.c.l.b16 %v180
    %v1430 = vunpack.c.h.b16 %v180
    %v1431 = vunpack.c.l.b16 %v181
    %v1432 = vunpack.c.h.b16 %v181
    %v1433 = vunpack.c.l.b16 %v182
    %v1434 = vunpack.c.h.b16 %v182
    %v1435 = vunpack.c.l.b16 %v183
    %v1436 = vunpack.c.h.b16 %v183
    %v1437 = vunpack.c.l.b16 %v184
    %v1438 = vunpack.c.h.b16 %v184
    %v1439 = vunpack.c.l.b16 %v185
    %v1440 = vunpack.c.h.b16 %v185
    %v1441 = vunpack.c.l.b16 %v186
    %v1442 = vunpack.c.h.b16 %v186
    %v1443 = vunpack.c.l.b16 %v187
    %v1444 = vunpack.c.h.b16 %v187
    %v1445 = vunpack.c.l.b16 %v188
    %v1446 = vunpack.c.h.b16 %v188
    %v1447 = vunpack.c.l.b16 %v189
    %v1448 = vunpack.c.h.b16 %v189
    %v1449 = vunpack.c.l.b16 %v190
    %v1450 = vunpack.c.h.b16 %v190
    %v1451 = vunpack.c.l.b16 %v191
    %v1452 = vunpack.c.h.b16 %v191
    %v1453 = vunpack.c.l.b16 %v192
    %v1454 = vunpack.c.h.b16 %v192
    %v1455 = vunpack.c.l.b16 %v193
    %v1456 = vunpack.c.h.b16 %v193
    %v1457 = vunpack.c.l.b16 %v194
    %v1458 = vunpack.c.h.b16 %v194
    %v1459 = vunpack.c.l.b16 %v195
    %v1460 = vunpack.c.h.b16 %v195
    %v1461 = vunpack.c.l.b16 %v196
    %v1462 = vunpack.c.h.b16 %v196
    %v1463 = vunpack.c.l.b16 %v197
    %v1464 = vunpack.c.h.b16 %v197
    %v1465 = vunpack.c.l.b16 %v198
    %v1466 = vunpack.c.h.b16 %v198
    %v1467 = vunpack.c.l.b16 %v199
    %v1468 = vunpack.c.h.b16 %v199
    %v1469 = vunpack.c.l.b16 %v200
    %v1470 = vunpack.c.h.b16 %v200
    %v1471 = vunpack.c.l.b16 %v201
    %v1472 = vunpack.c.h.b16 %v201
    %v1473 = vunpack.c.l.b16 %v202
    %v1474 = vunpack.c.h.b16 %v202
    %v1475 = vunpack.c.l.b16 %v203
    %v1476 = vunpack.c.h.b16 %v203
    %v1477 = vunpack.c.l.b16 %v204
    %v1478 = vunpack.c.h.b16 %v204
    %v1479 = vunpack.c.l.b16 %v205
    %v1480 = vunpack.c.h.b16 %v205
    %v1481 = vunpack.c.l.b16 %v206
    %v1482 = vunpack.c.h.b16 %v206
    %v1483 = vunpack.c.l.b16 %v207
    %v1484 = vunpack.c.h.b16 %v207
    %v1485 = vunpack.c.l.b16 %v208
    %v1486 = vunpack.c.h.b16 %v208
    %v1487 = vunpack.c.l.b16 %v209
    %v1488 = vunpack.c.h.b16 %v209
    %v1489 = vunpack.c.l.b16 %v210
    %v1490 = vunpack.c.h.b16 %v210
    %v1491 = vunpack.c.l.b16 %v211
    %v1492 = vunpack.c.h.b16 %v211
    %v1493 = vunpack.c.l.b16 %v212
    %v1494 = vunpack.c.h.b16 %v212
    %v1495 = vunpack.c.l.b16 %v213
    %v1496 = vunpack.c.h.b16 %v213
    %v1497 = vunpack.c.l.b16 %v214
    %v1498 = vunpack.c.h.b16 %v214
    %v1499 = vunpack.c.l.b16 %v215
    %v1500 = vunpack.c.h.b16 %v215
    %v1501 = vunpack.c.l.b16 %v216
    %v1502 = vunpack.c.h.b16 %v216
    %v1503 = vunpack.c.l.b16 %v217
    %v1504 = vunpack.c.h.b16 %v217
    %v1505 = vunpack.c.l.b16 %v218
    %v1506 = vunpack.c.h.b16 %v218
    %v1507 = vunpack.c.l.b16 %v219
    %v1508 = vunpack.c.h.b16 %v219
    %v1509 = vunpack.c.l.b16 %v220
    %v1510 = vunpack.c.h.b16 %v220
    %v1511 = vunpack.c.l.b16 %v221
    %v1512 = vunpack.c.h.b16 %v221
    %v1513 = vunpack.c.l.b16 %v222
    %v1514 = vunpack.c.h.b16 %v222
    %v1515 = vunpack.c.l.b16 %v223
    %v1516 = vunpack.c.h.b16 %v223
    %v1517 = vunpack.c.l.b16 %v224
    %v1518 = vunpack.c.h.b16 %v224
    %v1519 = vunpack.c.l.b16 %v225
    %v1520 = vunpack.c.h.b16 %v225
    %v1521 = vunpack.c.l.b16 %v226
    %v1522 = vunpack.c.h.b16 %v226
    %v1523 = vunpack.c.l.b16 %v227
    %v1524 = vunpack.c.h.b16 %v227
    %v1525 = vunpack.c.l.b16 %v228
    %v1526 = vunpack.c.h.b16 %v228
    %v1527 = vunpack.c.l.b16 %v229
    %v1528 = vunpack.c.h.b16 %v229
    %v1529 = vunpack.c.l.b16 %v230
    %v1530 = vunpack.c.h.b16 %v230
    %v1531 = vunpack.c.l.b16 %v231
    %v1532 = vunpack.c.h.b16 %v231
    %v1533 = vunpack.c.l.b16 %v232
    %v1534 = vunpack.c.h.b16 %v232
    %v1535 = vunpack.c.l.b16 %v233
    %v1536 = vunpack.c.h.b16 %v233
    %v1537 = vunpack.c.l.b16 %v234
    %v1538 = vunpack.c.h.b16 %v234
    %v1539 = vunpack.c.l.b16 %v235
    %v1540 = vunpack.c.h.b16 %v235
    %v1541 = vunpack.c.l.b16 %v236
    %v1542 = vunpack.c.h.b16 %v236
    %v1543 = vunpack.c.l.b16 %v237
    %v1544 = vunpack.c.h.b16 %v237
    %v1545 = vunpack.c.l.b16 %v238
    %v1546 = vunpack.c.h.b16 %v238
    %v1547 = vunpack.c.l.b16 %v239
    %v1548 = vunpack.c.h.b16 %v239
    %v1549 = vunpack.c.l.b16 %v240
    %v1550 = vunpack.c.h.b16 %v240
    %v1551 = vunpack.c.l.b16 %v241
    %v1552 = vunpack.c.h.b16 %v241
    %v1553 = vunpack.c.l.b16 %v242
    %v1554 = vunpack.c.h.b16 %v242
    %v1555 = vunpack.c.l.b16 %v243
    %v1556 = vunpack.c.h.b16 %v243
    %v1557 = vunpack.c.l.b16 %v244
    %v1558 = vunpack.c.h.b16 %v244
    %v1559 = vunpack.c.l.b16 %v245
    %v1560 = vunpack.c.h.b16 %v245
    %v1561 = vunpack.c.l.b16 %v246
    %v1562 = vunpack.c.h.b16 %v246
    %v1563 = vunpack.c.l.b16 %v247
    %v1564 = vunpack.c.h.b16 %v247
    %v1565 = vunpack.c.l.b16 %v248
    %v1566 = vunpack.c.h.b16 %v248
    %v1567 = vunpack.c.l.b16 %v249
    %v1568 = vunpack.c.h.b16 %v249
    %v1569 = vunpack.c.l.b16 %v250
    %v1570 = vunpack.c.h.b16 %v250
    %v1571 = vunpack.c.l.b16 %v251
    %v1572 = vunpack.c.h.b16 %v251
    %v1573 = vunpack.c.l.b16 %v252
    %v1574 = vunpack.c.h.b16 %v252
    %v1575 = vunpack.c.l.b16 %v253
    %v1576 = vunpack.c.h.b16 %v253
    %v1577 = vunpack.c.l.b16 %v254
    %v1578 = vunpack.c.h.b16 %v254
    %v1579 = vunpack.c.l.b16 %v255
    %v1580 = vunpack.c.h.b16 %v255
    %v1581 = vunpack.c.l.b16 %v256
    %v1582 = vunpack.c.h.b16 %v256
    %v1583 = vunpack.c.l.b16 %v257
    %v1584 = vunpack.c.h.b16 %v257
    %v1585 = vunpack.c.l.b16 %v258
    %v1586 = vunpack.c.h.b16 %v258
    %v1587 = vunpack.c.l.b16 %v259
    %v1588 = vunpack.c.h.b16 %v259
    %v1589 = vunpack.c.l.b16 %v260
    %v1590 = vunpack.c.h.b16 %v260
    %v1591 = vunpack.c.l.b16 %v261
    %v1592 = vunpack.c.h.b16 %v261
    %v1593 = vunpack.c.l.b16 %v262
    %v1594 = vunpack.c.h.b16 %v262
    %v1595 = vunpack.c.l.b16 %v263
    %v1596 = vunpack.c.h.b16 %v263
    %v1597 = vunpack.c.l.b16 %v264
    %v1598 = vunpack.c.h.b16 %v264
    %v1599 = vunpack.c.l.b16 %v265
    %v1600 = vunpack.c.h.b16 %v265
    %v1601 = vunpack.c.l.b16 %v266
    %v1602 = vunpack.c.h.b16 %v266
    %v1603 = vunpack.c.l.b16 %v267
    %v1604 = vunpack.c.h.b16 %v267
    %v1605 = vunpack.c.l.b16 %v268
    %v1606 = vunpack.c.h.b16 %v268
    %v1607 = vunpack.c.l.b16 %v269
    %v1608 = vunpack.c.h.b16 %v269
    %v1609 = vunpack.c.l.b16 %v270
    %v1610 = vunpack.c.h.b16 %v270
    %v1611 = vunpack.c.l.b16 %v271
    %v1612 = vunpack.c.h.b16 %v271
    %v1613 = vunpack.c.l.b16 %v272
    %v1614 = vunpack.c.h.b16 %v272
    %v1615 = vunpack.c.l.b16 %v273
    %v1616 = vunpack.c.h.b16 %v273
    %v1617 = vunpack.c.l.b16 %v274
    %v1618 = vunpack.c.h.b16 %v274
    %v1619 = vunpack.c.l.b16 %v275
    %v1620 = vunpack.c.h.b16 %v275
    %v1621 = vunpack.c.l.b16 %v276
    %v1622 = vunpack.c.h.b16 %v276
    %v1623 = vunpack.c.l.b16 %v277
    %v1624 = vunpack.c.h.b16 %v277
    %v1625 = vunpack.c.l.b16 %v278
    %v1626 = vunpack.c.h.b16 %v278
    %v1627 = vunpack.c.l.b16 %v279
    %v1628 = vunpack.c.h.b16 %v279
    %v1629 = vunpack.c.l.b16 %v280
    %v1630 = vunpack.c.h.b16 %v280
    %v1631 = vunpack.c.l.b16 %v281
    %v1632 = vunpack.c.h.b16 %v281
    %v1633 = vunpack.c.l.b16 %v282
    %v1634 = vunpack.c.h.b16 %v282
    %v1635 = vunpack.c.l.b16 %v283
    %v1636 = vunpack.c.h.b16 %v283
    %v1637 = vunpack.c.l.b16 %v284
    %v1638 = vunpack.c.h.b16 %v284
    %v1639 = vunpack.c.l.b16 %v285
    %v1640 = vunpack.c.h.b16 %v285
    %v1641 = vunpack.c.l.b16 %v286
    %v1642 = vunpack.c.h.b16 %v286
    %v1643 = vunpack.c.l.b16 %v287
    %v1644 = vunpack.c.h.b16 %v287
    %v1645 = vunpack.c.l.b16 %v288
    %v1646 = vunpack.c.h.b16 %v288
    %v1647 = vunpack.c.l.b16 %v289
    %v1648 = vunpack.c.h.b16 %v289
    %v1649 = vunpack.c.l.b16 %v290
    %v1650 = vunpack.c.h.b16 %v290
    %v1651 = vunpack.c.l.b16 %v291
    %v1652 = vunpack.c.h.b16 %v291
    %v1653 = vunpack.c.l.b16 %v292
    %v1654 = vunpack.c.h.b16 %v292
    %v1655 = vunpack.c.l.b16 %v293
    %v1656 = vunpack.c.h.b16 %v293
    %v1657 = vunpack.c.l.b16 %v294
    %v1658 = vunpack.c.h.b16 %v294
    %v1659 = vunpack.c.l.b16 %v295
    %v1660 = vunpack.c.h.b16 %v295
    %v1661 = vunpack.c.l.b16 %v296
    %v1662 = vunpack.c.h.b16 %v296
    %v1663 = vunpack.c.l.b16 %v297
    %v1664 = vunpack.c.h.b16 %v297
    %v1665 = vunpack.c.l.b16 %v298
    %v1666 = vunpack.c.h.b16 %v298
    %v1667 = vunpack.c.l.b16 %v299
    %v1668 = vunpack.c.h.b16 %v299
    %v1669 = vunpack.c.l.b16 %v300
    %v1670 = vunpack.c.h.b16 %v300
    %v1671 = vunpack.c.l.b16 %v301
    %v1672 = vunpack.c.h.b16 %v301
    %v1673 = vunpack.c.l.b16 %v302
    %v1674 = vunpack.c.h.b16 %v302
    %v1675 = vunpack.c.l.b16 %v303
    %v1676 = vunpack.c.h.b16 %v303
    %v1677 = vunpack.c.l.b16 %v304
    %v1678 = vunpack.c.h.b16 %v304
    %v1679 = vunpack.c.l.b16 %v305
    %v1680 = vunpack.c.h.b16 %v305
    %v1681 = vunpack.c.l.b16 %v306
    %v1682 = vunpack.c.h.b16 %v306
    %v1683 = vunpack.c.l.b16 %v307
    %v1684 = vunpack.c.h.b16 %v307
    %v1685 = vunpack.c.l.b16 %v308
    %v1686 = vunpack.c.h.b16 %v308
    %v1687 = vunpack.c.l.b16 %v309
    %v1688 = vunpack.c.h.b16 %v309
    %v1689 = vunpack.c.l.b16 %v310
    %v1690 = vunpack.c.h.b16 %v310
    %v1691 = vunpack.c.l.b16 %v311
    %v1692 = vunpack.c.h.b16 %v311
    %v1693 = vunpack.c.l.b16 %v312
    %v1694 = vunpack.c.h.b16 %v312
    %v1695 = vunpack.c.l.b16 %v313
    %v1696 = vunpack.c.h.b16 %v313
    %v1697 = vunpack.c.l.b16 %v314
    %v1698 = vunpack.c.h.b16 %v314
    %v1699 = vunpack.c.l.b16 %v315
    %v1700 = vunpack.c.h.b16 %v315
    %v1701 = vunpack.c.l.b16 %v316
    %v1702 = vunpack.c.h.b16 %v316
    %v1703 = vunpack.c.l.b16 %v317
    %v1704 = vunpack.c.h.b16 %v317
    %v1705 = vunpack.c.l.b16 %v318
    %v1706 = vunpack.c.h.b16 %v318
    %v1707 = vunpack.c.l.b16 %v319
    %v1708 = vunpack.c.h.b16 %v319
    %v1709 = vunpack.c.l.b16 %v320
    %v1710 = vunpack.c.h.b16 %v320
    %v1711 = vunpack.c.l.b16 %v321
    %v1712 = vunpack.c.h.b16 %v321
    %v1713 = vunpack.c.l.b16 %v322
    %v1714 = vunpack.c.h.b16 %v322
    %v1715 = vunpack.c.l.b16 %v323
    %v1716 = vunpack.c.h.b16 %v323
    %v1717 = vunpack.c.l.b16 %v324
    %v1718 = vunpack.c.h.b16 %v324
    %v1719 = vunpack.c.l.b16 %v325
    %v1720 = vunpack.c.h.b16 %v325
    %v1721 = vunpack.c.l.b16 %v326
    %v1722 = vunpack.c.h.b16 %v326
    %v1723 = vunpack.c.l.b16 %v327
    %v1724 = vunpack.c.h.b16 %v327
    %v1725 = vunpack.c.l.b16 %v328
    %v1726 = vunpack.c.h.b16 %v328
    %v1727 = vunpack.c.l.b16 %v329
    %v1728 = vunpack.c.h.b16 %v329
    %v1729 = vunpack.c.l.b16 %v330
    %v1730 = vunpack.c.h.b16 %v330
    %v1731 = vunpack.c.l.b16 %v331
    %v1732 = vunpack.c.h.b16 %v331
    %v1733 = vunpack.c.l.b16 %v332
    %v1734 = vunpack.c.h.b16 %v332
    %v1735 = vunpack.c.l.b16 %v333
    %v1736 = vunpack.c.h.b16 %v333
    %v1737 = vunpack.c.l.b16 %v334
    %v1738 = vunpack.c.h.b16 %v334
    %v1739 = vunpack.c.l.b16 %v335
    %v1740 = vunpack.c.h.b16 %v335
    %v1741 = vunpack.c.l.b16 %v336
    %v1742 = vunpack.c.h.b16 %v336
    %v1743 = vunpack.c.l.b16 %v337
    %v1744 = vunpack.c.h.b16 %v337
    %v1745 = vunpack.c.l.b16 %v338
    %v1746 = vunpack.c.h.b16 %v338
    %v1747 = vunpack.c.l.b16 %v339
    %v1748 = vunpack.c.h.b16 %v339
    %v1749 = vunpack.c.l.b16 %v340
    %v1750 = vunpack.c.h.b16 %v340
    %v1751 = vunpack.c.l.b16 %v341
    %v1752 = vunpack.c.h.b16 %v341
    %v1753 = vunpack.c.l.b16 %v342
    %v1754 = vunpack.c.h.b16 %v342
    %v1755 = vunpack.c.l.b16 %v343
    %v1756 = vunpack.c.h.b16 %v343
    %v1757 = vunpack.c.l.b16 %v344
    %v1758 = vunpack.c.h.b16 %v344
    %v1759 = vunpack.c.l.b16 %v345
    %v1760 = vunpack.c.h.b16 %v345
    %v1761 = vunpack.c.l.b16 %v346
    %v1762 = vunpack.c.h.b16 %v346
    %v1763 = vunpack.c.l.b16 %v347
    %v1764 = vunpack.c.h.b16 %v347
    %v1765 = vunpack.c.l.b16 %v348
    %v1766 = vunpack.c.h.b16 %v348
    %v1767 = vunpack.c.l.b16 %v349
    %v1768 = vunpack.c.h.b16 %v349
    %v1769 = vunpack.c.l.b16 %v350
    %v1770 = vunpack.c.h.b16 %v350
    %v1771 = vunpack.c.l.b16 %v351
    %v1772 = vunpack.c.h.b16 %v351
    %v1773 = vunpack.c.l.b16 %v352
    %v1774 = vunpack.c.h.b16 %v352
    %v1775 = vunpack.c.l.b16 %v353
    %v1776 = vunpack.c.h.b16 %v353
    %v1777 = vunpack.c.l.b16 %v354
    %v1778 = vunpack.c.h.b16 %v354
    %v1779 = vunpack.c.l.b16 %v355
    %v1780 = vunpack.c.h.b16 %v355
    %v1781 = vunpack.c.l.b16 %v356
    %v1782 = vunpack.c.h.b16 %v356
    %v1783 = vunpack.c.l.b16 %v357
    %v1784 = vunpack.c.h.b16 %v357
    %v1785 = vunpack.c.l.b16 %v358
    %v1786 = vunpack.c.h.b16 %v358
    %v1787 = vunpack.c.l.b16 %v359
    %v1788 = vunpack.c.h.b16 %v359
    %v1789 = vunpack.c.l.b16 %v360
    %v1790 = vunpack.c.h.b16 %v360
    %v1791 = vunpack.c.l.b16 %v361
    %v1792 = vunpack.c.h.b16 %v361
    %v1793 = vunpack.c.l.b16 %v362
    %v1794 = vunpack.c.h.b16 %v362
    %v1795 = vunpack.c.l.b16 %v363
    %v1796 = vunpack.c.h.b16 %v363
    %v1797 = vunpack.c.l.b16 %v364
    %v1798 = vunpack.c.h.b16 %v364
    %v1799 = vunpack.c.l.b16 %v365
    %v1800 = vunpack.c.h.b16 %v365
    %v1801 = vunpack.c.l.b16 %v366
    %v1802 = vunpack.c.h.b16 %v366
    %v1803 = vunpack.c.l.b16 %v367
    %v1804 = vunpack.c.h.b16 %v367
    %v1805 = vunpack.c.l.b16 %v368
    %v1806 = vunpack.c.h.b16 %v368
    %v1807 = vunpack.c.l.b16 %v369
    %v1808 = vunpack.c.h.b16 %v369
    %v1809 = vunpack.c.l.b16 %v370
    %v1810 = vunpack.c.h.b16 %v370
    %v1811 = vunpack.c.l.b16 %v371
    %v1812 = vunpack.c.h.b16 %v371
    %v1813 = vunpack.c.l.b16 %v372
    %v1814 = vunpack.c.h.b16 %v372
    %v1815 = vunpack.c.l.b16 %v373
    %v1816 = vunpack.c.h.b16 %v373
    %v1817 = vunpack.c.l.b16 %v374
    %v1818 = vunpack.c.h.b16 %v374
    %v1819 = vunpack.c.l.b16 %v375
    %v1820 = vunpack.c.h.b16 %v375
    %v1821 = vunpack.c.l.b16 %v376
    %v1822 = vunpack.c.h.b16 %v376
    %v1823 = vunpack.c.l.b16 %v377
    %v1824 = vunpack.c.h.b16 %v377
    %v1825 = vunpack.c.l.b16 %v378
    %v1826 = vunpack.c.h.b16 %v378
    %v1827 = vunpack.c.l.b16 %v379
    %v1828 = vunpack.c.h.b16 %v379
    %v1829 = vunpack.c.l.b16 %v380
    %v1830 = vunpack.c.h.b16 %v380
    %v1831 = vunpack.c.l.b16 %v381
    %v1832 = vunpack.c.h.b16 %v381
    %v1833 = vunpack.c.l.b16 %v382
    %v1834 = vunpack.c.h.b16 %v382
    %v1835 = vunpack.c.l.b16 %v383
    %v1836 = vunpack.c.h.b16 %v383
    %v1837 = vunpack.c.l.b16 %v384
    %v1838 = vunpack.c.h.b16 %v384
    %v1839 = vunpack.c.l.b16 %v385
    %v1840 = vunpack.c.h.b16 %v385
    %v1841 = vunpack.c.l.b16 %v386
    %v1842 = vunpack.c.h.b16 %v386
    %v1843 = vunpack.c.l.b16 %v387
    %v1844 = vunpack.c.h.b16 %v387
    %v1845 = vunpack.c.l.b16 %v388
    %v1846 = vunpack.c.h.b16 %v388
    %v1847 = vunpack.c.l.b16 %v389
    %v1848 = vunpack.c.h.b16 %v389
    %v1849 = vunpack.c.l.b16 %v390
    %v1850 = vunpack.c.h.b16 %v390
    %v1851 = vunpack.c.l.b16 %v391
    %v1852 = vunpack.c.h.b16 %v391
    %v1853 = vunpack.c.l.b16 %v392
    %v1854 = vunpack.c.h.b16 %v392
    %v1855 = vunpack.c.l.b16 %v393
    %v1856 = vunpack.c.h.b16 %v393
    %v1857 = vunpack.c.l.b16 %v394
    %v1858 = vunpack.c.h.b16 %v394
    %v1859 = vunpack.c.l.b16 %v395
    %v1860 = vunpack.c.h.b16 %v395
    %v1861 = vunpack.c.l.b16 %v396
    %v1862 = vunpack.c.h.b16 %v396
    %v1863 = vunpack.c.l.b16 %v397
    %v1864 = vunpack.c.h.b16 %v397
    %v1865 = vunpack.c.l.b16 %v398
    %v1866 = vunpack.c.h.b16 %v398
    %v1867 = vunpack.c.l.b16 %v399
    %v1868 = vunpack.c.h.b16 %v399
    %v1869 = vunpack.c.l.b16 %v400
    %v1870 = vunpack.c.h.b16 %v400
    %v1871 = vunpack.c.l.b16 %v401
    %v1872 = vunpack.c.h.b16 %v401
    %v1873 = vunpack.c.l.b16 %v402
    %v1874 = vunpack.c.h.b16 %v402
    %v1875 = vunpack.c.l.b16 %v403
    %v1876 = vunpack.c.h.b16 %v403
    %v1877 = vunpack.c.l.b16 %v404
    %v1878 = vunpack.c.h.b16 %v404
    %v1879 = vunpack.c.l.b16 %v405
    %v1880 = vunpack.c.h.b16 %v405
    %v1881 = vunpack.c.l.b16 %v406
    %v1882 = vunpack.c.h.b16 %v406
    %v1883 = vunpack.c.l.b16 %v407
    %v1884 = vunpack.c.h.b16 %v407
    %v1885 = vunpack.c.l.b16 %v408
    %v1886 = vunpack.c.h.b16 %v408
    %v1887 = vunpack.c.l.b16 %v409
    %v1888 = vunpack.c.h.b16 %v409
    %v1889 = vunpack.c.l.b16 %v410
    %v1890 = vunpack.c.h.b16 %v410
    %v1891 = vunpack.c.l.b16 %v411
    %v1892 = vunpack.c.h.b16 %v411
    %v1893 = vunpack.c.l.b16 %v412
    %v1894 = vunpack.c.h.b16 %v412
    %v1895 = vunpack.c.l.b16 %v413
    %v1896 = vunpack.c.h.b16 %v413
    %v1897 = vunpack.c.l.b16 %v414
    %v1898 = vunpack.c.h.b16 %v414
    %v1899 = vunpack.c.l.b16 %v415
    %v1900 = vunpack.c.h.b16 %v415
    %v1901 = vunpack.c.l.b16 %v416
    %v1902 = vunpack.c.h.b16 %v416
    %v1903 = vunpack.c.l.b16 %v417
    %v1904 = vunpack.c.h.b16 %v417
    %v1905 = vunpack.c.l.b16 %v418
    %v1906 = vunpack.c.h.b16 %v418
    %v1907 = vunpack.c.l.b16 %v419
    %v1908 = vunpack.c.h.b16 %v419
    %v1909 = vunpack.c.l.b16 %v420
    %v1910 = vunpack.c.h.b16 %v420
    %v1911 = vunpack.c.l.b16 %v421
    %v1912 = vunpack.c.h.b16 %v421
    %v1913 = vunpack.c.l.b16 %v422
    %v1914 = vunpack.c.h.b16 %v422
    %v1915 = vunpack.c.l.b16 %v423
    %v1916 = vunpack.c.h.b16 %v423
    %v1917 = vunpack.c.l.b16 %v424
    %v1918 = vunpack.c.h.b16 %v424
    %v1919 = vunpack.c.l.b16 %v425
    %v1920 = vunpack.c.h.b16 %v425
    %v1921 = vunpack.c.l.b16 %v426
    %v1922 = vunpack.c.h.b16 %v426
    %v1923 = vunpack.c.l.b16 %v427
    %v1924 = vunpack.c.h.b16 %v427
    %v1925 = vunpack.c.l.b16 %v428
    %v1926 = vunpack.c.h.b16 %v428
    %v1927 = vunpack.c.l.b16 %v429
    %v1928 = vunpack.c.h.b16 %v429
    %v1929 = vunpack.c.l.b16 %v430
    %v1930 = vunpack.c.h.b16 %v430
    %v1931 = vunpack.c.l.b16 %v431
    %v1932 = vunpack.c.h.b16 %v431
    %v1933 = vunpack.c.l.b16 %v432
    %v1934 = vunpack.c.h.b16 %v432
    %v1935 = vunpack.c.l.b16 %v433
    %v1936 = vunpack.c.h.b16 %v433
    %v1937 = vunpack.c.l.b16 %v434
    %v1938 = vunpack.c.h.b16 %v434
    %v1939 = vunpack.c.l.b16 %v435
    %v1940 = vunpack.c.h.b16 %v435
    %v1941 = vunpack.c.l.b16 %v436
    %v1942 = vunpack.c.h.b16 %v436
    %v1943 = vunpack.c.l.b16 %v437
    %v1944 = vunpack.c.h.b16 %v437
    %v1945 = vunpack.c.l.b16 %v438
    %v1946 = vunpack.c.h.b16 %v438
    %v1947 = vunpack.c.l.b16 %v439
    %v1948 = vunpack.c.h.b16 %v439
    %v1949 = vunpack.c.l.b16 %v440
    %v1950 = vunpack.c.h.b16 %v440
    %v1951 = vunpack.c.l.b16 %v441
    %v1952 = vunpack.c.h.b16 %v441
    %v1953 = vunpack.c.l.b16 %v442
    %v1954 = vunpack.c.h.b16 %v442
    %v1955 = vunpack.c.l.b16 %v443
    %v1956 = vunpack.c.h.b16 %v443
    %v1957 = vunpack.c.l.b16 %v444
    %v1958 = vunpack.c.h.b16 %v444
    %v1959 = vunpack.c.l.b16 %v445
    %v1960 = vunpack.c.h.b16 %v445
    %v1961 = vunpack.c.l.b16 %v446
    %v1962 = vunpack.c.h.b16 %v446
    %v1963 = vunpack.c.l.b16 %v447
    %v1964 = vunpack.c.h.b16 %v447
    %v1965 = vunpack.c.l.b16 %v448
    %v1966 = vunpack.c.h.b16 %v448
    %v1967 = vunpack.c.l.b16 %v449
    %v1968 = vunpack.c.h.b16 %v449
    %v1969 = vunpack.c.l.b16 %v450
    %v1970 = vunpack.c.h.b16 %v450
    %v1971 = vunpack.c.l.b16 %v451
    %v1972 = vunpack.c.h.b16 %v451
    %v1973 = vunpack.c.l.b16 %v452
    %v1974 = vunpack.c.h.b16 %v452
    %v1975 = vunpack.c.l.b16 %v453
    %v1976 = vunpack.c.h.b16 %v453
    %v1977 = vunpack.c.l.b16 %v454
    %v1978 = vunpack.c.h.b16 %v454
    %v1979 = vunpack.c.l.b16 %v455
    %v1980 = vunpack.c.h.b16 %v455
    %v1981 = vunpack.c.l.b16 %v456
    %v1982 = vunpack.c.h.b16 %v456
    %v1983 = vunpack.c.l.b16 %v457
    %v1984 = vunpack.c.h.b16 %v457
    %v1985 = vunpack.c.l.b16 %v458
    %v1986 = vunpack.c.h.b16 %v458
    %v1987 = vunpack.c.l.b16 %v459
    %v1988 = vunpack.c.h.b16 %v459
    %v1989 = vunpack.c.l.b16 %v460
    %v1990 = vunpack.c.h.b16 %v460
    %v1991 = vunpack.c.l.b16 %v461
    %v1992 = vunpack.c.h.b16 %v461
    %v1993 = vunpack.c.l.b16 %v462
    %v1994 = vunpack.c.h.b16 %v462
    %v1995 = vunpack.c.l.b16 %v463
    %v1996 = vunpack.c.h.b16 %v463
    %v1997 = vunpack.c.l.b16 %v464
    %v1998 = vunpack.c.h.b16 %v464
    %v1999 = vunpack.c.l.b16 %v465
    %v2000 = vunpack.c.h.b16 %v465
    %v2001 = vunpack.c.l.b16 %v466
    %v2002 = vunpack.c.h.b16 %v466
    %v2003 = vunpack.c.l.b16 %v467
    %v2004 = vunpack.c.h.b16 %v467
    %v2005 = vunpack.c.l.b16 %v468
    %v2006 = vunpack.c.h.b16 %v468
    %v2007 = vunpack.c.l.b16 %v469
    %v2008 = vunpack.c.h.b16 %v469
    %v2009 = vunpack.c.l.b16 %v470
    %v2010 = vunpack.c.h.b16 %v470
    %v2011 = vunpack.c.l.b16 %v471
    %v2012 = vunpack.c.h.b16 %v471
    %v2013 = vunpack.c.l.b16 %v472
    %v2014 = vunpack.c.h.b16 %v472
    %v2015 = vunpack.c.l.b16 %v473
    %v2016 = vunpack.c.h.b16 %v473
    %v2017 = vunpack.c.l.b16 %v474
    %v2018 = vunpack.c.h.b16 %v474
    %v2019 = vunpack.c.l.b16 %v475
    %v2020 = vunpack.c.h.b16 %v475
    %v2021 = vunpack.c.l.b16 %v476
    %v2022 = vunpack.c.h.b16 %v476
    %v2023 = vunpack.c.l.b16 %v477
    %v2024 = vunpack.c.h.b16 %v477
    %v2025 = vunpack.c.l.b16 %v478
    %v2026 = vunpack.c.h.b16 %v478
    %v2027 = vunpack.c.l.b16 %v479
    %v2028 = vunpack.c.h.b16 %v479
    %v2029 = vunpack.c.l.b16 %v480
    %v2030 = vunpack.c.h.b16 %v480
    %v2031 = vunpack.c.l.b16 %v481
    %v2032 = vunpack.c.h.b16 %v481
    %v2033 = vunpack.c.l.b16 %v482
    %v2034 = vunpack.c.h.b16 %v482
    %v2035 = vunpack.c.l.b16 %v483
    %v2036 = vunpack.c.h.b16 %v483
    %v2037 = vunpack.c.l.b16 %v484
    %v2038 = vunpack.c.h.b16 %v484
    %v2039 = vunpack.c.l.b16 %v485
    %v2040 = vunpack.c.h.b16 %v485
    %v2041 = vunpack.c.l.b16 %v486
    %v2042 = vunpack.c.h.b16 %v486
    %v2043 = vunpack.c.l.b16 %v487
    %v2044 = vunpack.c.h.b16 %v487
    %v2045 = vunpack.c.l.b16 %v488
    %v2046 = vunpack.c.h.b16 %v488
    %v2047 = vunpack.c.l.b16 %v489
    %v2048 = vunpack.c.h.b16 %v489
    %v2049 = vunpack.c.l.b16 %v490
    %v2050 = vunpack.c.h.b16 %v490
    %v2051 = vunpack.c.l.b16 %v491
    %v2052 = vunpack.c.h.b16 %v491
    %v2053 = vunpack.c.l.b16 %v492
    %v2054 = vunpack.c.h.b16 %v492
    %v2055 = vunpack.c.l.b16 %v493
    %v2056 = vunpack.c.h.b16 %v493
    %v2057 = vunpack.c.l.b16 %v494
    %v2058 = vunpack.c.h.b16 %v494
    %v2059 = vunpack.c.l.b16 %v495
    %v2060 = vunpack.c.h.b16 %v495
    %v2061 = vunpack.c.l.b16 %v496
    %v2062 = vunpack.c.h.b16 %v496
    %v2063 = vunpack.c.l.b16 %v497
    %v2064 = vunpack.c.h.b16 %v497
    %v2065 = vunpack.c.l.b16 %v498
    %v2066 = vunpack.c.h.b16 %v498
    %v2067 = vunpack.c.l.b16 %v499
    %v2068 = vunpack.c.h.b16 %v499
    %v2069 = vunpack.c.l.b16 %v500
    %v2070 = vunpack.c.h.b16 %v500
    %v2071 = vunpack.c.l.b16 %v501
    %v2072 = vunpack.c.h.b16 %v501
    %v2073 = vunpack.c.l.b16 %v502
    %v2074 = vunpack.c.h.b16 %v502
    %v2075 = vunpack.c.l.b16 %v503
    %v2076 = vunpack.c.h.b16 %v503
    %v2077 = vunpack.c.l.b16 %v504
    %v2078 = vunpack.c.h.b16 %v504
    %v2079 = vunpack.c.l.b16 %v505
    %v2080 = vunpack.c.h.b16 %v505
    %v2081 = vunpack.c.l.b16 %v506
    %v2082 = vunpack.c.h.b16 %v506
    %v2083 = vunpack.c.l.b16 %v507
    %v2084 = vunpack.c.h.b16 %v507
    %v2085 = vunpack.c.l.b16 %v508
    %v2086 = vunpack.c.h.b16 %v508
    %v2087 = vunpack.c.l.b16 %v509
    %v2088 = vunpack.c.h.b16 %v509
    %v2089 = vunpack.c.l.b16 %v510
    %v2090 = vunpack.c.h.b16 %v510
    %v2091 = vunpack.c.l.b16 %v511
    %v2092 = vunpack.c.h.b16 %v511
    %v2093 = vunpack.c.l.b16 %v512
    %v2094 = vunpack.c.h.b16 %v512
    %v2095 = vunpack.c.l.b16 %v513
    %v2096 = vunpack.c.h.b16 %v513
    %v2097 = vunpack.c.l.b16 %v514
    %v2098 = vunpack.c.h.b16 %v514
    %v2099 = vunpack.c.l.b16 %v515
    %v2100 = vunpack.c.h.b16 %v515
    %v2101 = vunpack.c.l.b16 %v516
    %v2102 = vunpack.c.h.b16 %v516
    %v2103 = vunpack.c.l.b16 %v517
    %v2104 = vunpack.c.h.b16 %v517
    %v2105 = vunpack.c.l.b16 %v518
    %v2106 = vunpack.c.h.b16 %v518
    %v2107 = vunpack.c.l.b16 %v519
    %v2108 = vunpack.c.h.b16 %v519
    %v2109 = vunpack.c.l.b16 %v520
    %v2110 = vunpack.c.h.b16 %v520
    %v2111 = vunpack.c.l.b16 %v521
    %v2112 = vunpack.c.h.b16 %v521
    %v2113 = vunpack.c.l.b16 %v522
    %v2114 = vunpack.c.h.b16 %v522
    %v2115 = vunpack.c.l.b16 %v523
    %v2116 = vunpack.c.h.b16 %v523
    %v2117 = vunpack.c.l.b16 %v524
    %v2118 = vunpack.c.h.b16 %v524
    %v2119 = vunpack.c.l.b16 %v525
    %v2120 = vunpack.c.h.b16 %v525
    %v2121 = vunpack.c.l.b16 %v526
    %v2122 = vunpack.c.h.b16 %v526
    %v2123 = vunpack.c.l.b16 %v527
    %v2124 = vunpack.c.h.b16 %v527
    %v2125 = vunpack.c.l.b16 %v528
    %v2126 = vunpack.c.h.b16 %v528
    %v2127 = vunpack.c.l.b16 %v529
    %v2128 = vunpack.c.h.b16 %v529
    %v2129 = vunpack.c.l.b16 %v530
    %v2130 = vunpack.c.h.b16 %v530
    %v2131 = vunpack.c.l.b16 %v531
    %v2132 = vunpack.c.h.b16 %v531
    %v2133 = vunpack.c.l.b16 %v532
    %v2134 = vunpack.c.h.b16 %v532
    %v2135 = vunpack.c.l.b16 %v533
    %v2136 = vunpack.c.h.b16 %v533
    %v2137 = vunpack.c.l.b16 %v534
    %v2138 = vunpack.c.h.b16 %v534
    %v2139 = vunpack.c.l.b16 %v535
    %v2140 = vunpack.c.h.b16 %v535
    %v2141 = vunpack.c.l.b16 %v536
    %v2142 = vunpack.c.h.b16 %v536
    %v2143 = vunpack.c.l.b16 %v537
    %v2144 = vunpack.c.h.b16 %v537
    %v2145 = vunpack.c.l.b16 %v538
    %v2146 = vunpack.c.h.b16 %v538
    %v2147 = vunpack.c.l.b16 %v539
    %v2148 = vunpack.c.h.b16 %v539
    %v2149 = vunpack.c.l.b16 %v540
    %v2150 = vunpack.c.h.b16 %v540
    %v2151 = vunpack.c.l.b16 %v541
    %v2152 = vunpack.c.h.b16 %v541
    %v2153 = vunpack.c.l.b16 %v542
    %v2154 = vunpack.c.h.b16 %v542
    %v2155 = vunpack.c.l.b16 %v543
    %v2156 = vunpack.c.h.b16 %v543
    %v2157 = vunpack.c.l.b16 %v544
    %v2158 = vunpack.c.h.b16 %v544
    %v2159 = vunpack.c.l.b16 %v545
    %v2160 = vunpack.c.h.b16 %v545
    %v2161 = vunpack.c.l.b16 %v546
    %v2162 = vunpack.c.h.b16 %v546
    %v2163 = vunpack.c.l.b16 %v547
    %v2164 = vunpack.c.h.b16 %v547
    %v2165 = vunpack.c.l.b16 %v548
    %v2166 = vunpack.c.h.b16 %v548
    %v2167 = vunpack.c.l.b16 %v549
    %v2168 = vunpack.c.h.b16 %v549
    %v2169 = vunpack.c.l.b16 %v550
    %v2170 = vunpack.c.h.b16 %v550
    %v2171 = vunpack.c.l.b16 %v551
    %v2172 = vunpack.c.h.b16 %v551
    %v2173 = vunpack.c.l.b16 %v552
    %v2174 = vunpack.c.h.b16 %v552
    %v2175 = vunpack.c.l.b16 %v553
    %v2176 = vunpack.c.h.b16 %v553
    %v2177 = vunpack.c.l.b16 %v554
    %v2178 = vunpack.c.h.b16 %v554
    %v2179 = vunpack.c.l.b16 %v555
    %v2180 = vunpack.c.h.b16 %v555
    %v2181 = vunpack.c.l.b16 %v556
    %v2182 = vunpack.c.h.b16 %v556
    %v2183 = vunpack.c.l.b16 %v557
    %v2184 = vunpack.c.h.b16 %v557
    %v2185 = vunpack.c.l.b16 %v558
    %v2186 = vunpack.c.h.b16 %v558
    %v2187 = vunpack.c.l.b16 %v559
    %v2188 = vunpack.c.h.b16 %v559
    %v2189 = vunpack.c.l.b16 %v560
    %v2190 = vunpack.c.h.b16 %v560
    %v2191 = vunpack.c.l.b16 %v561
    %v2192 = vunpack.c.h.b16 %v561
    %v2193 = vunpack.c.l.b16 %v562
    %v2194 = vunpack.c.h.b16 %v562
    %v2195 = vunpack.c.l.b16 %v563
    %v2196 = vunpack.c.h.b16 %v563
    %v2197 = vunpack.c.l.b16 %v564
    %v2198 = vunpack.c.h.b16 %v564
    %v2199 = vunpack.c.l.b16 %v565
    %v2200 = vunpack.c.h.b16 %v565
    %v2201 = vunpack.c.l.b16 %v566
    %v2202 = vunpack.c.h.b16 %v566
    %v2203 = vunpack.c.l.b16 %v567
    %v2204 = vunpack.c.h.b16 %v567
    %v2205 = vunpack.c.l.b16 %v568
    %v2206 = vunpack.c.h.b16 %v568
    %v2207 = vunpack.c.l.b16 %v569
    %v2208 = vunpack.c.h.b16 %v569
    %v2209 = vunpack.c.l.b16 %v570
    %v2210 = vunpack.c.h.b16 %v570
    %v2211 = vunpack.c.l.b16 %v571
    %v2212 = vunpack.c.h.b16 %v571
    %v2213 = vunpack.c.l.b16 %v572
    %v2214 = vunpack.c.h.b16 %v572
    %v2215 = vunpack.c.l.b16 %v573
    %v2216 = vunpack.c.h.b16 %v573
    %v2217 = vunpack.c.l.b16 %v574
    %v2218 = vunpack.c.h.b16 %v574
    %v2219 = vunpack.c.l.b16 %v575
    %v2220 = vunpack.c.h.b16 %v575
    %v2221 = vunpack.c.l.b16 %v576
    %v2222 = vunpack.c.h.b16 %v576
    %v2223 = vunpack.c.l.b16 %v577
    %v2224 = vunpack.c.h.b16 %v577
    %v2225 = vunpack.c.l.b16 %v578
    %v2226 = vunpack.c.h.b16 %v578
    %v2227 = vunpack.c.l.b16 %v579
    %v2228 = vunpack.c.h.b16 %v579
    %v2229 = vunpack.c.l.b16 %v580
    %v2230 = vunpack.c.h.b16 %v580
    %v2231 = vunpack.c.l.b16 %v581
    %v2232 = vunpack.c.h.b16 %v581
    %v2233 = vunpack.c.l.b16 %v582
    %v2234 = vunpack.c.h.b16 %v582
    %v2235 = vunpack.c.l.b16 %v583
    %v2236 = vunpack.c.h.b16 %v583
    %v2237 = vunpack.c.l.b16 %v584
    %v2238 = vunpack.c.h.b16 %v584
    %v2239 = vunpack.c.l.b16 %v585
    %v2240 = vunpack.c.h.b16 %v585
    %v2241 = vunpack.c.l.b16 %v586
    %v2242 = vunpack.c.h.b16 %v586
    %v2243 = vunpack.c.l.b16 %v587
    %v2244 = vunpack.c.h.b16 %v587
    %v2245 = vunpack.c.l.b16 %v588
    %v2246 = vunpack.c.h.b16 %v588
    %v2247 = vunpack.c.l.b16 %v589
    %v2248 = vunpack.c.h.b16 %v589
    %v2249 = vunpack.c.l.b16 %v590
    %v2250 = vunpack.c.h.b16 %v590
    %v2251 = vunpack.c.l.b16 %v591
    %v2252 = vunpack.c.h.b16 %v591
    %v2253 = vunpack.c.l.b16 %v592
    %v2254 = vunpack.c.h.b16 %v592
    %v2255 = vunpack.c.l.b16 %v593
    %v2256 = vunpack.c.h.b16 %v593
    %v2257 = vunpack.c.l.b16 %v594
    %v2258 = vunpack.c.h.b16 %v594
    %v2259 = vunpack.c.l.b16 %v595
    %v2260 = vunpack.c.h.b16 %v595
    %v2261 = vunpack.c.l.b16 %v596
    %v2262 = vunpack.c.h.b16 %v596
    %v2263 = vunpack.c.l.b16 %v597
    %v2264 = vunpack.c.h.b16 %v597
    %v2265 = vunpack.c.l.b16 %v598
    %v2266 = vunpack.c.h.b16 %v598
    %v2267 = vunpack.c.l.b16 %v599
    %v2268 = vunpack.c.h.b16 %v599
    %v2269 = vunpack.c.l.b16 %v600
    %v2270 = vunpack.c.h.b16 %v600
    %v2271 = vunpack.c.l.b16 %v601
    %v2272 = vunpack.c.h.b16 %v601
    %v2273 = vunpack.c.l.b16 %v602
    %v2274 = vunpack.c.h.b16 %v602
    %v2275 = vunpack.c.l.b16 %v603
    %v2276 = vunpack.c.h.b16 %v603
    %v2277 = vunpack.c.l.b16 %v604
    %v2278 = vunpack.c.h.b16 %v604
    %v2279 = vunpack.c.l.b16 %v605
    %v2280 = vunpack.c.h.b16 %v605
    %v2281 = vunpack.c.l.b16 %v606
    %v2282 = vunpack.c.h.b16 %v606
    %v2283 = vunpack.c.l.b16 %v607
    %v2284 = vunpack.c.h.b16 %v607
    %v2285 = vunpack.c.l.b16 %v608
    %v2286 = vunpack.c.h.b16 %v608
    %v2287 = vunpack.c.l.b16 %v609
    %v2288 = vunpack.c.h.b16 %v609
    %v2289 = vunpack.c.l.b16 %v610
    %v2290 = vunpack.c.h.b16 %v610
    %v2291 = vunpack.c.l.b16 %v611
    %v2292 = vunpack.c.h.b16 %v611
    %v2293 = vunpack.c.l.b16 %v612
    %v2294 = vunpack.c.h.b16 %v612
    %v2295 = vunpack.c.l.b16 %v613
    %v2296 = vunpack.c.h.b16 %v613
    %v2297 = vunpack.c.l.b16 %v614
    %v2298 = vunpack.c.h.b16 %v614
    %v2299 = vunpack.c.l.b16 %v615
    %v2300 = vunpack.c.h.b16 %v615
    %v2301 = vunpack.c.l.b16 %v616
    %v2302 = vunpack.c.h.b16 %v616
    %v2303 = vunpack.c.l.b16 %v617
    %v2304 = vunpack.c.h.b16 %v617
    %v2305 = vunpack.c.l.b16 %v618
    %v2306 = vunpack.c.h.b16 %v618
    %v2307 = vunpack.c.l.b16 %v619
    %v2308 = vunpack.c.h.b16 %v619
    %v2309 = vunpack.c.l.b16 %v620
    %v2310 = vunpack.c.h.b16 %v620
    %v2311 = vunpack.c.l.b16 %v621
    %v2312 = vunpack.c.h.b16 %v621
    %v2313 = vunpack.c.l.b16 %v622
    %v2314 = vunpack.c.h.b16 %v622
    %v2315 = vunpack.c.l.b16 %v623
    %v2316 = vunpack.c.h.b16 %v623
    %v2317 = vunpack.c.l.b16 %v624
    %v2318 = vunpack.c.h.b16 %v624
    %v2319 = vunpack.c.l.b16 %v625
    %v2320 = vunpack.c.h.b16 %v625
    %v2321 = vunpack.c.l.b16 %v626
    %v2322 = vunpack.c.h.b16 %v626
    %v2323 = vunpack.c.l.b16 %v627
    %v2324 = vunpack.c.h.b16 %v627
    %v2325 = vunpack.c.l.b16 %v628
    %v2326 = vunpack.c.h.b16 %v628
    %v2327 = vunpack.c.l.b16 %v629
    %v2328 = vunpack.c.h.b16 %v629
    %v2329 = vunpack.c.l.b16 %v630
    %v2330 = vunpack.c.h.b16 %v630
    %v2331 = vunpack.c.l.b16 %v631
    %v2332 = vunpack.c.h.b16 %v631
    %v2333 = vunpack.c.l.b16 %v632
    %v2334 = vunpack.c.h.b16 %v632
    %v2335 = vunpack.c.l.b16 %v633
    %v2336 = vunpack.c.h.b16 %v633
    %v2337 = vunpack.c.l.b16 %v634
    %v2338 = vunpack.c.h.b16 %v634
    %v2339 = vunpack.c.l.b16 %v635
    %v2340 = vunpack.c.h.b16 %v635
    %v2341 = vunpack.c.l.b16 %v636
    %v2342 = vunpack.c.h.b16 %v636
    %v2343 = vunpack.c.l.b16 %v637
    %v2344 = vunpack.c.h.b16 %v637
    %v2345 = vunpack.c.l.b16 %v638
    %v2346 = vunpack.c.h.b16 %v638
    %v2347 = vunpack.c.l.b16 %v639
    %v2348 = vunpack.c.h.b16 %v639
    %v2349 = vunpack.c.l.b16 %v640
    %v2350 = vunpack.c.h.b16 %v640
    %v2351 = vunpack.c.l.b16 %v641
    %v2352 = vunpack.c.h.b16 %v641
    %v2353 = vunpack.c.l.b16 %v642
    %v2354 = vunpack.c.h.b16 %v642
    %v2355 = vunpack.c.l.b16 %v643
    %v2356 = vunpack.c.h.b16 %v643
    %v2357 = vunpack.c.l.b16 %v644
    %v2358 = vunpack.c.h.b16 %v644
    %v2359 = vunpack.c.l.b16 %v645
    %v2360 = vunpack.c.h.b16 %v645
    %v2361 = vunpack.c.l.b16 %v646
    %v2362 = vunpack.c.h.b16 %v646
    %v2363 = vunpack.c.l.b16 %v647
    %v2364 = vunpack.c.h.b16 %v647
    %v2365 = vunpack.c.l.b16 %v648
    %v2366 = vunpack.c.h.b16 %v648
    %v2367 = vunpack.c.l.b16 %v649
    %v2368 = vunpack.c.h.b16 %v649
    %v2369 = vunpack.c.l.b16 %v650
    %v2370 = vunpack.c.h.b16 %v650
    %v2371 = vunpack.c.l.b16 %v651
    %v2372 = vunpack.c.h.b16 %v651
    %v2373 = vunpack.c.l.b16 %v652
    %v2374 = vunpack.c.h.b16 %v652
    %v2375 = vunpack.c.l.b16 %v653
    %v2376 = vunpack.c.h.b16 %v653
    %v2377 = vunpack.c.l.b16 %v654
    %v2378 = vunpack.c.h.b16 %v654
    %v2379 = vunpack.c.l.b16 %v655
    %v2380 = vunpack.c.h.b16 %v655
    %v2381 = vunpack.c.l.b16 %v656
    %v2382 = vunpack.c.h.b16 %v656
    %v2383 = vunpack.c.l.b16 %v657
    %v2384 = vunpack.c.h.b16 %v657
    %v2385 = vunpack.c.l.b16 %v658
    %v2386 = vunpack.c.h.b16 %v658
    %v2387 = vunpack.c.l.b16 %v659
    %v2388 = vunpack.c.h.b16 %v659
    %v2389 = vunpack.c.l.b16 %v660
    %v2390 = vunpack.c.h.b16 %v660
    %v2391 = vunpack.c.l.b16 %v661
    %v2392 = vunpack.c.h.b16 %v661
    %v2393 = vunpack.c.l.b16 %v662
    %v2394 = vunpack.c.h.b16 %v662
    %v2395 = vunpack.c.l.b16 %v663
    %v2396 = vunpack.c.h.b16 %v663
    %v2397 = vunpack.c.l.b16 %v664
    %v2398 = vunpack.c.h.b16 %v664
    %v2399 = vunpack.c.l.b16 %v665
    %v2400 = vunpack.c.h.b16 %v665
    %v2401 = vunpack.c.l.b16 %v666
    %v2402 = vunpack.c.h.b16 %v666
    %v2403 = vunpack.c.l.b16 %v667
    %v2404 = vunpack.c.h.b16 %v667
    %v2405 = vunpack.c.l.b16 %v668
    %v2406 = vunpack.c.h.b16 %v668
    %v2407 = vunpack.c.l.b16 %v669
    %v2408 = vunpack.c.h.b16 %v669
    %v2409 = vunpack.c.l.b16 %v670
    %v2410 = vunpack.c.h.b16 %v670
    %v2411 = vunpack.c.l.b16 %v671
    %v2412 = vunpack.c.h.b16 %v671
    %v2413 = vunpack.c.l.b16 %v672
    %v2414 = vunpack.c.h.b16 %v672
    %v2415 = vunpack.c.l.b16 %v673
    %v2416 = vunpack.c.h.b16 %v673
    %v2417 = vunpack.c.l.b16 %v674
    %v2418 = vunpack.c.h.b16 %v674
    %v2419 = vunpack.c.l.b16 %v675
    %v2420 = vunpack.c.h.b16 %v675
    %v2421 = vunpack.c.l.b16 %v676
    %v2422 = vunpack.c.h.b16 %v676
    %v2423 = vunpack.c.l.b16 %v677
    %v2424 = vunpack.c.h.b16 %v677
    %v2425 = vunpack.c.l.b16 %v678
    %v2426 = vunpack.c.h.b16 %v678
    %v2427 = vunpack.c.l.b16 %v679
    %v2428 = vunpack.c.h.b16 %v679
    %v2429 = vunpack.c.l.b16 %v680
    %v2430 = vunpack.c.h.b16 %v680
    %v2431 = vunpack.c.l.b16 %v681
    %v2432 = vunpack.c.h.b16 %v681
    %v2433 = vunpack.c.l.b16 %v682
    %v2434 = vunpack.c.h.b16 %v682
    %v2435 = vunpack.c.l.b16 %v683
    %v2436 = vunpack.c.h.b16 %v683
    %v2437 = vunpack.c.l.b16 %v684
    %v2438 = vunpack.c.h.b16 %v684
    %v2439 = vunpack.c.l.b16 %v685
    %v2440 = vunpack.c.h.b16 %v685
    %v2441 = vunpack.c.l.b16 %v686
    %v2442 = vunpack.c.h.b16 %v686
    %v2443 = vunpack.c.l.b16 %v687
    %v2444 = vunpack.c.h.b16 %v687
    %v2445 = vunpack.c.l.b16 %v688
    %v2446 = vunpack.c.h.b16 %v688
    %v2447 = vunpack.c.l.b16 %v689
    %v2448 = vunpack.c.h.b16 %v689
    %v2449 = vunpack.c.l.b16 %v690
    %v2450 = vunpack.c.h.b16 %v690
    %v2451 = vunpack.c.l.b16 %v691
    %v2452 = vunpack.c.h.b16 %v691
    %v2453 = vunpack.c.l.b16 %v692
    %v2454 = vunpack.c.h.b16 %v692
    %v2455 = vunpack.c.l.b16 %v693
    %v2456 = vunpack.c.h.b16 %v693
    %v2457 = vunpack.c.l.b16 %v694
    %v2458 = vunpack.c.h.b16 %v694
    %v2459 = vunpack.c.l.b16 %v695
    %v2460 = vunpack.c.h.b16 %v695
    %v2461 = vunpack.c.l.b16 %v696
    %v2462 = vunpack.c.h.b16 %v696
    %v2463 = vunpack.c.l.b16 %v697
    %v2464 = vunpack.c.h.b16 %v697
    %v2465 = vunpack.c.l.b16 %v698
    %v2466 = vunpack.c.h.b16 %v698
    %v2467 = vunpack.c.l.b16 %v699
    %v2468 = vunpack.c.h.b16 %v699
    %v2469 = vunpack.c.l.b16 %v700
    %v2470 = vunpack.c.h.b16 %v700
    %v2471 = vunpack.c.l.b16 %v701
    %v2472 = vunpack.c.h.b16 %v701
    %v2473 = vunpack.c.l.b16 %v702
    %v2474 = vunpack.c.h.b16 %v702
    %v2475 = vunpack.c.l.b16 %v703
    %v2476 = vunpack.c.h.b16 %v703
    %v2477 = vunpack.c.l.b16 %v704
    %v2478 = vunpack.c.h.b16 %v704
    %v2479 = vunpack.c.l.b16 %v705
    %v2480 = vunpack.c.h.b16 %v705
    %v2481 = vunpack.c.l.b16 %v706
    %v2482 = vunpack.c.h.b16 %v706
    %v2483 = vunpack.c.l.b16 %v707
    %v2484 = vunpack.c.h.b16 %v707
    %v2485 = vunpack.c.l.b16 %v708
    %v2486 = vunpack.c.h.b16 %v708
    %v2487 = vunpack.c.l.b16 %v709
    %v2488 = vunpack.c.h.b16 %v709
    %v2489 = vunpack.c.l.b16 %v710
    %v2490 = vunpack.c.h.b16 %v710
    %v2491 = vunpack.c.l.b16 %v711
    %v2492 = vunpack.c.h.b16 %v711
    %v2493 = vunpack.c.l.b16 %v712
    %v2494 = vunpack.c.h.b16 %v712
    %v2495 = vunpack.c.l.b16 %v713
    %v2496 = vunpack.c.h.b16 %v713
    %v2497 = vunpack.c.l.b16 %v714
    %v2498 = vunpack.c.h.b16 %v714
    %v2499 = vunpack.c.l.b16 %v715
    %v2500 = vunpack.c.h.b16 %v715
    %v2501 = vunpack.c.l.b16 %v716
    %v2502 = vunpack.c.h.b16 %v716
    %v2503 = vpack.c.b16 %v1331, %v1327
    %v2504 = vpack.c.b16 %v1332, %v1328
    %v2505 = vpack.c.b16 %v1333, %v1329
    %v2506 = vpack.c.b16 %v1334, %v1330
    %v2507 = vpack.c.b16 %v1339, %v1335
    %v2508 = vpack.c.b16 %v1340, %v1336
    %v2509 = vpack.c.b16 %v1341, %v1337
    %v2510 = vpack.c.b16 %v1342, %v1338
    %v2511 = vpack.c.b16 %v1347, %v1343
    %v2512 = vpack.c.b16 %v1348, %v1344
    %v2513 = vpack.c.b16 %v1349, %v1345
    %v2514 = vpack.c.b16 %v1350, %v1346
    %v2515 = vpack.c.b16 %v1355, %v1351
    %v2516 = vpack.c.b16 %v1356, %v1352
    %v2517 = vpack.c.b16 %v1357, %v1353
    %v2518 = vpack.c.b16 %v1358, %v1354
    %v2519 = vpack.c.b16 %v1363, %v1359
    %v2520 = vpack.c.b16 %v1364, %v1360
    %v2521 = vpack.c.b16 %v1365, %v1361
    %v2522 = vpack.c.b16 %v1366, %v1362
    %v2523 = vpack.c.b16 %v1371, %v1367
    %v2524 = vpack.c.b16 %v1372, %v1368
    %v2525 = vpack.c.b16 %v1373, %v1369
    %v2526 = vpack.c.b16 %v1374, %v1370
    %v2527 = vpack.c.b16 %v1379, %v1375
    %v2528 = vpack.c.b16 %v1380, %v1376
    %v2529 = vpack.c.b16 %v1381, %v1377
    %v2530 = vpack.c.b16 %v1382, %v1378
    %v2531 = vpack.c.b16 %v1387, %v1383
    %v2532 = vpack.c.b16 %v1388, %v1384
    %v2533 = vpack.c.b16 %v1389, %v1385
    %v2534 = vpack.c.b16 %v1390, %v1386
    %v2535 = vpack.c.b16 %v1395, %v1391
    %v2536 = vpack.c.b16 %v1396, %v1392
    %v2537 = vpack.c.b16 %v1397, %v1393
    %v2538 = vpack.c.b16 %v1398, %v1394
    %v2539 = vpack.c.b16 %v1403, %v1399
    %v2540 = vpack.c.b16 %v1404, %v1400
    %v2541 = vpack.c.b16 %v1405, %v1401
    %v2542 = vpack.c.b16 %v1406, %v1402
    %v2543 = vpack.c.b16 %v1411, %v1407
    %v2544 = vpack.c.b16 %v1412, %v1408
    %v2545 = vpack.c.b16 %v1413, %v1409
    %v2546 = vpack.c.b16 %v1414, %v1410
    %v2547 = vpack.c.b16 %v1419, %v1415
    %v2548 = vpack.c.b16 %v1420, %v1416
    %v2549 = vpack.c.b16 %v1421, %v1417
    %v2550 = vpack.c.b16 %v1422, %v1418
    %v2551 = vpack.c.b16 %v1427, %v1423
    %v2552 = vpack.c.b16 %v1428, %v1424
    %v2553 = vpack.c.b16 %v1429, %v1425
    %v2554 = vpack.c.b16 %v1430, %v1426
    %v2555 = vpack.c.b16 %v1435, %v1431
    %v2556 = vpack.c.b16 %v1436, %v1432
    %v2557 = vpack.c.b16 %v1437, %v1433
    %v2558 = vpack.c.b16 %v1438, %v1434
    %v2559 = vpack.c.b16 %v1443, %v1439
    %v2560 = vpack.c.b16 %v1444, %v1440
    %v2561 = vpack.c.b16 %v1445, %v1441
    %v2562 = vpack.c.b16 %v1446, %v1442
    %v2563 = vpack.c.b16 %v1451, %v1447
    %v2564 = vpack.c.b16 %v1452, %v1448
    %v2565 = vpack.c.b16 %v1453, %v1449
    %v2566 = vpack.c.b16 %v1454, %v1450
    %v2567 = vpack.c.b16 %v1459, %v1455
    %v2568 = vpack.c.b16 %v1460, %v1456
    %v2569 = vpack.c.b16 %v1461, %v1457
    %v2570 = vpack.c.b16 %v1462, %v1458
    %v2571 = vpack.c.b16 %v1467, %v1463
    %v2572 = vpack.c.b16 %v1468, %v1464
    %v2573 = vpack.c.b16 %v1469, %v1465
    %v2574 = vpack.c.b16 %v1470, %v1466
    %v2575 = vpack.c.b16 %v1475, %v1471
    %v2576 = vpack.c.b16 %v1476, %v1472
    %v2577 = vpack.c.b16 %v1477, %v1473
    %v2578 = vpack.c.b16 %v1478, %v1474
    %v2579 = vpack.c.b16 %v1483, %v1479
    %v2580 = vpack.c.b16 %v1484, %v1480
    %v2581 = vpack.c.b16 %v1485, %v1481
    %v2582 = vpack.c.b16 %v1486, %v1482
    %v2583 = vpack.c.b16 %v1491, %v1487
    %v2584 = vpack.c.b16 %v1492, %v1488
    %v2585 = vpack.c.b16 %v1493, %v1489
    %v2586 = vpack.c.b16 %v1494, %v1490
    %v2587 = vpack.c.b16 %v1499, %v1495
    %v2588 = vpack.c.b16 %v1500, %v1496
    %v2589 = vpack.c.b16 %v1501, %v1497
    %v2590 = vpack.c.b16 %v1502, %v1498
    %v2591 = vpack.c.b16 %v1507, %v1503
    %v2592 = vpack.c.b16 %v1508, %v1504
    %v2593 = vpack.c.b16 %v1509, %v1505
    %v2594 = vpack.c.b16 %v1510, %v1506
    %v2595 = vpack.c.b16 %v1515, %v1511
    %v2596 = vpack.c.b16 %v1516, %v1512
    %v2597 = vpack.c.b16 %v1517, %v1513
    %v2598 = vpack.c.b16 %v1518, %v1514
    %v2599 = vpack.c.b16 %v1523, %v1519
    %v2600 = vpack.c.b16 %v1524, %v1520
    %v2601 = vpack.c.b16 %v1525, %v1521
    %v2602 = vpack.c.b16 %v1526, %v1522
    %v2603 = vpack.c.b16 %v1531, %v1527
    %v2604 = vpack.c.b16 %v1532, %v1528
    %v2605 = vpack.c.b16 %v1533, %v1529
    %v2606 = vpack.c.b16 %v1534, %v1530
    %v2607 = vpack.c.b16 %v1539, %v1535
    %v2608 = vpack.c.b16 %v1540, %v1536
    %v2609 = vpack.c.b16 %v1541, %v1537
    %v2610 = vpack.c.b16 %v1542, %v1538
    %v2611 = vpack.c.b16 %v1547, %v1543
    %v2612 = vpack.c.b16 %v1548, %v1544
    %v2613 = vpack.c.b16 %v1549, %v1545
    %v2614 = vpack.c.b16 %v1550, %v1546
    %v2615 = vpack.c.b16 %v1555, %v1551
    %v2616 = vpack.c.b16 %v1556, %v1552
    %v2617 = vpack.c.b16 %v1557, %v1553
    %v2618 = vpack.c.b16 %v1558, %v1554
    %v2619 = vpack.c.b16 %v1563, %v1559
    %v2620 = vpack.c.b16 %v1564, %v1560
    %v2621 = vpack.c.b16 %v1565, %v1561
    %v2622 = vpack.c.b16 %v1566, %v1562
    %v2623 = vpack.c.b16 %v1571, %v1567
    %v2624 = vpack.c.b16 %v1572, %v1568
    %v2625 = vpack.c.b16 %v1573, %v1569
    %v2626 = vpack.c.b16 %v1574, %v1570
    %v2627 = vpack.c.b16 %v1579, %v1575
    %v2628 = vpack.c.b16 %v1580, %v1576
    %v2629 = vpack.c.b16 %v1581, %v1577
    %v2630 = vpack.c.b16 %v1582, %v1578
    %v2631 = vpack.c.b16 %v1587, %v1583
    %v2632 = vpack.c.b16 %v1588, %v1584
    %v2633 = vpack.c.b16 %v1589, %v1585
    %v2634 = vpack.c.b16 %v1590, %v1586
    %v2635 = vpack.c.b16 %v1595, %v1591
    %v2636 = vpack.c.b16 %v1596, %v1592
    %v2637 = vpack.c.b16 %v1597, %v1593
    %v2638 = vpack.c.b16 %v1598, %v1594
    %v2639 = vpack.c.b16 %v1603, %v1599
    %v2640 = vpack.c.b16 %v1604, %v1600
    %v2641 = vpack.c.b16 %v1605, %v1601
    %v2642 = vpack.c.b16 %v1606, %v1602
    %v2643 = vpack.c.b16 %v1611, %v1607
    %v2644 = vpack.c.b16 %v1612, %v1608
    %v2645 = vpack.c.b16 %v1613, %v1609
    %v2646 = vpack.c.b16 %v1614, %v1610
    %v2647 = vpack.c.b16 %v1619, %v1615
    %v2648 = vpack.c.b16 %v1620, %v1616
    %v2649 = vpack.c.b16 %v1621, %v1617
    %v2650 = vpack.c.b16 %v1622, %v1618
    %v2651 = vpack.c.b16 %v1627, %v1623
    %v2652 = vpack.c.b16 %v1628, %v1624
    %v2653 = vpack.c.b16 %v1629, %v1625
    %v2654 = vpack.c.b16 %v1630, %v1626
    %v2655 = vpack.c.b16 %v1635, %v1631
    %v2656 = vpack.c.b16 %v1636, %v1632
    %v2657 = vpack.c.b16 %v1637, %v1633
    %v2658 = vpack.c.b16 %v1638, %v1634
    %v2659 = vpack.c.b16 %v1643, %v1639
    %v2660 = vpack.c.b16 %v1644, %v1640
    %v2661 = vpack.c.b16 %v1645, %v1641
    %v2662 = vpack.c.b16 %v1646, %v1642
    %v2663 = vpack.c.b16 %v1651, %v1647
    %v2664 = vpack.c.b16 %v1652, %v1648
    %v2665 = vpack.c.b16 %v1653, %v1649
    %v2666 = vpack.c.b16 %v1654, %v1650
    %v2667 = vpack.c.b16 %v1659, %v1655
    %v2668 = vpack.c.b16 %v1660, %v1656
    %v2669 = vpack.c.b16 %v1661, %v1657
    %v2670 = vpack.c.b16 %v1662, %v1658
    %v2671 = vpack.c.b16 %v1667, %v1663
    %v2672 = vpack.c.b16 %v1668, %v1664
    %v2673 = vpack.c.b16 %v1669, %v1665
    %v2674 = vpack.c.b16 %v1670, %v1666
    %v2675 = vpack.c.b16 %v1675, %v1671
    %v2676 = vpack.c.b16 %v1676, %v1672
    %v2677 = vpack.c.b16 %v1677, %v1673
    %v2678 = vpack.c.b16 %v1678, %v1674
    %v2679 = vpack.c.b16 %v1683, %v1679
    %v2680 = vpack.c.b16 %v1684, %v1680
    %v2681 = vpack.c.b16 %v1685, %v1681
    %v2682 = vpack.c.b16 %v1686, %v1682
    %v2683 = vpack.c.b16 %v1691, %v1687
    %v2684 = vpack.c.b16 %v1692, %v1688
    %v2685 = vpack.c.b16 %v1693, %v1689
    %v2686 = vpack.c.b16 %v1694, %v1690
    %v2687 = vpack.c.b16 %v1699, %v1695
    %v2688 = vpack.c.b16 %v1700, %v1696
    %v2689 = vpack.c.b16 %v1701, %v1697
    %v2690 = vpack.c.b16 %v1702, %v1698
    %v2691 = vpack.c.b16 %v1707, %v1703
    %v2692 = vpack.c.b16 %v1708, %v1704
    %v2693 = vpack.c.b16 %v1709, %v1705
    %v2694 = vpack.c.b16 %v1710, %v1706
    %v2695 = vpack.c.b16 %v1715, %v1711
    %v2696 = vpack.c.b16 %v1716, %v1712
    %v2697 = vpack.c.b16 %v1717, %v1713
    %v2698 = vpack.c.b16 %v1718, %v1714
    %v2699 = vpack.c.b16 %v1723, %v1719
    %v2700 = vpack.c.b16 %v1724, %v1720
    %v2701 = vpack.c.b16 %v1725, %v1721
    %v2702 = vpack.c.b16 %v1726, %v1722
    %v2703 = vpack.c.b16 %v1731, %v1727
    %v2704 = vpack.c.b16 %v1732, %v1728
    %v2705 = vpack.c.b16 %v1733, %v1729
    %v2706 = vpack.c.b16 %v1734, %v1730
    %v2707 = vpack.c.b16 %v1739, %v1735
    %v2708 = vpack.c.b16 %v1740, %v1736
    %v2709 = vpack.c.b16 %v1741, %v1737
    %v2710 = vpack.c.b16 %v1742, %v1738
    %v2711 = vpack.c.b16 %v1747, %v1743
    %v2712 = vpack.c.b16 %v1748, %v1744
    %v2713 = vpack.c.b16 %v1749, %v1745
    %v2714 = vpack.c.b16 %v1750, %v1746
    %v2715 = vpack.c.b16 %v1755, %v1751
    %v2716 = vpack.c.b16 %v1756, %v1752
    %v2717 = vpack.c.b16 %v1757, %v1753
    %v2718 = vpack.c.b16 %v1758, %v1754
    %v2719 = vpack.c.b16 %v1763, %v1759
    %v2720 = vpack.c.b16 %v1764, %v1760
    %v2721 = vpack.c.b16 %v1765, %v1761
    %v2722 = vpack.c.b16 %v1766, %v1762
    %v2723 = vpack.c.b16 %v1771, %v1767
    %v2724 = vpack.c.b16 %v1772, %v1768
    %v2725 = vpack.c.b16 %v1773, %v1769
    %v2726 = vpack.c.b16 %v1774, %v1770
    %v2727 = vpack.c.b16 %v1779, %v1775
    %v2728 = vpack.c.b16 %v1780, %v1776
    %v2729 = vpack.c.b16 %v1781, %v1777
    %v2730 = vpack.c.b16 %v1782, %v1778
    %v2731 = vpack.c.b16 %v1787, %v1783
    %v2732 = vpack.c.b16 %v1788, %v1784
    %v2733 = vpack.c.b16 %v1789, %v1785
    %v2734 = vpack.c.b16 %v1790, %v1786
    %v2735 = vpack.c.b16 %v1795, %v1791
    %v2736 = vpack.c.b16 %v1796, %v1792
    %v2737 = vpack.c.b16 %v1797, %v1793
    %v2738 = vpack.c.b16 %v1798, %v1794
    %v2739 = vpack.c.b16 %v1803, %v1799
    %v2740 = vpack.c.b16 %v1804, %v1800
    %v2741 = vpack.c.b16 %v1805, %v1801
    %v2742 = vpack.c.b16 %v1806, %v1802
    %v2743 = vpack.c.b16 %v1811, %v1807
    %v2744 = vpack.c.b16 %v1812, %v1808
    %v2745 = vpack.c.b16 %v1813, %v1809
    %v2746 = vpack.c.b16 %v1814, %v1810
    %v2747 = vpack.c.b16 %v1819, %v1815
    %v2748 = vpack.c.b16 %v1820, %v1816
    %v2749 = vpack.c.b16 %v1821, %v1817
    %v2750 = vpack.c.b16 %v1822, %v1818
    %v2751 = vpack.c.b16 %v1827, %v1823
    %v2752 = vpack.c.b16 %v1828, %v1824
    %v2753 = vpack.c.b16 %v1829, %v1825
    %v2754 = vpack.c.b16 %v1830, %v1826
    %v2755 = vpack.c.b16 %v1835, %v1831
    %v2756 = vpack.c.b16 %v1836, %v1832
    %v2757 = vpack.c.b16 %v1837, %v1833
    %v2758 = vpack.c.b16 %v1838, %v1834
    %v2759 = vpack.c.b16 %v1843, %v1839
    %v2760 = vpack.c.b16 %v1844, %v1840
    %v2761 = vpack.c.b16 %v1845, %v1841
    %v2762 = vpack.c.b16 %v1846, %v1842
    %v2763 = vpack.c.b16 %v1851, %v1847
    %v2764 = vpack.c.b16 %v1852, %v1848
    %v2765 = vpack.c.b16 %v1853, %v1849
    %v2766 = vpack.c.b16 %v1854, %v1850
    %v2767 = vpack.c.b16 %v1859, %v1855
    %v2768 = vpack.c.b16 %v1860, %v1856
    %v2769 = vpack.c.b16 %v1861, %v1857
    %v2770 = vpack.c.b16 %v1862, %v1858
    %v2771 = vpack.c.b16 %v1867, %v1863
    %v2772 = vpack.c.b16 %v1868, %v1864
    %v2773 = vpack.c.b16 %v1869, %v1865
    %v2774 = vpack.c.b16 %v1870, %v1866
    %v2775 = vpack.c.b16 %v1875, %v1871
    %v2776 = vpack.c.b16 %v1876, %v1872
    %v2777 = vpack.c.b16 %v1877, %v1873
    %v2778 = vpack.c.b16 %v1878, %v1874
    %v2779 = vpack.c.b16 %v1883, %v1879
    %v2780 = vpack.c.b16 %v1884, %v1880
    %v2781 = vpack.c.b16 %v1885, %v1881
    %v2782 = vpack.c.b16 %v1886, %v1882
    %v2783 = vpack.c.b16 %v1891, %v1887
    %v2784 = vpack.c.b16 %v1892, %v1888
    %v2785 = vpack.c.b16 %v1893, %v1889
    %v2786 = vpack.c.b16 %v1894, %v1890
    %v2787 = vpack.c.b16 %v1899, %v1895
    %v2788 = vpack.c.b16 %v1900, %v1896
    %v2789 = vpack.c.b16 %v1901, %v1897
    %v2790 = vpack.c.b16 %v1902, %v1898
    %v2791 = vpack.c.b16 %v1907, %v1903
    %v2792 = vpack.c.b16 %v1908, %v1904
    %v2793 = vpack.c.b16 %v1909, %v1905
    %v2794 = vpack.c.b16 %v1910, %v1906
    %v2795 = vpack.c.b16 %v1915, %v1911
    %v2796 = vpack.c.b16 %v1916, %v1912
    %v2797 = vpack.c.b16 %v1917, %v1913
    %v2798 = vpack.c.b16 %v1918, %v1914
    %v2799 = vpack.c.b16 %v1923, %v1919
    %v2800 = vpack.c.b16 %v1924, %v1920
    %v2801 = vpack.c.b16 %v1925, %v1921
    %v2802 = vpack.c.b16 %v1926, %v1922
    %v2803 = vpack.c.b16 %v1931, %v1927
    %v2804 = vpack.c.b16 %v1932, %v1928
    %v2805 = vpack.c.b16 %v1933, %v1929
    %v2806 = vpack.c.b16 %v1934, %v1930
    %v2807 = vpack.c.b16 %v1939, %v1935
    %v2808 = vpack.c.b16 %v1940, %v1936
    %v2809 = vpack.c.b16 %v1941, %v1937
    %v2810 = vpack.c.b16 %v1942, %v1938
    %v2811 = vpack.c.b16 %v1947, %v1943
    %v2812 = vpack.c.b16 %v1948, %v1944
    %v2813 = vpack.c.b16 %v1949, %v1945
    %v2814 = vpack.c.b16 %v1950, %v1946
    %v2815 = vpack.c.b16 %v1955, %v1951
    %v2816 = vpack.c.b16 %v1956, %v1952
    %v2817 = vpack.c.b16 %v1957, %v1953
    %v2818 = vpack.c.b16 %v1958, %v1954
    %v2819 = vpack.c.b16 %v1963, %v1959
    %v2820 = vpack.c.b16 %v1964, %v1960
    %v2821 = vpack.c.b16 %v1965, %v1961
    %v2822 = vpack.c.b16 %v1966, %v1962
    %v2823 = vpack.c.b16 %v1971, %v1967
    %v2824 = vpack.c.b16 %v1972, %v1968
    %v2825 = vpack.c.b16 %v1973, %v1969
    %v2826 = vpack.c.b16 %v1974, %v1970
    %v2827 = vpack.c.b16 %v1979, %v1975
    %v2828 = vpack.c.b16 %v1980, %v1976
    %v2829 = vpack.c.b16 %v1981, %v1977
    %v2830 = vpack.c.b16 %v1982, %v1978
    %v2831 = vpack.c.b16 %v1987, %v1983
    %v2832 = vpack.c.b16 %v1988, %v1984
    %v2833 = vpack.c.b16 %v1989, %v1985
    %v2834 = vpack.c.b16 %v1990, %v1986
    %v2835 = vpack.c.b16 %v1995, %v1991
    %v2836 = vpack.c.b16 %v1996, %v1992
    %v2837 = vpack.c.b16 %v1997, %v1993
    %v2838 = vpack.c.b16 %v1998, %v1994
    %v2839 = vpack.c.b16 %v2003, %v1999
    %v2840 = vpack.c.b16 %v2004, %v2000
    %v2841 = vpack.c.b16 %v2005, %v2001
    %v2842 = vpack.c.b16 %v2006, %v2002
    %v2843 = vpack.c.b16 %v2011, %v2007
    %v2844 = vpack.c.b16 %v2012, %v2008
    %v2845 = vpack.c.b16 %v2013, %v2009
    %v2846 = vpack.c.b16 %v2014, %v2010
    %v2847 = vpack.c.b16 %v2019, %v2015
    %v2848 = vpack.c.b16 %v2020, %v2016
    %v2849 = vpack.c.b16 %v2021, %v2017
    %v2850 = vpack.c.b16 %v2022, %v2018
    %v2851 = vpack.c.b16 %v2027, %v2023
    %v2852 = vpack.c.b16 %v2028, %v2024
    %v2853 = vpack.c.b16 %v2029, %v2025
    %v2854 = vpack.c.b16 %v2030, %v2026
    %v2855 = vpack.c.b16 %v2035, %v2031
    %v2856 = vpack.c.b16 %v2036, %v2032
    %v2857 = vpack.c.b16 %v2037, %v2033
    %v2858 = vpack.c.b16 %v2038, %v2034
    %v2859 = vpack.c.b16 %v2043, %v2039
    %v2860 = vpack.c.b16 %v2044, %v2040
    %v2861 = vpack.c.b16 %v2045, %v2041
    %v2862 = vpack.c.b16 %v2046, %v2042
    %v2863 = vpack.c.b16 %v2051, %v2047
    %v2864 = vpack.c.b16 %v2052, %v2048
    %v2865 = vpack.c.b16 %v2053, %v2049
    %v2866 = vpack.c.b16 %v2054, %v2050
    %v2867 = vpack.c.b16 %v2059, %v2055
    %v2868 = vpack.c.b16 %v2060, %v2056
    %v2869 = vpack.c.b16 %v2061, %v2057
    %v2870 = vpack.c.b16 %v2062, %v2058
    %v2871 = vpack.c.b16 %v2067, %v2063
    %v2872 = vpack.c.b16 %v2068, %v2064
    %v2873 = vpack.c.b16 %v2069, %v2065
    %v2874 = vpack.c.b16 %v2070, %v2066
    %v2875 = vpack.c.b16 %v2075, %v2071
    %v2876 = vpack.c.b16 %v2076, %v2072
    %v2877 = vpack.c.b16 %v2077, %v2073
    %v2878 = vpack.c.b16 %v2078, %v2074
    %v2879 = vpack.c.b16 %v2083, %v2079
    %v2880 = vpack.c.b16 %v2084, %v2080
    %v2881 = vpack.c.b16 %v2085, %v2081
    %v2882 = vpack.c.b16 %v2086, %v2082
    %v2883 = vpack.c.b16 %v2091, %v2087
    %v2884 = vpack.c.b16 %v2092, %v2088
    %v2885 = vpack.c.b16 %v2093, %v2089
    %v2886 = vpack.c.b16 %v2094, %v2090
    %v2887 = vpack.c.b16 %v2099, %v2095
    %v2888 = vpack.c.b16 %v2100, %v2096
    %v2889 = vpack.c.b16 %v2101, %v2097
    %v2890 = vpack.c.b16 %v2102, %v2098
    %v2891 = vpack.c.b16 %v2107, %v2103
    %v2892 = vpack.c.b16 %v2108, %v2104
    %v2893 = vpack.c.b16 %v2109, %v2105
    %v2894 = vpack.c.b16 %v2110, %v2106
    %v2895 = vpack.c.b16 %v2115, %v2111
    %v2896 = vpack.c.b16 %v2116, %v2112
    %v2897 = vpack.c.b16 %v2117, %v2113
    %v2898 = vpack.c.b16 %v2118, %v2114
    %v2899 = vpack.c.b16 %v2123, %v2119
    %v2900 = vpack.c.b16 %v2124, %v2120
    %v2901 = vpack.c.b16 %v2125, %v2121
    %v2902 = vpack.c.b16 %v2126, %v2122
    %v2903 = vpack.c.b16 %v2131, %v2127
    %v2904 = vpack.c.b16 %v2132, %v2128
    %v2905 = vpack.c.b16 %v2133, %v2129
    %v2906 = vpack.c.b16 %v2134, %v2130
    %v2907 = vpack.c.b16 %v2139, %v2135
    %v2908 = vpack.c.b16 %v2140, %v2136
    %v2909 = vpack.c.b16 %v2141, %v2137
    %v2910 = vpack.c.b16 %v2142, %v2138
    %v2911 = vpack.c.b16 %v2147, %v2143
    %v2912 = vpack.c.b16 %v2148, %v2144
    %v2913 = vpack.c.b16 %v2149, %v2145
    %v2914 = vpack.c.b16 %v2150, %v2146
    %v2915 = vpack.c.b16 %v2155, %v2151
    %v2916 = vpack.c.b16 %v2156, %v2152
    %v2917 = vpack.c.b16 %v2157, %v2153
    %v2918 = vpack.c.b16 %v2158, %v2154
    %v2919 = vpack.c.b16 %v2163, %v2159
    %v2920 = vpack.c.b16 %v2164, %v2160
    %v2921 = vpack.c.b16 %v2165, %v2161
    %v2922 = vpack.c.b16 %v2166, %v2162
    %v2923 = vpack.c.b16 %v2171, %v2167
    %v2924 = vpack.c.b16 %v2172, %v2168
    %v2925 = vpack.c.b16 %v2173, %v2169
    %v2926 = vpack.c.b16 %v2174, %v2170
    %v2927 = vpack.c.b16 %v2179, %v2175
    %v2928 = vpack.c.b16 %v2180, %v2176
    %v2929 = vpack.c.b16 %v2181, %v2177
    %v2930 = vpack.c.b16 %v2182, %v2178
    %v2931 = vpack.c.b16 %v2187, %v2183
    %v2932 = vpack.c.b16 %v2188, %v2184
    %v2933 = vpack.c.b16 %v2189, %v2185
    %v2934 = vpack.c.b16 %v2190, %v2186
    %v2935 = vpack.c.b16 %v2195, %v2191
    %v2936 = vpack.c.b16 %v2196, %v2192
    %v2937 = vpack.c.b16 %v2197, %v2193
    %v2938 = vpack.c.b16 %v2198, %v2194
    %v2939 = vpack.c.b16 %v2203, %v2199
    %v2940 = vpack.c.b16 %v2204, %v2200
    %v2941 = vpack.c.b16 %v2205, %v2201
    %v2942 = vpack.c.b16 %v2206, %v2202
    %v2943 = vpack.c.b16 %v2211, %v2207
    %v2944 = vpack.c.b16 %v2212, %v2208
    %v2945 = vpack.c.b16 %v2213, %v2209
    %v2946 = vpack.c.b16 %v2214, %v2210
    %v2947 = vpack.c.b16 %v2219, %v2215
    %v2948 = vpack.c.b16 %v2220, %v2216
    %v2949 = vpack.c.b16 %v2221, %v2217
    %v2950 = vpack.c.b16 %v2222, %v2218
    %v2951 = vpack.c.b16 %v2227, %v2223
    %v2952 = vpack.c.b16 %v2228, %v2224
    %v2953 = vpack.c.b16 %v2229, %v2225
    %v2954 = vpack.c.b16 %v2230, %v2226
    %v2955 = vpack.c.b16 %v2235, %v2231
    %v2956 = vpack.c.b16 %v2236, %v2232
    %v2957 = vpack.c.b16 %v2237, %v2233
    %v2958 = vpack.c.b16 %v2238, %v2234
    %v2959 = vpack.c.b16 %v2243, %v2239
    %v2960 = vpack.c.b16 %v2244, %v2240
    %v2961 = vpack.c.b16 %v2245, %v2241
    %v2962 = vpack.c.b16 %v2246, %v2242
    %v2963 = vpack.c.b16 %v2251, %v2247
    %v2964 = vpack.c.b16 %v2252, %v2248
    %v2965 = vpack.c.b16 %v2253, %v2249
    %v2966 = vpack.c.b16 %v2254, %v2250
    %v2967 = vpack.c.b16 %v2259, %v2255
    %v2968 = vpack.c.b16 %v2260, %v2256
    %v2969 = vpack.c.b16 %v2261, %v2257
    %v2970 = vpack.c.b16 %v2262, %v2258
    %v2971 = vpack.c.b16 %v2267, %v2263
    %v2972 = vpack.c.b16 %v2268, %v2264
    %v2973 = vpack.c.b16 %v2269, %v2265
    %v2974 = vpack.c.b16 %v2270, %v2266
    %v2975 = vpack.c.b16 %v2275, %v2271
    %v2976 = vpack.c.b16 %v2276, %v2272
    %v2977 = vpack.c.b16 %v2277, %v2273
    %v2978 = vpack.c.b16 %v2278, %v2274
    %v2979 = vpack.c.b16 %v2283, %v2279
    %v2980 = vpack.c.b16 %v2284, %v2280
    %v2981 = vpack.c.b16 %v2285, %v2281
    %v2982 = vpack.c.b16 %v2286, %v2282
    %v2983 = vpack.c.b16 %v2291, %v2287
    %v2984 = vpack.c.b16 %v2292, %v2288
    %v2985 = vpack.c.b16 %v2293, %v2289
    %v2986 = vpack.c.b16 %v2294, %v2290
    %v2987 = vpack.c.b16 %v2299, %v2295
    %v2988 = vpack.c.b16 %v2300, %v2296
    %v2989 = vpack.c.b16 %v2301, %v2297
    %v2990 = vpack.c.b16 %v2302, %v2298
    %v2991 = vpack.c.b16 %v2307, %v2303
    %v2992 = vpack.c.b16 %v2308, %v2304
    %v2993 = vpack.c.b16 %v2309, %v2305
    %v2994 = vpack.c.b16 %v2310, %v2306
    %v2995 = vpack.c.b16 %v2315, %v2311
    %v2996 = vpack.c.b16 %v2316, %v2312
    %v2997 = vpack.c.b16 %v2317, %v2313
    %v2998 = vpack.c.b16 %v2318, %v2314
    %v2999 = vpack.c.b16 %v2323, %v2319
    %v3000 = vpack.c.b16 %v2324, %v2320
    %v3001 = vpack.c.b16 %v2325, %v2321
    %v3002 = vpack.c.b16 %v2326, %v2322
    %v3003 = vpack.c.b16 %v2331, %v2327
    %v3004 = vpack.c.b16 %v2332, %v2328
    %v3005 = vpack.c.b16 %v2333, %v2329
    %v3006 = vpack.c.b16 %v2334, %v2330
    %v3007 = vpack.c.b16 %v2339, %v2335
    %v3008 = vpack.c.b16 %v2340, %v2336
    %v3009 = vpack.c.b16 %v2341, %v2337
    %v3010 = vpack.c.b16 %v2342, %v2338
    %v3011 = vpack.c.b16 %v2347, %v2343
    %v3012 = vpack.c.b16 %v2348, %v2344
    %v3013 = vpack.c.b16 %v2349, %v2345
    %v3014 = vpack.c.b16 %v2350, %v2346
    %v3015 = vpack.c.b16 %v2355, %v2351
    %v3016 = vpack.c.b16 %v2356, %v2352
    %v3017 = vpack.c.b16 %v2357, %v2353
    %v3018 = vpack.c.b16 %v2358, %v2354
    %v3019 = vpack.c.b16 %v2363, %v2359
    %v3020 = vpack.c.b16 %v2364, %v2360
    %v3021 = vpack.c.b16 %v2365, %v2361
    %v3022 = vpack.c.b16 %v2366, %v2362
    %v3023 = vpack.c.b16 %v2371, %v2367
    %v3024 = vpack.c.b16 %v2372, %v2368
    %v3025 = vpack.c.b16 %v2373, %v2369
    %v3026 = vpack.c.b16 %v2374, %v2370
    %v3027 = vpack.c.b16 %v2379, %v2375
    %v3028 = vpack.c.b16 %v2380, %v2376
    %v3029 = vpack.c.b16 %v2381, %v2377
    %v3030 = vpack.c.b16 %v2382, %v2378
    %v3031 = vpack.c.b16 %v2387, %v2383
    %v3032 = vpack.c.b16 %v2388, %v2384
    %v3033 = vpack.c.b16 %v2389, %v2385
    %v3034 = vpack.c.b16 %v2390, %v2386
    %v3035 = vpack.c.b16 %v2395, %v2391
    %v3036 = vpack.c.b16 %v2396, %v2392
    %v3037 = vpack.c.b16 %v2397, %v2393
    %v3038 = vpack.c.b16 %v2398, %v2394
    %v3039 = vpack.c.b16 %v2403, %v2399
    %v3040 = vpack.c.b16 %v2404, %v2400
    %v3041 = vpack.c.b16 %v2405, %v2401
    %v3042 = vpack.c.b16 %v2406, %v2402
    %v3043 = vpack.c.b16 %v2411, %v2407
    %v3044 = vpack.c.b16 %v2412, %v2408
    %v3045 = vpack.c.b16 %v2413, %v2409
    %v3046 = vpack.c.b16 %v2414, %v2410
    %v3047 = vpack.c.b16 %v2419, %v2415
    %v3048 = vpack.c.b16 %v2420, %v2416
    %v3049 = vpack.c.b16 %v2421, %v2417
    %v3050 = vpack.c.b16 %v2422, %v2418
    %v3051 = vpack.c.b16 %v2427, %v2423
    %v3052 = vpack.c.b16 %v2428, %v2424
    %v3053 = vpack.c.b16 %v2429, %v2425
    %v3054 = vpack.c.b16 %v2430, %v2426
    %v3055 = vpack.c.b16 %v2435, %v2431
    %v3056 = vpack.c.b16 %v2436, %v2432
    %v3057 = vpack.c.b16 %v2437, %v2433
    %v3058 = vpack.c.b16 %v2438, %v2434
    %v3059 = vpack.c.b16 %v2443, %v2439
    %v3060 = vpack.c.b16 %v2444, %v2440
    %v3061 = vpack.c.b16 %v2445, %v2441
    %v3062 = vpack.c.b16 %v2446, %v2442
    %v3063 = vpack.c.b16 %v2451, %v2447
    %v3064 = vpack.c.b16 %v2452, %v2448
    %v3065 = vpack.c.b16 %v2453, %v2449
    %v3066 = vpack.c.b16 %v2454, %v2450
    %v3067 = vpack.c.b16 %v2459, %v2455
    %v3068 = vpack.c.b16 %v2460, %v2456
    %v3069 = vpack.c.b16 %v2461, %v2457
    %v3070 = vpack.c.b16 %v2462, %v2458
    %v3071 = vpack.c.b16 %v2467, %v2463
    %v3072 = vpack.c.b16 %v2468, %v2464
    %v3073 = vpack.c.b16 %v2469, %v2465
    %v3074 = vpack.c.b16 %v2470, %v2466
    %v3075 = vpack.c.b16 %v2475, %v2471
    %v3076 = vpack.c.b16 %v2476, %v2472
    %v3077 = vpack.c.b16 %v2477, %v2473
    %v3078 = vpack.c.b16 %v2478, %v2474
    %v3079 = vpack.c.b16 %v2483, %v2479
    %v3080 = vpack.c.b16 %v2484, %v2480
    %v3081 = vpack.c.b16 %v2485, %v2481
    %v3082 = vpack.c.b16 %v2486, %v2482
    %v3083 = vpack.c.b16 %v2491, %v2487
    %v3084 = vpack.c.b16 %v2492, %v2488
    %v3085 = vpack.c.b16 %v2493, %v2489
    %v3086 = vpack.c.b16 %v2494, %v2490
    %v3087 = vpack.c.b16 %v2499, %v2495
    %v3088 = vpack.c.b16 %v2500, %v2496
    %v3089 = vpack.c.b16 %v2501, %v2497
    %v3090 = vpack.c.b16 %v2502, %v2498
    %vm3679 = vcmask 392192
    %v3681 = vsel %vm3679, %v128, 0
    %3683 = vmatprep.subr.bf16.mxu0 %v2532
    %3684 = vmatpush1.bf16.msra.mxu0 %v2531
    %3685 = vmatprep.subr.bf16.mxu0 %v2528
    %3686 = vmatpush1.bf16.msra.mxu0 %v2527
    %3687 = vmatprep.subr.bf16.mxu0 %v2524
    %3688 = vmatpush1.bf16.msra.mxu0 %v2523
    %3689 = vmatprep.subr.bf16.mxu0 %v2520
    %3690 = vmatpush1.bf16.msra.mxu0 %v2519
    %3691 = vmatprep.subr.bf16.mxu0 %v2516
    %3692 = vmatpush1.bf16.msra.mxu0 %v2515
    %3693 = vmatprep.subr.bf16.mxu0 %v2512
    %3694 = vmatpush1.bf16.msra.mxu0 %v2511
    %3695 = vmatprep.subr.bf16.mxu0 %v2508
    %3696 = vmatpush1.bf16.msra.mxu0 %v2507
    %3697 = vmatprep.subr.bf16.mxu0 %v2504
    %3698 = vmatpush1.bf16.msra.mxu0 %v2503
    %3699 = vmatprep.subr.bf16.mxu0 %v2564
    %3700 = vmatpush2.bf16.msra.mxu0 %v2563
    %3701 = vmatprep.subr.bf16.mxu0 %v2560
    %3702 = vmatpush2.bf16.msra.mxu0 %v2559
    %3703 = vmatprep.subr.bf16.mxu0 %v2556
    %3704 = vmatpush2.bf16.msra.mxu0 %v2555
    %3705 = vmatprep.subr.bf16.mxu0 %v2552
    %3706 = vmatpush2.bf16.msra.mxu0 %v2551
    %3707 = vmatprep.subr.bf16.mxu0 %v2548
    %3708 = vmatpush2.bf16.msra.mxu0 %v2547
    %3709 = vmatprep.subr.bf16.mxu0 %v2544
    %3710 = vmatpush2.bf16.msra.mxu0 %v2543
    %3711 = vmatprep.subr.bf16.mxu0 %v2540
    %3712 = vmatpush2.bf16.msra.mxu0 %v2539
    %3713 = vmatprep.subr.bf16.mxu0 %v2536
    %3714 = vmatpush2.bf16.msra.mxu0 %v2535
    %3715 = vmatprep.mubr.bf16.mxu0 %v111
    %3716 = vmatmul.mubr.bf16.gmra.mxu0 %v110
    %v3717 = vpop.f32.mrf.mxu0
    %v3718 = vadd.f32 %v722, %v3717
    %v3719 = vpop.f32.mrf.mxu0
    %v3720 = vadd.f32 %v726, %v3719
    %v3721 = vpop.f32.mrf.mxu0
    %v3722 = vpop.f32.mrf.mxu0
    %3723 = vdwg.mxu0
    %3724 = vmatprep.subr.bf16.mxu0 %v2596
    %3725 = vmatpush1.bf16.msra.mxu0 %v2595
    %3726 = vmatprep.subr.bf16.mxu0 %v2592
    %3727 = vmatpush1.bf16.msra.mxu0 %v2591
    %3728 = vmatprep.subr.bf16.mxu0 %v2588
    %3729 = vmatpush1.bf16.msra.mxu0 %v2587
    %3730 = vmatprep.subr.bf16.mxu0 %v2584
    %3731 = vmatpush1.bf16.msra.mxu0 %v2583
    %3732 = vmatprep.subr.bf16.mxu0 %v2580
    %3733 = vmatpush1.bf16.msra.mxu0 %v2579
    %3734 = vmatprep.subr.bf16.mxu0 %v2576
    %3735 = vmatpush1.bf16.msra.mxu0 %v2575
    %3736 = vmatprep.subr.bf16.mxu0 %v2572
    %3737 = vmatpush1.bf16.msra.mxu0 %v2571
    %3738 = vmatprep.subr.bf16.mxu0 %v2568
    %3739 = vmatpush1.bf16.msra.mxu0 %v2567
    %3740 = vmatprep.subr.bf16.mxu0 %v2628
    %3741 = vmatpush2.bf16.msra.mxu0 %v2627
    %3742 = vmatprep.subr.bf16.mxu0 %v2624
    %3743 = vmatpush2.bf16.msra.mxu0 %v2623
    %3744 = vmatprep.subr.bf16.mxu0 %v2620
    %3745 = vmatpush2.bf16.msra.mxu0 %v2619
    %3746 = vmatprep.subr.bf16.mxu0 %v2616
    %3747 = vmatpush2.bf16.msra.mxu0 %v2615
    %3748 = vmatprep.subr.bf16.mxu0 %v2612
    %3749 = vmatpush2.bf16.msra.mxu0 %v2611
    %3750 = vmatprep.subr.bf16.mxu0 %v2608
    %3751 = vmatpush2.bf16.msra.mxu0 %v2607
    %3752 = vmatprep.subr.bf16.mxu0 %v2604
    %3753 = vmatpush2.bf16.msra.mxu0 %v2603
    %3754 = vmatprep.subr.bf16.mxu0 %v2600
    %3755 = vmatpush2.bf16.msra.mxu0 %v2599
    %3756 = vmatprep.mubr.bf16.mxu0 %v113
    %3757 = vmatmul.mubr.bf16.gmra.mxu0 %v112
    %v3758 = vpop.f32.mrf.mxu0
    %v3759 = vadd.f32 %v3718, %v3758
    %v3760 = vpop.f32.mrf.mxu0
    %v3761 = vadd.f32 %v3720, %v3760
    %v3762 = vpop.f32.mrf.mxu0
    %v3763 = vpop.f32.mrf.mxu0
    %3764 = vdwg.mxu0
    %3765 = vmatprep.subr.bf16.mxu0 %v2660
    %3766 = vmatpush1.bf16.msra.mxu0 %v2659
    %3767 = vmatprep.subr.bf16.mxu0 %v2656
    %3768 = vmatpush1.bf16.msra.mxu0 %v2655
    %3769 = vmatprep.subr.bf16.mxu0 %v2652
    %3770 = vmatpush1.bf16.msra.mxu0 %v2651
    %3771 = vmatprep.subr.bf16.mxu0 %v2648
    %3772 = vmatpush1.bf16.msra.mxu0 %v2647
    %3773 = vmatprep.subr.bf16.mxu0 %v2644
    %3774 = vmatpush1.bf16.msra.mxu0 %v2643
    %3775 = vmatprep.subr.bf16.mxu0 %v2640
    %3776 = vmatpush1.bf16.msra.mxu0 %v2639
    %3777 = vmatprep.subr.bf16.mxu0 %v2636
    %3778 = vmatpush1.bf16.msra.mxu0 %v2635
    %3779 = vmatprep.subr.bf16.mxu0 %v2632
    %3780 = vmatpush1.bf16.msra.mxu0 %v2631
    %3781 = vmatprep.subr.bf16.mxu0 %v2692
    %3782 = vmatpush2.bf16.msra.mxu0 %v2691
    %3783 = vmatprep.subr.bf16.mxu0 %v2688
    %3784 = vmatpush2.bf16.msra.mxu0 %v2687
    %3785 = vmatprep.subr.bf16.mxu0 %v2684
    %3786 = vmatpush2.bf16.msra.mxu0 %v2683
    %3787 = vmatprep.subr.bf16.mxu0 %v2680
    %3788 = vmatpush2.bf16.msra.mxu0 %v2679
    %3789 = vmatprep.subr.bf16.mxu0 %v2676
    %3790 = vmatpush2.bf16.msra.mxu0 %v2675
    %3791 = vmatprep.subr.bf16.mxu0 %v2672
    %3792 = vmatpush2.bf16.msra.mxu0 %v2671
    %3793 = vmatprep.subr.bf16.mxu0 %v2668
    %3794 = vmatpush2.bf16.msra.mxu0 %v2667
    %3795 = vmatprep.subr.bf16.mxu0 %v2664
    %3796 = vmatpush2.bf16.msra.mxu0 %v2663
    %3797 = vmatprep.mubr.bf16.mxu0 %v115
    %3798 = vmatmul.mubr.bf16.gmra.mxu0 %v114
    %v3799 = vpop.f32.mrf.mxu0
    %v3800 = vadd.f32 %v3759, %v3799
    %v3801 = vpop.f32.mrf.mxu0
    %v3802 = vadd.f32 %v3761, %v3801
    %v3803 = vpop.f32.mrf.mxu0
    %v3804 = vpop.f32.mrf.mxu0
    %3805 = vdwg.mxu0
    %3806 = vmatprep.subr.bf16.mxu0 %v2724
    %3807 = vmatpush1.bf16.msra.mxu0 %v2723
    %3808 = vmatprep.subr.bf16.mxu0 %v2720
    %3809 = vmatpush1.bf16.msra.mxu0 %v2719
    %3810 = vmatprep.subr.bf16.mxu0 %v2716
    %3811 = vmatpush1.bf16.msra.mxu0 %v2715
    %3812 = vmatprep.subr.bf16.mxu0 %v2712
    %3813 = vmatpush1.bf16.msra.mxu0 %v2711
    %3814 = vmatprep.subr.bf16.mxu0 %v2708
    %3815 = vmatpush1.bf16.msra.mxu0 %v2707
    %3816 = vmatprep.subr.bf16.mxu0 %v2704
    %3817 = vmatpush1.bf16.msra.mxu0 %v2703
    %3818 = vmatprep.subr.bf16.mxu0 %v2700
    %3819 = vmatpush1.bf16.msra.mxu0 %v2699
    %3820 = vmatprep.subr.bf16.mxu0 %v2696
    %3821 = vmatpush1.bf16.msra.mxu0 %v2695
    %3822 = vmatprep.subr.bf16.mxu0 %v2756
    %3823 = vmatpush2.bf16.msra.mxu0 %v2755
    %3824 = vmatprep.subr.bf16.mxu0 %v2752
    %3825 = vmatpush2.bf16.msra.mxu0 %v2751
    %3826 = vmatprep.subr.bf16.mxu0 %v2748
    %3827 = vmatpush2.bf16.msra.mxu0 %v2747
    %3828 = vmatprep.subr.bf16.mxu0 %v2744
    %3829 = vmatpush2.bf16.msra.mxu0 %v2743
    %3830 = vmatprep.subr.bf16.mxu0 %v2740
    %3831 = vmatpush2.bf16.msra.mxu0 %v2739
    %3832 = vmatprep.subr.bf16.mxu0 %v2736
    %3833 = vmatpush2.bf16.msra.mxu0 %v2735
    %3834 = vmatprep.subr.bf16.mxu0 %v2732
    %3835 = vmatpush2.bf16.msra.mxu0 %v2731
    %3836 = vmatprep.subr.bf16.mxu0 %v2728
    %3837 = vmatpush2.bf16.msra.mxu0 %v2727
    %3838 = vmatprep.mubr.bf16.mxu0 %v117
    %3839 = vmatmul.mubr.bf16.gmra.mxu0 %v116
    %v3840 = vpop.f32.mrf.mxu0
    %v3841 = vadd.f32 %v3800, %v3840
    %v3842 = vpop.f32.mrf.mxu0
    %v3843 = vadd.f32 %v3802, %v3842
    %v3844 = vpop.f32.mrf.mxu0
    %v3845 = vpop.f32.mrf.mxu0
    %3846 = vdwg.mxu0
    %3847 = vmatprep.subr.bf16.mxu0 %v2788
    %3848 = vmatpush1.bf16.msra.mxu0 %v2787
    %3849 = vmatprep.subr.bf16.mxu0 %v2784
    %3850 = vmatpush1.bf16.msra.mxu0 %v2783
    %3851 = vmatprep.subr.bf16.mxu0 %v2780
    %3852 = vmatpush1.bf16.msra.mxu0 %v2779
    %3853 = vmatprep.subr.bf16.mxu0 %v2776
    %3854 = vmatpush1.bf16.msra.mxu0 %v2775
    %3855 = vmatprep.subr.bf16.mxu0 %v2772
    %3856 = vmatpush1.bf16.msra.mxu0 %v2771
    %3857 = vmatprep.subr.bf16.mxu0 %v2768
    %3858 = vmatpush1.bf16.msra.mxu0 %v2767
    %3859 = vmatprep.subr.bf16.mxu0 %v2764
    %3860 = vmatpush1.bf16.msra.mxu0 %v2763
    %3861 = vmatprep.subr.bf16.mxu0 %v2760
    %3862 = vmatpush1.bf16.msra.mxu0 %v2759
    %3863 = vmatprep.subr.bf16.mxu0 %v2820
    %3864 = vmatpush2.bf16.msra.mxu0 %v2819
    %3865 = vmatprep.subr.bf16.mxu0 %v2816
    %3866 = vmatpush2.bf16.msra.mxu0 %v2815
    %3867 = vmatprep.subr.bf16.mxu0 %v2812
    %3868 = vmatpush2.bf16.msra.mxu0 %v2811
    %3869 = vmatprep.subr.bf16.mxu0 %v2808
    %3870 = vmatpush2.bf16.msra.mxu0 %v2807
    %3871 = vmatprep.subr.bf16.mxu0 %v2804
    %3872 = vmatpush2.bf16.msra.mxu0 %v2803
    %3873 = vmatprep.subr.bf16.mxu0 %v2800
    %3874 = vmatpush2.bf16.msra.mxu0 %v2799
    %3875 = vmatprep.subr.bf16.mxu0 %v2796
    %3876 = vmatpush2.bf16.msra.mxu0 %v2795
    %3877 = vmatprep.subr.bf16.mxu0 %v2792
    %3878 = vmatpush2.bf16.msra.mxu0 %v2791
    %3879 = vmatprep.mubr.bf16.mxu0 %v119
    %3880 = vmatmul.mubr.bf16.gmra.mxu0 %v118
    %v3881 = vpop.f32.mrf.mxu0
    %v3882 = vadd.f32 %v3841, %v3881
    %v3883 = vpop.f32.mrf.mxu0
    %v3884 = vadd.f32 %v3843, %v3883
    %v3885 = vpop.f32.mrf.mxu0
    %v3886 = vpop.f32.mrf.mxu0
    %3887 = vdwg.mxu0
    %3888 = vmatprep.subr.bf16.mxu0 %v2852
    %3889 = vmatpush1.bf16.msra.mxu0 %v2851
    %3890 = vmatprep.subr.bf16.mxu0 %v2848
    %3891 = vmatpush1.bf16.msra.mxu0 %v2847
    %3892 = vmatprep.subr.bf16.mxu0 %v2844
    %3893 = vmatpush1.bf16.msra.mxu0 %v2843
    %3894 = vmatprep.subr.bf16.mxu0 %v2840
    %3895 = vmatpush1.bf16.msra.mxu0 %v2839
    %3896 = vmatprep.subr.bf16.mxu0 %v2836
    %3897 = vmatpush1.bf16.msra.mxu0 %v2835
    %3898 = vmatprep.subr.bf16.mxu0 %v2832
    %3899 = vmatpush1.bf16.msra.mxu0 %v2831
    %3900 = vmatprep.subr.bf16.mxu0 %v2828
    %3901 = vmatpush1.bf16.msra.mxu0 %v2827
    %3902 = vmatprep.subr.bf16.mxu0 %v2824
    %3903 = vmatpush1.bf16.msra.mxu0 %v2823
    %3904 = vmatprep.subr.bf16.mxu0 %v2884
    %3905 = vmatpush2.bf16.msra.mxu0 %v2883
    %3906 = vmatprep.subr.bf16.mxu0 %v2880
    %3907 = vmatpush2.bf16.msra.mxu0 %v2879
    %3908 = vmatprep.subr.bf16.mxu0 %v2876
    %3909 = vmatpush2.bf16.msra.mxu0 %v2875
    %3910 = vmatprep.subr.bf16.mxu0 %v2872
    %3911 = vmatpush2.bf16.msra.mxu0 %v2871
    %3912 = vmatprep.subr.bf16.mxu0 %v2868
    %3913 = vmatpush2.bf16.msra.mxu0 %v2867
    %3914 = vmatprep.subr.bf16.mxu0 %v2864
    %3915 = vmatpush2.bf16.msra.mxu0 %v2863
    %3916 = vmatprep.subr.bf16.mxu0 %v2860
    %3917 = vmatpush2.bf16.msra.mxu0 %v2859
    %3918 = vmatprep.subr.bf16.mxu0 %v2856
    %3919 = vmatpush2.bf16.msra.mxu0 %v2855
    %3920 = vmatprep.mubr.bf16.mxu0 %v121
    %3921 = vmatmul.mubr.bf16.gmra.mxu0 %v120
    %v3922 = vpop.f32.mrf.mxu0
    %v3923 = vadd.f32 %v3882, %v3922
    %v3924 = vpop.f32.mrf.mxu0
    %v3925 = vadd.f32 %v3884, %v3924
    %v3926 = vpop.f32.mrf.mxu0
    %v3927 = vpop.f32.mrf.mxu0
    %3928 = vdwg.mxu0
    %3929 = vmatprep.subr.bf16.mxu0 %v2916
    %3930 = vmatpush1.bf16.msra.mxu0 %v2915
    %3931 = vmatprep.subr.bf16.mxu0 %v2912
    %3932 = vmatpush1.bf16.msra.mxu0 %v2911
    %3933 = vmatprep.subr.bf16.mxu0 %v2908
    %3934 = vmatpush1.bf16.msra.mxu0 %v2907
    %3935 = vmatprep.subr.bf16.mxu0 %v2904
    %3936 = vmatpush1.bf16.msra.mxu0 %v2903
    %3937 = vmatprep.subr.bf16.mxu0 %v2900
    %3938 = vmatpush1.bf16.msra.mxu0 %v2899
    %3939 = vmatprep.subr.bf16.mxu0 %v2896
    %3940 = vmatpush1.bf16.msra.mxu0 %v2895
    %3941 = vmatprep.subr.bf16.mxu0 %v2892
    %3942 = vmatpush1.bf16.msra.mxu0 %v2891
    %3943 = vmatprep.subr.bf16.mxu0 %v2888
    %3944 = vmatpush1.bf16.msra.mxu0 %v2887
    %3945 = vmatprep.subr.bf16.mxu0 %v2948
    %3946 = vmatpush2.bf16.msra.mxu0 %v2947
    %3947 = vmatprep.subr.bf16.mxu0 %v2944
    %3948 = vmatpush2.bf16.msra.mxu0 %v2943
    %3949 = vmatprep.subr.bf16.mxu0 %v2940
    %3950 = vmatpush2.bf16.msra.mxu0 %v2939
    %3951 = vmatprep.subr.bf16.mxu0 %v2936
    %3952 = vmatpush2.bf16.msra.mxu0 %v2935
    %3953 = vmatprep.subr.bf16.mxu0 %v2932
    %3954 = vmatpush2.bf16.msra.mxu0 %v2931
    %3955 = vmatprep.subr.bf16.mxu0 %v2928
    %3956 = vmatpush2.bf16.msra.mxu0 %v2927
    %3957 = vmatprep.subr.bf16.mxu0 %v2924
    %3958 = vmatpush2.bf16.msra.mxu0 %v2923
    %3959 = vmatprep.subr.bf16.mxu0 %v2920
    %3960 = vmatpush2.bf16.msra.mxu0 %v2919
    %3961 = vmatprep.mubr.bf16.mxu0 %v123
    %3962 = vmatmul.mubr.bf16.gmra.mxu0 %v122
    %v3963 = vpop.f32.mrf.mxu0
    %v3964 = vadd.f32 %v3923, %v3963
    %v3965 = vpop.f32.mrf.mxu0
    %v3966 = vadd.f32 %v3925, %v3965
    %v3967 = vpop.f32.mrf.mxu0
    %v3968 = vpop.f32.mrf.mxu0
    %3969 = vdwg.mxu0
    %3970 = vmatprep.subr.bf16.mxu0 %v2980
    %3971 = vmatpush1.bf16.msra.mxu0 %v2979
    %3972 = vmatprep.subr.bf16.mxu0 %v2976
    %3973 = vmatpush1.bf16.msra.mxu0 %v2975
    %3974 = vmatprep.subr.bf16.mxu0 %v2972
    %3975 = vmatpush1.bf16.msra.mxu0 %v2971
    %3976 = vmatprep.subr.bf16.mxu0 %v2968
    %3977 = vmatpush1.bf16.msra.mxu0 %v2967
    %3978 = vmatprep.subr.bf16.mxu0 %v2964
    %3979 = vmatpush1.bf16.msra.mxu0 %v2963
    %3980 = vmatprep.subr.bf16.mxu0 %v2960
    %3981 = vmatpush1.bf16.msra.mxu0 %v2959
    %3982 = vmatprep.subr.bf16.mxu0 %v2956
    %3983 = vmatpush1.bf16.msra.mxu0 %v2955
    %3984 = vmatprep.subr.bf16.mxu0 %v2952
    %3985 = vmatpush1.bf16.msra.mxu0 %v2951
    %3986 = vmatprep.subr.bf16.mxu0 %v3012
    %3987 = vmatpush2.bf16.msra.mxu0 %v3011
    %3988 = vmatprep.subr.bf16.mxu0 %v3008
    %3989 = vmatpush2.bf16.msra.mxu0 %v3007
    %3990 = vmatprep.subr.bf16.mxu0 %v3004
    %3991 = vmatpush2.bf16.msra.mxu0 %v3003
    %3992 = vmatprep.subr.bf16.mxu0 %v3000
    %3993 = vmatpush2.bf16.msra.mxu0 %v2999
    %3994 = vmatprep.subr.bf16.mxu0 %v2996
    %3995 = vmatpush2.bf16.msra.mxu0 %v2995
    %3996 = vmatprep.subr.bf16.mxu0 %v2992
    %3997 = vmatpush2.bf16.msra.mxu0 %v2991
    %3998 = vmatprep.subr.bf16.mxu0 %v2988
    %3999 = vmatpush2.bf16.msra.mxu0 %v2987
    %4000 = vmatprep.subr.bf16.mxu0 %v2984
    %4001 = vmatpush2.bf16.msra.mxu0 %v2983
    %4002 = vmatprep.mubr.bf16.mxu0 %v125
    %4003 = vmatmul.mubr.bf16.gmra.mxu0 %v124
    %v4004 = vpop.f32.mrf.mxu0
    %v4005 = vadd.f32 %v3964, %v4004
    %v4006 = vpop.f32.mrf.mxu0
    %v4007 = vadd.f32 %v3966, %v4006
    %v4008 = vpop.f32.mrf.mxu0
    %v4009 = vpop.f32.mrf.mxu0
    %4010 = vdwg.mxu0
    %4011 = vmatprep.subr.bf16.mxu0 %v3044
    %4012 = vmatpush1.bf16.msra.mxu0 %v3043
    %4013 = vmatprep.subr.bf16.mxu0 %v3040
    %4014 = vmatpush1.bf16.msra.mxu0 %v3039
    %4015 = vmatprep.subr.bf16.mxu0 %v3036
    %4016 = vmatpush1.bf16.msra.mxu0 %v3035
    %4017 = vmatprep.subr.bf16.mxu0 %v3032
    %4018 = vmatpush1.bf16.msra.mxu0 %v3031
    %4019 = vmatprep.subr.bf16.mxu0 %v3028
    %4020 = vmatpush1.bf16.msra.mxu0 %v3027
    %4021 = vmatprep.subr.bf16.mxu0 %v3024
    %4022 = vmatpush1.bf16.msra.mxu0 %v3023
    %4023 = vmatprep.subr.bf16.mxu0 %v3020
    %4024 = vmatpush1.bf16.msra.mxu0 %v3019
    %4025 = vmatprep.subr.bf16.mxu0 %v3016
    %4026 = vmatpush1.bf16.msra.mxu0 %v3015
    %4027 = vmatprep.subr.bf16.mxu0 %v3076
    %4028 = vmatpush2.bf16.msra.mxu0 %v3075
    %4029 = vmatprep.subr.bf16.mxu0 %v3072
    %4030 = vmatpush2.bf16.msra.mxu0 %v3071
    %4031 = vmatprep.subr.bf16.mxu0 %v3068
    %4032 = vmatpush2.bf16.msra.mxu0 %v3067
    %4033 = vmatprep.subr.bf16.mxu0 %v3064
    %4034 = vmatpush2.bf16.msra.mxu0 %v3063
    %4035 = vmatprep.subr.bf16.mxu0 %v3060
    %4036 = vmatpush2.bf16.msra.mxu0 %v3059
    %4037 = vmatprep.subr.bf16.mxu0 %v3056
    %4038 = vmatpush2.bf16.msra.mxu0 %v3055
    %4039 = vmatprep.subr.bf16.mxu0 %v3052
    %4040 = vmatpush2.bf16.msra.mxu0 %v3051
    %4041 = vmatprep.subr.bf16.mxu0 %v3048
    %4042 = vmatpush2.bf16.msra.mxu0 %v3047
    %4043 = vmatprep.mubr.bf16.mxu0 %v127
    %4044 = vmatmul.mubr.bf16.gmra.mxu0 %v126
    %v4045 = vpop.f32.mrf.mxu0
    %v4046 = vadd.f32 %v4005, %v4045
    %v4047 = vpop.f32.mrf.mxu0
    %v4048 = vadd.f32 %v4007, %v4047
    %v4049 = vpop.f32.mrf.mxu0
    %v4050 = vpop.f32.mrf.mxu0
    %4051 = vdwg.mxu0
    %4052 = vmatprep.subr.bf16.mxu0 0
    %4053 = vmatpush1.bf16.msra.mxu0 0
    %4054 = vmatprep.subr.bf16.mxu0 0
    %4055 = vmatpush1.bf16.msra.mxu0 0
    %4056 = vmatprep.subr.bf16.mxu0 0
    %4057 = vmatpush1.bf16.msra.mxu0 0
    %4058 = vmatprep.subr.bf16.mxu0 0
    %4059 = vmatpush1.bf16.msra.mxu0 0
    %4060 = vmatprep.subr.bf16.mxu0 0
    %4061 = vmatpush1.bf16.msra.mxu0 0
    %4062 = vmatprep.subr.bf16.mxu0 %v3088
    %4063 = vmatpush1.bf16.msra.mxu0 %v3087
    %4064 = vmatprep.subr.bf16.mxu0 %v3084
    %4065 = vmatpush1.bf16.msra.mxu0 %v3083
    %4066 = vmatprep.subr.bf16.mxu0 %v3080
    %4067 = vmatpush1.bf16.msra.mxu0 %v3079
    %4068 = vmatprep.subr.bf16.mxu0 0
    %4069 = vmatpush2.bf16.msra.mxu0 0
    %4070 = vmatprep.subr.bf16.mxu0 0
    %4071 = vmatpush2.bf16.msra.mxu0 0
    %4072 = vmatprep.subr.bf16.mxu0 0
    %4073 = vmatpush2.bf16.msra.mxu0 0
    %4074 = vmatprep.subr.bf16.mxu0 0
    %4075 = vmatpush2.bf16.msra.mxu0 0
    %4076 = vmatprep.subr.bf16.mxu0 0
    %4077 = vmatpush2.bf16.msra.mxu0 0
    %4078 = vmatprep.subr.bf16.mxu0 0
    %4079 = vmatpush2.bf16.msra.mxu0 0
    %4080 = vmatprep.subr.bf16.mxu0 0
    %4081 = vmatpush2.bf16.msra.mxu0 0
    %4082 = vmatprep.subr.bf16.mxu0 0
    %4083 = vmatpush2.bf16.msra.mxu0 0
    %4084 = vmatprep.mubr.bf16.mxu0 0
    %4085 = vmatmul.mubr.bf16.gmra.mxu0 %v3681
    %v4086 = vpop.f32.mrf.mxu0
    %v4087 = vadd.f32 %v4046, %v4086
    %v4088 = vpop.f32.mrf.mxu0
    %v4089 = vadd.f32 %v4048, %v4088
    %v4090 = vpop.f32.mrf.mxu0
    %v4091 = vpop.f32.mrf.mxu0
    %4092 = vdwg.mxu0
    %4093 = vmatprep.subr.bf16.mxu0 %v2534
    %4094 = vmatpush1.bf16.msra.mxu0 %v2533
    %4095 = vmatprep.subr.bf16.mxu0 %v2530
    %4096 = vmatpush1.bf16.msra.mxu0 %v2529
    %4097 = vmatprep.subr.bf16.mxu0 %v2526
    %4098 = vmatpush1.bf16.msra.mxu0 %v2525
    %4099 = vmatprep.subr.bf16.mxu0 %v2522
    %4100 = vmatpush1.bf16.msra.mxu0 %v2521
    %4101 = vmatprep.subr.bf16.mxu0 %v2518
    %4102 = vmatpush1.bf16.msra.mxu0 %v2517
    %4103 = vmatprep.subr.bf16.mxu0 %v2514
    %4104 = vmatpush1.bf16.msra.mxu0 %v2513
    %4105 = vmatprep.subr.bf16.mxu0 %v2510
    %4106 = vmatpush1.bf16.msra.mxu0 %v2509
    %4107 = vmatprep.subr.bf16.mxu0 %v2506
    %4108 = vmatpush1.bf16.msra.mxu0 %v2505
    %4109 = vmatprep.subr.bf16.mxu0 %v2566
    %4110 = vmatpush2.bf16.msra.mxu0 %v2565
    %4111 = vmatprep.subr.bf16.mxu0 %v2562
    %4112 = vmatpush2.bf16.msra.mxu0 %v2561
    %4113 = vmatprep.subr.bf16.mxu0 %v2558
    %4114 = vmatpush2.bf16.msra.mxu0 %v2557
    %4115 = vmatprep.subr.bf16.mxu0 %v2554
    %4116 = vmatpush2.bf16.msra.mxu0 %v2553
    %4117 = vmatprep.subr.bf16.mxu0 %v2550
    %4118 = vmatpush2.bf16.msra.mxu0 %v2549
    %4119 = vmatprep.subr.bf16.mxu0 %v2546
    %4120 = vmatpush2.bf16.msra.mxu0 %v2545
    %4121 = vmatprep.subr.bf16.mxu0 %v2542
    %4122 = vmatpush2.bf16.msra.mxu0 %v2541
    %4123 = vmatprep.subr.bf16.mxu0 %v2538
    %4124 = vmatpush2.bf16.msra.mxu0 %v2537
    %4125 = vmatprep.mubr.bf16.mxu0 %v111
    %4126 = vmatmul.mubr.bf16.gmra.mxu0 %v110
    %v4127 = vpop.f32.mrf.mxu0
    %v4128 = vadd.f32 %v730, %v4127
    %v4129 = vpop.f32.mrf.mxu0
    %v4130 = vadd.f32 %v734, %v4129
    %v4131 = vpop.f32.mrf.mxu0
    %v4132 = vpop.f32.mrf.mxu0
    %4133 = vdwg.mxu0
    %4134 = vmatprep.subr.bf16.mxu0 %v2598
    %4135 = vmatpush1.bf16.msra.mxu0 %v2597
    %4136 = vmatprep.subr.bf16.mxu0 %v2594
    %4137 = vmatpush1.bf16.msra.mxu0 %v2593
    %4138 = vmatprep.subr.bf16.mxu0 %v2590
    %4139 = vmatpush1.bf16.msra.mxu0 %v2589
    %4140 = vmatprep.subr.bf16.mxu0 %v2586
    %4141 = vmatpush1.bf16.msra.mxu0 %v2585
    %4142 = vmatprep.subr.bf16.mxu0 %v2582
    %4143 = vmatpush1.bf16.msra.mxu0 %v2581
    %4144 = vmatprep.subr.bf16.mxu0 %v2578
    %4145 = vmatpush1.bf16.msra.mxu0 %v2577
    %4146 = vmatprep.subr.bf16.mxu0 %v2574
    %4147 = vmatpush1.bf16.msra.mxu0 %v2573
    %4148 = vmatprep.subr.bf16.mxu0 %v2570
    %4149 = vmatpush1.bf16.msra.mxu0 %v2569
    %4150 = vmatprep.subr.bf16.mxu0 %v2630
    %4151 = vmatpush2.bf16.msra.mxu0 %v2629
    %4152 = vmatprep.subr.bf16.mxu0 %v2626
    %4153 = vmatpush2.bf16.msra.mxu0 %v2625
    %4154 = vmatprep.subr.bf16.mxu0 %v2622
    %4155 = vmatpush2.bf16.msra.mxu0 %v2621
    %4156 = vmatprep.subr.bf16.mxu0 %v2618
    %4157 = vmatpush2.bf16.msra.mxu0 %v2617
    %4158 = vmatprep.subr.bf16.mxu0 %v2614
    %4159 = vmatpush2.bf16.msra.mxu0 %v2613
    %4160 = vmatprep.subr.bf16.mxu0 %v2610
    %4161 = vmatpush2.bf16.msra.mxu0 %v2609
    %4162 = vmatprep.subr.bf16.mxu0 %v2606
    %4163 = vmatpush2.bf16.msra.mxu0 %v2605
    %4164 = vmatprep.subr.bf16.mxu0 %v2602
    %4165 = vmatpush2.bf16.msra.mxu0 %v2601
    %4166 = vmatprep.mubr.bf16.mxu0 %v113
    %4167 = vmatmul.mubr.bf16.gmra.mxu0 %v112
    %v4168 = vpop.f32.mrf.mxu0
    %v4169 = vadd.f32 %v4128, %v4168
    %v4170 = vpop.f32.mrf.mxu0
    %v4171 = vadd.f32 %v4130, %v4170
    %v4172 = vpop.f32.mrf.mxu0
    %v4173 = vpop.f32.mrf.mxu0
    %4174 = vdwg.mxu0
    %4175 = vmatprep.subr.bf16.mxu0 %v2662
    %4176 = vmatpush1.bf16.msra.mxu0 %v2661
    %4177 = vmatprep.subr.bf16.mxu0 %v2658
    %4178 = vmatpush1.bf16.msra.mxu0 %v2657
    %4179 = vmatprep.subr.bf16.mxu0 %v2654
    %4180 = vmatpush1.bf16.msra.mxu0 %v2653
    %4181 = vmatprep.subr.bf16.mxu0 %v2650
    %4182 = vmatpush1.bf16.msra.mxu0 %v2649
    %4183 = vmatprep.subr.bf16.mxu0 %v2646
    %4184 = vmatpush1.bf16.msra.mxu0 %v2645
    %4185 = vmatprep.subr.bf16.mxu0 %v2642
    %4186 = vmatpush1.bf16.msra.mxu0 %v2641
    %4187 = vmatprep.subr.bf16.mxu0 %v2638
    %4188 = vmatpush1.bf16.msra.mxu0 %v2637
    %4189 = vmatprep.subr.bf16.mxu0 %v2634
    %4190 = vmatpush1.bf16.msra.mxu0 %v2633
    %4191 = vmatprep.subr.bf16.mxu0 %v2694
    %4192 = vmatpush2.bf16.msra.mxu0 %v2693
    %4193 = vmatprep.subr.bf16.mxu0 %v2690
    %4194 = vmatpush2.bf16.msra.mxu0 %v2689
    %4195 = vmatprep.subr.bf16.mxu0 %v2686
    %4196 = vmatpush2.bf16.msra.mxu0 %v2685
    %4197 = vmatprep.subr.bf16.mxu0 %v2682
    %4198 = vmatpush2.bf16.msra.mxu0 %v2681
    %4199 = vmatprep.subr.bf16.mxu0 %v2678
    %4200 = vmatpush2.bf16.msra.mxu0 %v2677
    %4201 = vmatprep.subr.bf16.mxu0 %v2674
    %4202 = vmatpush2.bf16.msra.mxu0 %v2673
    %4203 = vmatprep.subr.bf16.mxu0 %v2670
    %4204 = vmatpush2.bf16.msra.mxu0 %v2669
    %4205 = vmatprep.subr.bf16.mxu0 %v2666
    %4206 = vmatpush2.bf16.msra.mxu0 %v2665
    %4207 = vmatprep.mubr.bf16.mxu0 %v115
    %4208 = vmatmul.mubr.bf16.gmra.mxu0 %v114
    %v4209 = vpop.f32.mrf.mxu0
    %v4210 = vadd.f32 %v4169, %v4209
    %v4211 = vpop.f32.mrf.mxu0
    %v4212 = vadd.f32 %v4171, %v4211
    %v4213 = vpop.f32.mrf.mxu0
    %v4214 = vpop.f32.mrf.mxu0
    %4215 = vdwg.mxu0
    %4216 = vmatprep.subr.bf16.mxu0 %v2726
    %4217 = vmatpush1.bf16.msra.mxu0 %v2725
    %4218 = vmatprep.subr.bf16.mxu0 %v2722
    %4219 = vmatpush1.bf16.msra.mxu0 %v2721
    %4220 = vmatprep.subr.bf16.mxu0 %v2718
    %4221 = vmatpush1.bf16.msra.mxu0 %v2717
    %4222 = vmatprep.subr.bf16.mxu0 %v2714
    %4223 = vmatpush1.bf16.msra.mxu0 %v2713
    %4224 = vmatprep.subr.bf16.mxu0 %v2710
    %4225 = vmatpush1.bf16.msra.mxu0 %v2709
    %4226 = vmatprep.subr.bf16.mxu0 %v2706
    %4227 = vmatpush1.bf16.msra.mxu0 %v2705
    %4228 = vmatprep.subr.bf16.mxu0 %v2702
    %4229 = vmatpush1.bf16.msra.mxu0 %v2701
    %4230 = vmatprep.subr.bf16.mxu0 %v2698
    %4231 = vmatpush1.bf16.msra.mxu0 %v2697
    %4232 = vmatprep.subr.bf16.mxu0 %v2758
    %4233 = vmatpush2.bf16.msra.mxu0 %v2757
    %4234 = vmatprep.subr.bf16.mxu0 %v2754
    %4235 = vmatpush2.bf16.msra.mxu0 %v2753
    %4236 = vmatprep.subr.bf16.mxu0 %v2750
    %4237 = vmatpush2.bf16.msra.mxu0 %v2749
    %4238 = vmatprep.subr.bf16.mxu0 %v2746
    %4239 = vmatpush2.bf16.msra.mxu0 %v2745
    %4240 = vmatprep.subr.bf16.mxu0 %v2742
    %4241 = vmatpush2.bf16.msra.mxu0 %v2741
    %4242 = vmatprep.subr.bf16.mxu0 %v2738
    %4243 = vmatpush2.bf16.msra.mxu0 %v2737
    %4244 = vmatprep.subr.bf16.mxu0 %v2734
    %4245 = vmatpush2.bf16.msra.mxu0 %v2733
    %4246 = vmatprep.subr.bf16.mxu0 %v2730
    %4247 = vmatpush2.bf16.msra.mxu0 %v2729
    %4248 = vmatprep.mubr.bf16.mxu0 %v117
    %4249 = vmatmul.mubr.bf16.gmra.mxu0 %v116
    %v4250 = vpop.f32.mrf.mxu0
    %v4251 = vadd.f32 %v4210, %v4250
    %v4252 = vpop.f32.mrf.mxu0
    %v4253 = vadd.f32 %v4212, %v4252
    %v4254 = vpop.f32.mrf.mxu0
    %v4255 = vpop.f32.mrf.mxu0
    %4256 = vdwg.mxu0
    %4257 = vmatprep.subr.bf16.mxu0 %v2790
    %4258 = vmatpush1.bf16.msra.mxu0 %v2789
    %4259 = vmatprep.subr.bf16.mxu0 %v2786
    %4260 = vmatpush1.bf16.msra.mxu0 %v2785
    %4261 = vmatprep.subr.bf16.mxu0 %v2782
    %4262 = vmatpush1.bf16.msra.mxu0 %v2781
    %4263 = vmatprep.subr.bf16.mxu0 %v2778
    %4264 = vmatpush1.bf16.msra.mxu0 %v2777
    %4265 = vmatprep.subr.bf16.mxu0 %v2774
    %4266 = vmatpush1.bf16.msra.mxu0 %v2773
    %4267 = vmatprep.subr.bf16.mxu0 %v2770
    %4268 = vmatpush1.bf16.msra.mxu0 %v2769
    %4269 = vmatprep.subr.bf16.mxu0 %v2766
    %4270 = vmatpush1.bf16.msra.mxu0 %v2765
    %4271 = vmatprep.subr.bf16.mxu0 %v2762
    %4272 = vmatpush1.bf16.msra.mxu0 %v2761
    %4273 = vmatprep.subr.bf16.mxu0 %v2822
    %4274 = vmatpush2.bf16.msra.mxu0 %v2821
    %4275 = vmatprep.subr.bf16.mxu0 %v2818
    %4276 = vmatpush2.bf16.msra.mxu0 %v2817
    %4277 = vmatprep.subr.bf16.mxu0 %v2814
    %4278 = vmatpush2.bf16.msra.mxu0 %v2813
    %4279 = vmatprep.subr.bf16.mxu0 %v2810
    %4280 = vmatpush2.bf16.msra.mxu0 %v2809
    %4281 = vmatprep.subr.bf16.mxu0 %v2806
    %4282 = vmatpush2.bf16.msra.mxu0 %v2805
    %4283 = vmatprep.subr.bf16.mxu0 %v2802
    %4284 = vmatpush2.bf16.msra.mxu0 %v2801
    %4285 = vmatprep.subr.bf16.mxu0 %v2798
    %4286 = vmatpush2.bf16.msra.mxu0 %v2797
    %4287 = vmatprep.subr.bf16.mxu0 %v2794
    %4288 = vmatpush2.bf16.msra.mxu0 %v2793
    %4289 = vmatprep.mubr.bf16.mxu0 %v119
    %4290 = vmatmul.mubr.bf16.gmra.mxu0 %v118
    %v4291 = vpop.f32.mrf.mxu0
    %v4292 = vadd.f32 %v4251, %v4291
    %v4293 = vpop.f32.mrf.mxu0
    %v4294 = vadd.f32 %v4253, %v4293
    %v4295 = vpop.f32.mrf.mxu0
    %v4296 = vpop.f32.mrf.mxu0
    %4297 = vdwg.mxu0
    %4298 = vmatprep.subr.bf16.mxu0 %v2854
    %4299 = vmatpush1.bf16.msra.mxu0 %v2853
    %4300 = vmatprep.subr.bf16.mxu0 %v2850
    %4301 = vmatpush1.bf16.msra.mxu0 %v2849
    %4302 = vmatprep.subr.bf16.mxu0 %v2846
    %4303 = vmatpush1.bf16.msra.mxu0 %v2845
    %4304 = vmatprep.subr.bf16.mxu0 %v2842
    %4305 = vmatpush1.bf16.msra.mxu0 %v2841
    %4306 = vmatprep.subr.bf16.mxu0 %v2838
    %4307 = vmatpush1.bf16.msra.mxu0 %v2837
    %4308 = vmatprep.subr.bf16.mxu0 %v2834
    %4309 = vmatpush1.bf16.msra.mxu0 %v2833
    %4310 = vmatprep.subr.bf16.mxu0 %v2830
    %4311 = vmatpush1.bf16.msra.mxu0 %v2829
    %4312 = vmatprep.subr.bf16.mxu0 %v2826
    %4313 = vmatpush1.bf16.msra.mxu0 %v2825
    %4314 = vmatprep.subr.bf16.mxu0 %v2886
    %4315 = vmatpush2.bf16.msra.mxu0 %v2885
    %4316 = vmatprep.subr.bf16.mxu0 %v2882
    %4317 = vmatpush2.bf16.msra.mxu0 %v2881
    %4318 = vmatprep.subr.bf16.mxu0 %v2878
    %4319 = vmatpush2.bf16.msra.mxu0 %v2877
    %4320 = vmatprep.subr.bf16.mxu0 %v2874
    %4321 = vmatpush2.bf16.msra.mxu0 %v2873
    %4322 = vmatprep.subr.bf16.mxu0 %v2870
    %4323 = vmatpush2.bf16.msra.mxu0 %v2869
    %4324 = vmatprep.subr.bf16.mxu0 %v2866
    %4325 = vmatpush2.bf16.msra.mxu0 %v2865
    %4326 = vmatprep.subr.bf16.mxu0 %v2862
    %4327 = vmatpush2.bf16.msra.mxu0 %v2861
    %4328 = vmatprep.subr.bf16.mxu0 %v2858
    %4329 = vmatpush2.bf16.msra.mxu0 %v2857
    %4330 = vmatprep.mubr.bf16.mxu0 %v121
    %4331 = vmatmul.mubr.bf16.gmra.mxu0 %v120
    %v4332 = vpop.f32.mrf.mxu0
    %v4333 = vadd.f32 %v4292, %v4332
    %v4334 = vpop.f32.mrf.mxu0
    %v4335 = vadd.f32 %v4294, %v4334
    %v4336 = vpop.f32.mrf.mxu0
    %v4337 = vpop.f32.mrf.mxu0
    %4338 = vdwg.mxu0
    %4339 = vmatprep.subr.bf16.mxu0 %v2918
    %4340 = vmatpush1.bf16.msra.mxu0 %v2917
    %4341 = vmatprep.subr.bf16.mxu0 %v2914
    %4342 = vmatpush1.bf16.msra.mxu0 %v2913
    %4343 = vmatprep.subr.bf16.mxu0 %v2910
    %4344 = vmatpush1.bf16.msra.mxu0 %v2909
    %4345 = vmatprep.subr.bf16.mxu0 %v2906
    %4346 = vmatpush1.bf16.msra.mxu0 %v2905
    %4347 = vmatprep.subr.bf16.mxu0 %v2902
    %4348 = vmatpush1.bf16.msra.mxu0 %v2901
    %4349 = vmatprep.subr.bf16.mxu0 %v2898
    %4350 = vmatpush1.bf16.msra.mxu0 %v2897
    %4351 = vmatprep.subr.bf16.mxu0 %v2894
    %4352 = vmatpush1.bf16.msra.mxu0 %v2893
    %4353 = vmatprep.subr.bf16.mxu0 %v2890
    %4354 = vmatpush1.bf16.msra.mxu0 %v2889
    %4355 = vmatprep.subr.bf16.mxu0 %v2950
    %4356 = vmatpush2.bf16.msra.mxu0 %v2949
    %4357 = vmatprep.subr.bf16.mxu0 %v2946
    %4358 = vmatpush2.bf16.msra.mxu0 %v2945
    %4359 = vmatprep.subr.bf16.mxu0 %v2942
    %4360 = vmatpush2.bf16.msra.mxu0 %v2941
    %4361 = vmatprep.subr.bf16.mxu0 %v2938
    %4362 = vmatpush2.bf16.msra.mxu0 %v2937
    %4363 = vmatprep.subr.bf16.mxu0 %v2934
    %4364 = vmatpush2.bf16.msra.mxu0 %v2933
    %4365 = vmatprep.subr.bf16.mxu0 %v2930
    %4366 = vmatpush2.bf16.msra.mxu0 %v2929
    %4367 = vmatprep.subr.bf16.mxu0 %v2926
    %4368 = vmatpush2.bf16.msra.mxu0 %v2925
    %4369 = vmatprep.subr.bf16.mxu0 %v2922
    %4370 = vmatpush2.bf16.msra.mxu0 %v2921
    %4371 = vmatprep.mubr.bf16.mxu0 %v123
    %4372 = vmatmul.mubr.bf16.gmra.mxu0 %v122
    %v4373 = vpop.f32.mrf.mxu0
    %v4374 = vadd.f32 %v4333, %v4373
    %v4375 = vpop.f32.mrf.mxu0
    %v4376 = vadd.f32 %v4335, %v4375
    %v4377 = vpop.f32.mrf.mxu0
    %v4378 = vpop.f32.mrf.mxu0
    %4379 = vdwg.mxu0
    %4380 = vmatprep.subr.bf16.mxu0 %v2982
    %4381 = vmatpush1.bf16.msra.mxu0 %v2981
    %4382 = vmatprep.subr.bf16.mxu0 %v2978
    %4383 = vmatpush1.bf16.msra.mxu0 %v2977
    %4384 = vmatprep.subr.bf16.mxu0 %v2974
    %4385 = vmatpush1.bf16.msra.mxu0 %v2973
    %4386 = vmatprep.subr.bf16.mxu0 %v2970
    %4387 = vmatpush1.bf16.msra.mxu0 %v2969
    %4388 = vmatprep.subr.bf16.mxu0 %v2966
    %4389 = vmatpush1.bf16.msra.mxu0 %v2965
    %4390 = vmatprep.subr.bf16.mxu0 %v2962
    %4391 = vmatpush1.bf16.msra.mxu0 %v2961
    %4392 = vmatprep.subr.bf16.mxu0 %v2958
    %4393 = vmatpush1.bf16.msra.mxu0 %v2957
    %4394 = vmatprep.subr.bf16.mxu0 %v2954
    %4395 = vmatpush1.bf16.msra.mxu0 %v2953
    %4396 = vmatprep.subr.bf16.mxu0 %v3014
    %4397 = vmatpush2.bf16.msra.mxu0 %v3013
    %4398 = vmatprep.subr.bf16.mxu0 %v3010
    %4399 = vmatpush2.bf16.msra.mxu0 %v3009
    %4400 = vmatprep.subr.bf16.mxu0 %v3006
    %4401 = vmatpush2.bf16.msra.mxu0 %v3005
    %4402 = vmatprep.subr.bf16.mxu0 %v3002
    %4403 = vmatpush2.bf16.msra.mxu0 %v3001
    %4404 = vmatprep.subr.bf16.mxu0 %v2998
    %4405 = vmatpush2.bf16.msra.mxu0 %v2997
    %4406 = vmatprep.subr.bf16.mxu0 %v2994
    %4407 = vmatpush2.bf16.msra.mxu0 %v2993
    %4408 = vmatprep.subr.bf16.mxu0 %v2990
    %4409 = vmatpush2.bf16.msra.mxu0 %v2989
    %4410 = vmatprep.subr.bf16.mxu0 %v2986
    %4411 = vmatpush2.bf16.msra.mxu0 %v2985
    %4412 = vmatprep.mubr.bf16.mxu0 %v125
    %4413 = vmatmul.mubr.bf16.gmra.mxu0 %v124
    %v4414 = vpop.f32.mrf.mxu0
    %v4415 = vadd.f32 %v4374, %v4414
    %v4416 = vpop.f32.mrf.mxu0
    %v4417 = vadd.f32 %v4376, %v4416
    %v4418 = vpop.f32.mrf.mxu0
    %v4419 = vpop.f32.mrf.mxu0
    %4420 = vdwg.mxu0
    %4421 = vmatprep.subr.bf16.mxu0 %v3046
    %4422 = vmatpush1.bf16.msra.mxu0 %v3045
    %4423 = vmatprep.subr.bf16.mxu0 %v3042
    %4424 = vmatpush1.bf16.msra.mxu0 %v3041
    %4425 = vmatprep.subr.bf16.mxu0 %v3038
    %4426 = vmatpush1.bf16.msra.mxu0 %v3037
    %4427 = vmatprep.subr.bf16.mxu0 %v3034
    %4428 = vmatpush1.bf16.msra.mxu0 %v3033
    %4429 = vmatprep.subr.bf16.mxu0 %v3030
    %4430 = vmatpush1.bf16.msra.mxu0 %v3029
    %4431 = vmatprep.subr.bf16.mxu0 %v3026
    %4432 = vmatpush1.bf16.msra.mxu0 %v3025
    %4433 = vmatprep.subr.bf16.mxu0 %v3022
    %4434 = vmatpush1.bf16.msra.mxu0 %v3021
    %4435 = vmatprep.subr.bf16.mxu0 %v3018
    %4436 = vmatpush1.bf16.msra.mxu0 %v3017
    %4437 = vmatprep.subr.bf16.mxu0 %v3078
    %4438 = vmatpush2.bf16.msra.mxu0 %v3077
    %4439 = vmatprep.subr.bf16.mxu0 %v3074
    %4440 = vmatpush2.bf16.msra.mxu0 %v3073
    %4441 = vmatprep.subr.bf16.mxu0 %v3070
    %4442 = vmatpush2.bf16.msra.mxu0 %v3069
    %4443 = vmatprep.subr.bf16.mxu0 %v3066
    %4444 = vmatpush2.bf16.msra.mxu0 %v3065
    %4445 = vmatprep.subr.bf16.mxu0 %v3062
    %4446 = vmatpush2.bf16.msra.mxu0 %v3061
    %4447 = vmatprep.subr.bf16.mxu0 %v3058
    %4448 = vmatpush2.bf16.msra.mxu0 %v3057
    %4449 = vmatprep.subr.bf16.mxu0 %v3054
    %4450 = vmatpush2.bf16.msra.mxu0 %v3053
    %4451 = vmatprep.subr.bf16.mxu0 %v3050
    %4452 = vmatpush2.bf16.msra.mxu0 %v3049
    %4453 = vmatprep.mubr.bf16.mxu0 %v127
    %4454 = vmatmul.mubr.bf16.gmra.mxu0 %v126
    %v4455 = vpop.f32.mrf.mxu0
    %v4456 = vadd.f32 %v4415, %v4455
    %v4457 = vpop.f32.mrf.mxu0
    %v4458 = vadd.f32 %v4417, %v4457
    %v4459 = vpop.f32.mrf.mxu0
    %v4460 = vpop.f32.mrf.mxu0
    %4461 = vdwg.mxu0
    %4462 = vmatprep.subr.bf16.mxu0 0
    %4463 = vmatpush1.bf16.msra.mxu0 0
    %4464 = vmatprep.subr.bf16.mxu0 0
    %4465 = vmatpush1.bf16.msra.mxu0 0
    %4466 = vmatprep.subr.bf16.mxu0 0
    %4467 = vmatpush1.bf16.msra.mxu0 0
    %4468 = vmatprep.subr.bf16.mxu0 0
    %4469 = vmatpush1.bf16.msra.mxu0 0
    %4470 = vmatprep.subr.bf16.mxu0 0
    %4471 = vmatpush1.bf16.msra.mxu0 0
    %4472 = vmatprep.subr.bf16.mxu0 %v3090
    %4473 = vmatpush1.bf16.msra.mxu0 %v3089
    %4474 = vmatprep.subr.bf16.mxu0 %v3086
    %4475 = vmatpush1.bf16.msra.mxu0 %v3085
    %4476 = vmatprep.subr.bf16.mxu0 %v3082
    %4477 = vmatpush1.bf16.msra.mxu0 %v3081
    %4478 = vmatprep.subr.bf16.mxu0 0
    %4479 = vmatpush2.bf16.msra.mxu0 0
    %4480 = vmatprep.subr.bf16.mxu0 0
    %4481 = vmatpush2.bf16.msra.mxu0 0
    %4482 = vmatprep.subr.bf16.mxu0 0
    %4483 = vmatpush2.bf16.msra.mxu0 0
    %4484 = vmatprep.subr.bf16.mxu0 0
    %4485 = vmatpush2.bf16.msra.mxu0 0
    %4486 = vmatprep.subr.bf16.mxu0 0
    %4487 = vmatpush2.bf16.msra.mxu0 0
    %4488 = vmatprep.subr.bf16.mxu0 0
    %4489 = vmatpush2.bf16.msra.mxu0 0
    %4490 = vmatprep.subr.bf16.mxu0 0
    %4491 = vmatpush2.bf16.msra.mxu0 0
    %4492 = vmatprep.subr.bf16.mxu0 0
    %4493 = vmatpush2.bf16.msra.mxu0 0
    %4494 = vmatprep.mubr.bf16.mxu0 0
    %4495 = vmatmul.mubr.bf16.gmra.mxu0 %v3681
    %v4496 = vpop.f32.mrf.mxu0
    %v4497 = vadd.f32 %v4456, %v4496
    %v4498 = vpop.f32.mrf.mxu0
    %v4499 = vadd.f32 %v4458, %v4498
    %v4500 = vpop.f32.mrf.mxu0
    %v4501 = vpop.f32.mrf.mxu0
    %4502 = vdwg.mxu0
    %v4503 = vmax.f32 %v4087, 0.0
    %v4504 = vmax.f32 %v4089, 0.0
    %v4505 = vmax.f32 %v4497, 0.0
    %v4506 = vmax.f32 %v4499, 0.0
    %v4507 = vpack.c.bf16 %v4503, %v4503
    %v4508 = vpack.c.bf16 %v4504, %v4504
    %v4509 = vpack.c.bf16 %v4505, %v4505
    %v4510 = vpack.c.bf16 %v4506, %v4506
    %v4511 = vld [vmem:[#allocation7] sm:$0xff]
    %v4512 = vld [vmem:[#allocation7 + $0x8] sm:$0xff]
    %v4513 = vld [vmem:[#allocation7 + $0x10] sm:$0xff]
    %v4514 = vld [vmem:[#allocation7 + $0x18] sm:$0xff]
    %v4515 = vld [vmem:[#allocation7 + $0x20] sm:$0xff]
    %v4516 = vld [vmem:[#allocation7 + $0x28] sm:$0xff]
    %v4517 = vld [vmem:[#allocation7 + $0x30] sm:$0xff]
    %v4518 = vld [vmem:[#allocation7 + $0x38] sm:$0xff]
    %v4519 = vld [vmem:[#allocation7 + $0x40] sm:$0xff]
    %v4520 = vld [vmem:[#allocation7 + $0x48] sm:$0xff]
    %v4521 = vld [vmem:[#allocation7 + $0x50] sm:$0xff]
    %v4522 = vld [vmem:[#allocation7 + $0x58] sm:$0xff]
    %v4523 = vld [vmem:[#allocation7 + $0x60] sm:$0xff]
    %v4524 = vld [vmem:[#allocation7 + $0x68] sm:$0xff]
    %v4525 = vld [vmem:[#allocation7 + $0x70] sm:$0xff]
    %v4526 = vld [vmem:[#allocation7 + $0x78] sm:$0xff]
    %v4527 = vld [vmem:[#allocation7 + $0x80] sm:$0xff]
    %v4528 = vld [vmem:[#allocation7 + $0x88] sm:$0xff]
    %v4529 = vld [vmem:[#allocation7 + $0x90] sm:$0xff]
    %v4530 = vld [vmem:[#allocation7 + $0x98] sm:$0xff]
    %v4531 = vld [vmem:[#allocation7 + $0xa0] sm:$0xff]
    %v4532 = vld [vmem:[#allocation7 + $0xa8] sm:$0xff]
    %v4533 = vld [vmem:[#allocation7 + $0xb0] sm:$0xff]
    %v4534 = vld [vmem:[#allocation7 + $0xb8] sm:$0xff]
    %v4535 = vld [vmem:[#allocation7 + $0xc0] sm:$0xff]
    %v4536 = vld [vmem:[#allocation7 + $0xc8] sm:$0xff]
    %v4537 = vld [vmem:[#allocation7 + $0xd0] sm:$0xff]
    %v4538 = vld [vmem:[#allocation7 + $0xd8] sm:$0xff]
    %v4539 = vld [vmem:[#allocation7 + $0xe0] sm:$0xff]
    %v4540 = vld [vmem:[#allocation7 + $0xe8] sm:$0xff]
    %v4541 = vld [vmem:[#allocation7 + $0xf0] sm:$0xff]
    %v4542 = vld [vmem:[#allocation7 + $0xf8] sm:$0xff]
    %v4543 = vld [vmem:[#allocation7 + $0x100] sm:$0xff]
    %v4544 = vld [vmem:[#allocation7 + $0x108] sm:$0xff]
    %v4545 = vld [vmem:[#allocation7 + $0x110] sm:$0xff]
    %v4546 = vld [vmem:[#allocation7 + $0x118] sm:$0xff]
    %v4547 = vld [vmem:[#allocation7 + $0x120] sm:$0xff]
    %v4548 = vld [vmem:[#allocation7 + $0x128] sm:$0xff]
    %v4549 = vld [vmem:[#allocation7 + $0x130] sm:$0xff]
    %v4550 = vld [vmem:[#allocation7 + $0x138] sm:$0xff]
    %v4551 = vld [vmem:[#allocation7 + $0x140] sm:$0xff]
    %v4552 = vld [vmem:[#allocation7 + $0x148] sm:$0xff]
    %v4553 = vld [vmem:[#allocation7 + $0x150] sm:$0xff]
    %v4554 = vld [vmem:[#allocation7 + $0x158] sm:$0xff]
    %v4555 = vld [vmem:[#allocation7 + $0x160] sm:$0xff]
    %v4556 = vld [vmem:[#allocation7 + $0x168] sm:$0xff]
    %v4557 = vld [vmem:[#allocation7 + $0x170] sm:$0xff]
    %v4558 = vld [vmem:[#allocation7 + $0x178] sm:$0xff]
    %v4559 = vld [vmem:[#allocation7 + $0x180] sm:$0xff]
    %v4560 = vld [vmem:[#allocation7 + $0x188] sm:$0xff]
    %v4561 = vld [vmem:[#allocation7 + $0x190] sm:$0xff]
    %v4562 = vld [vmem:[#allocation7 + $0x198] sm:$0xff]
    %v4563 = vld [vmem:[#allocation7 + $0x1a0] sm:$0xff]
    %v4564 = vld [vmem:[#allocation7 + $0x1a8] sm:$0xff]
    %v4565 = vld [vmem:[#allocation7 + $0x1b0] sm:$0xff]
    %v4566 = vld [vmem:[#allocation7 + $0x1b8] sm:$0xff]
    %v4567 = vld [vmem:[#allocation7 + $0x1c0] sm:$0xff]
    %v4568 = vld [vmem:[#allocation7 + $0x1c8] sm:$0xff]
    %v4569 = vld [vmem:[#allocation7 + $0x1d0] sm:$0xff]
    %v4570 = vld [vmem:[#allocation7 + $0x1d8] sm:$0xff]
    %v4571 = vld [vmem:[#allocation7 + $0x1e0] sm:$0xff]
    %v4572 = vld [vmem:[#allocation7 + $0x1e8] sm:$0xff]
    %v4573 = vld [vmem:[#allocation7 + $0x1f0] sm:$0xff]
    %v4574 = vld [vmem:[#allocation7 + $0x1f8] sm:$0xff]
    %v4575 = vld [vmem:[#allocation7 + $0x200] sm:$0xff]
    %v4576 = vld [vmem:[#allocation7 + $0x208] sm:$0xff]
    %v4577 = vld [vmem:[#allocation7 + $0x210] sm:$0xff]
    %v4578 = vld [vmem:[#allocation7 + $0x218] sm:$0xff]
    %v4579 = vld [vmem:[#allocation7 + $0x220] sm:$0xff]
    %v4580 = vld [vmem:[#allocation7 + $0x228] sm:$0xff]
    %v4581 = vld [vmem:[#allocation7 + $0x230] sm:$0xff]
    %v4582 = vld [vmem:[#allocation7 + $0x238] sm:$0xff]
    %v4583 = vld [vmem:[#allocation7 + $0x240] sm:$0xff]
    %v4584 = vld [vmem:[#allocation7 + $0x248] sm:$0xff]
    %v4585 = vld [vmem:[#allocation7 + $0x250] sm:$0xff]
    %v4586 = vld [vmem:[#allocation7 + $0x258] sm:$0xff]
    %v4587 = vld [vmem:[#allocation7 + $0x260] sm:$0xff]
    %v4588 = vld [vmem:[#allocation7 + $0x268] sm:$0xff]
    %v4589 = vld [vmem:[#allocation7 + $0x270] sm:$0xff]
    %v4590 = vld [vmem:[#allocation7 + $0x278] sm:$0xff]
    %v4591 = vld [vmem:[#allocation7 + $0x280] sm:$0xff]
    %v4592 = vld [vmem:[#allocation7 + $0x288] sm:$0xff]
    %v4593 = vld [vmem:[#allocation7 + $0x290] sm:$0xff]
    %v4594 = vld [vmem:[#allocation7 + $0x298] sm:$0xff]
    %v4595 = vld [vmem:[#allocation7 + $0x2a0] sm:$0xff]
    %v4596 = vld [vmem:[#allocation7 + $0x2a8] sm:$0xff]
    %v4597 = vld [vmem:[#allocation7 + $0x2b0] sm:$0xff]
    %v4598 = vld [vmem:[#allocation7 + $0x2b8] sm:$0xff]
    %v4599 = vld [vmem:[#allocation7 + $0x2c0] sm:$0xff]
    %v4600 = vld [vmem:[#allocation7 + $0x2c8] sm:$0xff]
    %v4601 = vld [vmem:[#allocation7 + $0x2d0] sm:$0xff]
    %v4602 = vld [vmem:[#allocation7 + $0x2d8] sm:$0xff]
    %v4603 = vld [vmem:[#allocation7 + $0x2e0] sm:$0xff]
    %v4604 = vld [vmem:[#allocation7 + $0x2e8] sm:$0xff]
    %v4605 = vld [vmem:[#allocation7 + $0x2f0] sm:$0xff]
    %v4606 = vld [vmem:[#allocation7 + $0x2f8] sm:$0xff]
    %v4607 = vld [vmem:[#allocation7 + $0x300] sm:$0xff]
    %v4608 = vld [vmem:[#allocation7 + $0x308] sm:$0xff]
    %v4609 = vld [vmem:[#allocation7 + $0x310] sm:$0xff]
    %v4610 = vld [vmem:[#allocation7 + $0x318] sm:$0xff]
    %v4611 = vld [vmem:[#allocation7 + $0x320] sm:$0xff]
    %v4612 = vld [vmem:[#allocation7 + $0x328] sm:$0xff]
    %v4613 = vld [vmem:[#allocation7 + $0x330] sm:$0xff]
    %v4614 = vld [vmem:[#allocation7 + $0x338] sm:$0xff]
    %v4615 = vld [vmem:[#allocation7 + $0x340] sm:$0xff]
    %v4616 = vld [vmem:[#allocation7 + $0x348] sm:$0xff]
    %v4617 = vld [vmem:[#allocation7 + $0x350] sm:$0xff]
    %v4618 = vld [vmem:[#allocation7 + $0x358] sm:$0xff]
    %v4619 = vld [vmem:[#allocation7 + $0x360] sm:$0xff]
    %v4620 = vld [vmem:[#allocation7 + $0x368] sm:$0xff]
    %v4621 = vld [vmem:[#allocation7 + $0x370] sm:$0xff]
    %v4622 = vld [vmem:[#allocation7 + $0x378] sm:$0xff]
    %v4623 = vld [vmem:[#allocation7 + $0x380] sm:$0xff]
    %v4624 = vld [vmem:[#allocation7 + $0x388] sm:$0xff]
    %v4625 = vld [vmem:[#allocation7 + $0x390] sm:$0xff]
    %v4626 = vld [vmem:[#allocation7 + $0x398] sm:$0xff]
    %v4627 = vld [vmem:[#allocation7 + $0x3a0] sm:$0xff]
    %v4628 = vld [vmem:[#allocation7 + $0x3a8] sm:$0xff]
    %v4629 = vld [vmem:[#allocation7 + $0x3b0] sm:$0xff]
    %v4630 = vld [vmem:[#allocation7 + $0x3b8] sm:$0xff]
    %v4631 = vld [vmem:[#allocation7 + $0x3c0] sm:$0xff]
    %v4632 = vld [vmem:[#allocation7 + $0x3c8] sm:$0xff]
    %v4633 = vld [vmem:[#allocation7 + $0x3d0] sm:$0xff]
    %v4634 = vld [vmem:[#allocation7 + $0x3d8] sm:$0xff]
    %v4635 = vld [vmem:[#allocation7 + $0x3e0] sm:$0xff]
    %v4636 = vld [vmem:[#allocation7 + $0x3e8] sm:$0xff]
    %v4637 = vld [vmem:[#allocation7 + $0x3f0] sm:$0xff]
    %v4638 = vld [vmem:[#allocation7 + $0x3f8] sm:$0xff]
    %v4639 = vld [vmem:[#allocation8] sm:$0xf]
    %v4641 = vlaneseq
    %v4642 = vshrl.u32 %v4641, 7
    %v4643 = vsub.s32 0, %v4642
    %v4644 = vrot.slane %v4639, %v4643
    %v4645 = vlaneseq
    %v4646 = vshrl.u32 %v4645, 7
    %v4647 = vsub.s32 1, %v4646
    %v4648 = vrot.slane %v4639, %v4647
    %v4649 = vlaneseq
    %v4650 = vshrl.u32 %v4649, 7
    %v4651 = vsub.s32 2, %v4650
    %v4652 = vrot.slane %v4639, %v4651
    %v4653 = vlaneseq
    %v4654 = vshrl.u32 %v4653, 7
    %v4655 = vsub.s32 3, %v4654
    %v4656 = vrot.slane %v4639, %v4655
    %v4789 = vunpack.c.l.b16 %v4511
    %v4790 = vunpack.c.h.b16 %v4511
    %v4791 = vunpack.c.l.b16 %v4512
    %v4792 = vunpack.c.h.b16 %v4512
    %v4793 = vunpack.c.l.b16 %v4513
    %v4794 = vunpack.c.h.b16 %v4513
    %v4795 = vunpack.c.l.b16 %v4514
    %v4796 = vunpack.c.h.b16 %v4514
    %v4797 = vunpack.c.l.b16 %v4515
    %v4798 = vunpack.c.h.b16 %v4515
    %v4799 = vunpack.c.l.b16 %v4516
    %v4800 = vunpack.c.h.b16 %v4516
    %v4801 = vunpack.c.l.b16 %v4517
    %v4802 = vunpack.c.h.b16 %v4517
    %v4803 = vunpack.c.l.b16 %v4518
    %v4804 = vunpack.c.h.b16 %v4518
    %v4805 = vunpack.c.l.b16 %v4519
    %v4806 = vunpack.c.h.b16 %v4519
    %v4807 = vunpack.c.l.b16 %v4520
    %v4808 = vunpack.c.h.b16 %v4520
    %v4809 = vunpack.c.l.b16 %v4521
    %v4810 = vunpack.c.h.b16 %v4521
    %v4811 = vunpack.c.l.b16 %v4522
    %v4812 = vunpack.c.h.b16 %v4522
    %v4813 = vunpack.c.l.b16 %v4523
    %v4814 = vunpack.c.h.b16 %v4523
    %v4815 = vunpack.c.l.b16 %v4524
    %v4816 = vunpack.c.h.b16 %v4524
    %v4817 = vunpack.c.l.b16 %v4525
    %v4818 = vunpack.c.h.b16 %v4525
    %v4819 = vunpack.c.l.b16 %v4526
    %v4820 = vunpack.c.h.b16 %v4526
    %v4821 = vunpack.c.l.b16 %v4527
    %v4822 = vunpack.c.h.b16 %v4527
    %v4823 = vunpack.c.l.b16 %v4528
    %v4824 = vunpack.c.h.b16 %v4528
    %v4825 = vunpack.c.l.b16 %v4529
    %v4826 = vunpack.c.h.b16 %v4529
    %v4827 = vunpack.c.l.b16 %v4530
    %v4828 = vunpack.c.h.b16 %v4530
    %v4829 = vunpack.c.l.b16 %v4531
    %v4830 = vunpack.c.h.b16 %v4531
    %v4831 = vunpack.c.l.b16 %v4532
    %v4832 = vunpack.c.h.b16 %v4532
    %v4833 = vunpack.c.l.b16 %v4533
    %v4834 = vunpack.c.h.b16 %v4533
    %v4835 = vunpack.c.l.b16 %v4534
    %v4836 = vunpack.c.h.b16 %v4534
    %v4837 = vunpack.c.l.b16 %v4535
    %v4838 = vunpack.c.h.b16 %v4535
    %v4839 = vunpack.c.l.b16 %v4536
    %v4840 = vunpack.c.h.b16 %v4536
    %v4841 = vunpack.c.l.b16 %v4537
    %v4842 = vunpack.c.h.b16 %v4537
    %v4843 = vunpack.c.l.b16 %v4538
    %v4844 = vunpack.c.h.b16 %v4538
    %v4845 = vunpack.c.l.b16 %v4539
    %v4846 = vunpack.c.h.b16 %v4539
    %v4847 = vunpack.c.l.b16 %v4540
    %v4848 = vunpack.c.h.b16 %v4540
    %v4849 = vunpack.c.l.b16 %v4541
    %v4850 = vunpack.c.h.b16 %v4541
    %v4851 = vunpack.c.l.b16 %v4542
    %v4852 = vunpack.c.h.b16 %v4542
    %v4853 = vunpack.c.l.b16 %v4543
    %v4854 = vunpack.c.h.b16 %v4543
    %v4855 = vunpack.c.l.b16 %v4544
    %v4856 = vunpack.c.h.b16 %v4544
    %v4857 = vunpack.c.l.b16 %v4545
    %v4858 = vunpack.c.h.b16 %v4545
    %v4859 = vunpack.c.l.b16 %v4546
    %v4860 = vunpack.c.h.b16 %v4546
    %v4861 = vunpack.c.l.b16 %v4547
    %v4862 = vunpack.c.h.b16 %v4547
    %v4863 = vunpack.c.l.b16 %v4548
    %v4864 = vunpack.c.h.b16 %v4548
    %v4865 = vunpack.c.l.b16 %v4549
    %v4866 = vunpack.c.h.b16 %v4549
    %v4867 = vunpack.c.l.b16 %v4550
    %v4868 = vunpack.c.h.b16 %v4550
    %v4869 = vunpack.c.l.b16 %v4551
    %v4870 = vunpack.c.h.b16 %v4551
    %v4871 = vunpack.c.l.b16 %v4552
    %v4872 = vunpack.c.h.b16 %v4552
    %v4873 = vunpack.c.l.b16 %v4553
    %v4874 = vunpack.c.h.b16 %v4553
    %v4875 = vunpack.c.l.b16 %v4554
    %v4876 = vunpack.c.h.b16 %v4554
    %v4877 = vunpack.c.l.b16 %v4555
    %v4878 = vunpack.c.h.b16 %v4555
    %v4879 = vunpack.c.l.b16 %v4556
    %v4880 = vunpack.c.h.b16 %v4556
    %v4881 = vunpack.c.l.b16 %v4557
    %v4882 = vunpack.c.h.b16 %v4557
    %v4883 = vunpack.c.l.b16 %v4558
    %v4884 = vunpack.c.h.b16 %v4558
    %v4885 = vunpack.c.l.b16 %v4559
    %v4886 = vunpack.c.h.b16 %v4559
    %v4887 = vunpack.c.l.b16 %v4560
    %v4888 = vunpack.c.h.b16 %v4560
    %v4889 = vunpack.c.l.b16 %v4561
    %v4890 = vunpack.c.h.b16 %v4561
    %v4891 = vunpack.c.l.b16 %v4562
    %v4892 = vunpack.c.h.b16 %v4562
    %v4893 = vunpack.c.l.b16 %v4563
    %v4894 = vunpack.c.h.b16 %v4563
    %v4895 = vunpack.c.l.b16 %v4564
    %v4896 = vunpack.c.h.b16 %v4564
    %v4897 = vunpack.c.l.b16 %v4565
    %v4898 = vunpack.c.h.b16 %v4565
    %v4899 = vunpack.c.l.b16 %v4566
    %v4900 = vunpack.c.h.b16 %v4566
    %v4901 = vunpack.c.l.b16 %v4567
    %v4902 = vunpack.c.h.b16 %v4567
    %v4903 = vunpack.c.l.b16 %v4568
    %v4904 = vunpack.c.h.b16 %v4568
    %v4905 = vunpack.c.l.b16 %v4569
    %v4906 = vunpack.c.h.b16 %v4569
    %v4907 = vunpack.c.l.b16 %v4570
    %v4908 = vunpack.c.h.b16 %v4570
    %v4909 = vunpack.c.l.b16 %v4571
    %v4910 = vunpack.c.h.b16 %v4571
    %v4911 = vunpack.c.l.b16 %v4572
    %v4912 = vunpack.c.h.b16 %v4572
    %v4913 = vunpack.c.l.b16 %v4573
    %v4914 = vunpack.c.h.b16 %v4573
    %v4915 = vunpack.c.l.b16 %v4574
    %v4916 = vunpack.c.h.b16 %v4574
    %v4917 = vunpack.c.l.b16 %v4575
    %v4918 = vunpack.c.h.b16 %v4575
    %v4919 = vunpack.c.l.b16 %v4576
    %v4920 = vunpack.c.h.b16 %v4576
    %v4921 = vunpack.c.l.b16 %v4577
    %v4922 = vunpack.c.h.b16 %v4577
    %v4923 = vunpack.c.l.b16 %v4578
    %v4924 = vunpack.c.h.b16 %v4578
    %v4925 = vunpack.c.l.b16 %v4579
    %v4926 = vunpack.c.h.b16 %v4579
    %v4927 = vunpack.c.l.b16 %v4580
    %v4928 = vunpack.c.h.b16 %v4580
    %v4929 = vunpack.c.l.b16 %v4581
    %v4930 = vunpack.c.h.b16 %v4581
    %v4931 = vunpack.c.l.b16 %v4582
    %v4932 = vunpack.c.h.b16 %v4582
    %v4933 = vunpack.c.l.b16 %v4583
    %v4934 = vunpack.c.h.b16 %v4583
    %v4935 = vunpack.c.l.b16 %v4584
    %v4936 = vunpack.c.h.b16 %v4584
    %v4937 = vunpack.c.l.b16 %v4585
    %v4938 = vunpack.c.h.b16 %v4585
    %v4939 = vunpack.c.l.b16 %v4586
    %v4940 = vunpack.c.h.b16 %v4586
    %v4941 = vunpack.c.l.b16 %v4587
    %v4942 = vunpack.c.h.b16 %v4587
    %v4943 = vunpack.c.l.b16 %v4588
    %v4944 = vunpack.c.h.b16 %v4588
    %v4945 = vunpack.c.l.b16 %v4589
    %v4946 = vunpack.c.h.b16 %v4589
    %v4947 = vunpack.c.l.b16 %v4590
    %v4948 = vunpack.c.h.b16 %v4590
    %v4949 = vunpack.c.l.b16 %v4591
    %v4950 = vunpack.c.h.b16 %v4591
    %v4951 = vunpack.c.l.b16 %v4592
    %v4952 = vunpack.c.h.b16 %v4592
    %v4953 = vunpack.c.l.b16 %v4593
    %v4954 = vunpack.c.h.b16 %v4593
    %v4955 = vunpack.c.l.b16 %v4594
    %v4956 = vunpack.c.h.b16 %v4594
    %v4957 = vunpack.c.l.b16 %v4595
    %v4958 = vunpack.c.h.b16 %v4595
    %v4959 = vunpack.c.l.b16 %v4596
    %v4960 = vunpack.c.h.b16 %v4596
    %v4961 = vunpack.c.l.b16 %v4597
    %v4962 = vunpack.c.h.b16 %v4597
    %v4963 = vunpack.c.l.b16 %v4598
    %v4964 = vunpack.c.h.b16 %v4598
    %v4965 = vunpack.c.l.b16 %v4599
    %v4966 = vunpack.c.h.b16 %v4599
    %v4967 = vunpack.c.l.b16 %v4600
    %v4968 = vunpack.c.h.b16 %v4600
    %v4969 = vunpack.c.l.b16 %v4601
    %v4970 = vunpack.c.h.b16 %v4601
    %v4971 = vunpack.c.l.b16 %v4602
    %v4972 = vunpack.c.h.b16 %v4602
    %v4973 = vunpack.c.l.b16 %v4603
    %v4974 = vunpack.c.h.b16 %v4603
    %v4975 = vunpack.c.l.b16 %v4604
    %v4976 = vunpack.c.h.b16 %v4604
    %v4977 = vunpack.c.l.b16 %v4605
    %v4978 = vunpack.c.h.b16 %v4605
    %v4979 = vunpack.c.l.b16 %v4606
    %v4980 = vunpack.c.h.b16 %v4606
    %v4981 = vunpack.c.l.b16 %v4607
    %v4982 = vunpack.c.h.b16 %v4607
    %v4983 = vunpack.c.l.b16 %v4608
    %v4984 = vunpack.c.h.b16 %v4608
    %v4985 = vunpack.c.l.b16 %v4609
    %v4986 = vunpack.c.h.b16 %v4609
    %v4987 = vunpack.c.l.b16 %v4610
    %v4988 = vunpack.c.h.b16 %v4610
    %v4989 = vunpack.c.l.b16 %v4611
    %v4990 = vunpack.c.h.b16 %v4611
    %v4991 = vunpack.c.l.b16 %v4612
    %v4992 = vunpack.c.h.b16 %v4612
    %v4993 = vunpack.c.l.b16 %v4613
    %v4994 = vunpack.c.h.b16 %v4613
    %v4995 = vunpack.c.l.b16 %v4614
    %v4996 = vunpack.c.h.b16 %v4614
    %v4997 = vunpack.c.l.b16 %v4615
    %v4998 = vunpack.c.h.b16 %v4615
    %v4999 = vunpack.c.l.b16 %v4616
    %v5000 = vunpack.c.h.b16 %v4616
    %v5001 = vunpack.c.l.b16 %v4617
    %v5002 = vunpack.c.h.b16 %v4617
    %v5003 = vunpack.c.l.b16 %v4618
    %v5004 = vunpack.c.h.b16 %v4618
    %v5005 = vunpack.c.l.b16 %v4619
    %v5006 = vunpack.c.h.b16 %v4619
    %v5007 = vunpack.c.l.b16 %v4620
    %v5008 = vunpack.c.h.b16 %v4620
    %v5009 = vunpack.c.l.b16 %v4621
    %v5010 = vunpack.c.h.b16 %v4621
    %v5011 = vunpack.c.l.b16 %v4622
    %v5012 = vunpack.c.h.b16 %v4622
    %v5013 = vunpack.c.l.b16 %v4623
    %v5014 = vunpack.c.h.b16 %v4623
    %v5015 = vunpack.c.l.b16 %v4624
    %v5016 = vunpack.c.h.b16 %v4624
    %v5017 = vunpack.c.l.b16 %v4625
    %v5018 = vunpack.c.h.b16 %v4625
    %v5019 = vunpack.c.l.b16 %v4626
    %v5020 = vunpack.c.h.b16 %v4626
    %v5021 = vunpack.c.l.b16 %v4627
    %v5022 = vunpack.c.h.b16 %v4627
    %v5023 = vunpack.c.l.b16 %v4628
    %v5024 = vunpack.c.h.b16 %v4628
    %v5025 = vunpack.c.l.b16 %v4629
    %v5026 = vunpack.c.h.b16 %v4629
    %v5027 = vunpack.c.l.b16 %v4630
    %v5028 = vunpack.c.h.b16 %v4630
    %v5029 = vunpack.c.l.b16 %v4631
    %v5030 = vunpack.c.h.b16 %v4631
    %v5031 = vunpack.c.l.b16 %v4632
    %v5032 = vunpack.c.h.b16 %v4632
    %v5033 = vunpack.c.l.b16 %v4633
    %v5034 = vunpack.c.h.b16 %v4633
    %v5035 = vunpack.c.l.b16 %v4634
    %v5036 = vunpack.c.h.b16 %v4634
    %v5037 = vunpack.c.l.b16 %v4635
    %v5038 = vunpack.c.h.b16 %v4635
    %v5039 = vunpack.c.l.b16 %v4636
    %v5040 = vunpack.c.h.b16 %v4636
    %v5041 = vunpack.c.l.b16 %v4637
    %v5042 = vunpack.c.h.b16 %v4637
    %v5043 = vunpack.c.l.b16 %v4638
    %v5044 = vunpack.c.h.b16 %v4638
    %v5045 = vpack.c.b16 %v4793, %v4789
    %v5046 = vpack.c.b16 %v4794, %v4790
    %v5047 = vpack.c.b16 %v4795, %v4791
    %v5048 = vpack.c.b16 %v4796, %v4792
    %v5049 = vpack.c.b16 %v4801, %v4797
    %v5050 = vpack.c.b16 %v4802, %v4798
    %v5051 = vpack.c.b16 %v4803, %v4799
    %v5052 = vpack.c.b16 %v4804, %v4800
    %v5053 = vpack.c.b16 %v4809, %v4805
    %v5054 = vpack.c.b16 %v4810, %v4806
    %v5055 = vpack.c.b16 %v4811, %v4807
    %v5056 = vpack.c.b16 %v4812, %v4808
    %v5057 = vpack.c.b16 %v4817, %v4813
    %v5058 = vpack.c.b16 %v4818, %v4814
    %v5059 = vpack.c.b16 %v4819, %v4815
    %v5060 = vpack.c.b16 %v4820, %v4816
    %v5061 = vpack.c.b16 %v4825, %v4821
    %v5062 = vpack.c.b16 %v4826, %v4822
    %v5063 = vpack.c.b16 %v4827, %v4823
    %v5064 = vpack.c.b16 %v4828, %v4824
    %v5065 = vpack.c.b16 %v4833, %v4829
    %v5066 = vpack.c.b16 %v4834, %v4830
    %v5067 = vpack.c.b16 %v4835, %v4831
    %v5068 = vpack.c.b16 %v4836, %v4832
    %v5069 = vpack.c.b16 %v4841, %v4837
    %v5070 = vpack.c.b16 %v4842, %v4838
    %v5071 = vpack.c.b16 %v4843, %v4839
    %v5072 = vpack.c.b16 %v4844, %v4840
    %v5073 = vpack.c.b16 %v4849, %v4845
    %v5074 = vpack.c.b16 %v4850, %v4846
    %v5075 = vpack.c.b16 %v4851, %v4847
    %v5076 = vpack.c.b16 %v4852, %v4848
    %v5077 = vpack.c.b16 %v4857, %v4853
    %v5078 = vpack.c.b16 %v4858, %v4854
    %v5079 = vpack.c.b16 %v4859, %v4855
    %v5080 = vpack.c.b16 %v4860, %v4856
    %v5081 = vpack.c.b16 %v4865, %v4861
    %v5082 = vpack.c.b16 %v4866, %v4862
    %v5083 = vpack.c.b16 %v4867, %v4863
    %v5084 = vpack.c.b16 %v4868, %v4864
    %v5085 = vpack.c.b16 %v4873, %v4869
    %v5086 = vpack.c.b16 %v4874, %v4870
    %v5087 = vpack.c.b16 %v4875, %v4871
    %v5088 = vpack.c.b16 %v4876, %v4872
    %v5089 = vpack.c.b16 %v4881, %v4877
    %v5090 = vpack.c.b16 %v4882, %v4878
    %v5091 = vpack.c.b16 %v4883, %v4879
    %v5092 = vpack.c.b16 %v4884, %v4880
    %v5093 = vpack.c.b16 %v4889, %v4885
    %v5094 = vpack.c.b16 %v4890, %v4886
    %v5095 = vpack.c.b16 %v4891, %v4887
    %v5096 = vpack.c.b16 %v4892, %v4888
    %v5097 = vpack.c.b16 %v4897, %v4893
    %v5098 = vpack.c.b16 %v4898, %v4894
    %v5099 = vpack.c.b16 %v4899, %v4895
    %v5100 = vpack.c.b16 %v4900, %v4896
    %v5101 = vpack.c.b16 %v4905, %v4901
    %v5102 = vpack.c.b16 %v4906, %v4902
    %v5103 = vpack.c.b16 %v4907, %v4903
    %v5104 = vpack.c.b16 %v4908, %v4904
    %v5105 = vpack.c.b16 %v4913, %v4909
    %v5106 = vpack.c.b16 %v4914, %v4910
    %v5107 = vpack.c.b16 %v4915, %v4911
    %v5108 = vpack.c.b16 %v4916, %v4912
    %v5109 = vpack.c.b16 %v4921, %v4917
    %v5110 = vpack.c.b16 %v4922, %v4918
    %v5111 = vpack.c.b16 %v4923, %v4919
    %v5112 = vpack.c.b16 %v4924, %v4920
    %v5113 = vpack.c.b16 %v4929, %v4925
    %v5114 = vpack.c.b16 %v4930, %v4926
    %v5115 = vpack.c.b16 %v4931, %v4927
    %v5116 = vpack.c.b16 %v4932, %v4928
    %v5117 = vpack.c.b16 %v4937, %v4933
    %v5118 = vpack.c.b16 %v4938, %v4934
    %v5119 = vpack.c.b16 %v4939, %v4935
    %v5120 = vpack.c.b16 %v4940, %v4936
    %v5121 = vpack.c.b16 %v4945, %v4941
    %v5122 = vpack.c.b16 %v4946, %v4942
    %v5123 = vpack.c.b16 %v4947, %v4943
    %v5124 = vpack.c.b16 %v4948, %v4944
    %v5125 = vpack.c.b16 %v4953, %v4949
    %v5126 = vpack.c.b16 %v4954, %v4950
    %v5127 = vpack.c.b16 %v4955, %v4951
    %v5128 = vpack.c.b16 %v4956, %v4952
    %v5129 = vpack.c.b16 %v4961, %v4957
    %v5130 = vpack.c.b16 %v4962, %v4958
    %v5131 = vpack.c.b16 %v4963, %v4959
    %v5132 = vpack.c.b16 %v4964, %v4960
    %v5133 = vpack.c.b16 %v4969, %v4965
    %v5134 = vpack.c.b16 %v4970, %v4966
    %v5135 = vpack.c.b16 %v4971, %v4967
    %v5136 = vpack.c.b16 %v4972, %v4968
    %v5137 = vpack.c.b16 %v4977, %v4973
    %v5138 = vpack.c.b16 %v4978, %v4974
    %v5139 = vpack.c.b16 %v4979, %v4975
    %v5140 = vpack.c.b16 %v4980, %v4976
    %v5141 = vpack.c.b16 %v4985, %v4981
    %v5142 = vpack.c.b16 %v4986, %v4982
    %v5143 = vpack.c.b16 %v4987, %v4983
    %v5144 = vpack.c.b16 %v4988, %v4984
    %v5145 = vpack.c.b16 %v4993, %v4989
    %v5146 = vpack.c.b16 %v4994, %v4990
    %v5147 = vpack.c.b16 %v4995, %v4991
    %v5148 = vpack.c.b16 %v4996, %v4992
    %v5149 = vpack.c.b16 %v5001, %v4997
    %v5150 = vpack.c.b16 %v5002, %v4998
    %v5151 = vpack.c.b16 %v5003, %v4999
    %v5152 = vpack.c.b16 %v5004, %v5000
    %v5153 = vpack.c.b16 %v5009, %v5005
    %v5154 = vpack.c.b16 %v5010, %v5006
    %v5155 = vpack.c.b16 %v5011, %v5007
    %v5156 = vpack.c.b16 %v5012, %v5008
    %v5157 = vpack.c.b16 %v5017, %v5013
    %v5158 = vpack.c.b16 %v5018, %v5014
    %v5159 = vpack.c.b16 %v5019, %v5015
    %v5160 = vpack.c.b16 %v5020, %v5016
    %v5161 = vpack.c.b16 %v5025, %v5021
    %v5162 = vpack.c.b16 %v5026, %v5022
    %v5163 = vpack.c.b16 %v5027, %v5023
    %v5164 = vpack.c.b16 %v5028, %v5024
    %v5165 = vpack.c.b16 %v5033, %v5029
    %v5166 = vpack.c.b16 %v5034, %v5030
    %v5167 = vpack.c.b16 %v5035, %v5031
    %v5168 = vpack.c.b16 %v5036, %v5032
    %v5169 = vpack.c.b16 %v5041, %v5037
    %v5170 = vpack.c.b16 %v5042, %v5038
    %v5171 = vpack.c.b16 %v5043, %v5039
    %v5172 = vpack.c.b16 %v5044, %v5040
    %5301 = vmatprep.subr.bf16.mxu0 %v5074
    %5302 = vmatpush1.bf16.msra.mxu0 %v5073
    %5303 = vmatprep.subr.bf16.mxu0 %v5070
    %5304 = vmatpush1.bf16.msra.mxu0 %v5069
    %5305 = vmatprep.subr.bf16.mxu0 %v5066
    %5306 = vmatpush1.bf16.msra.mxu0 %v5065
    %5307 = vmatprep.subr.bf16.mxu0 %v5062
    %5308 = vmatpush1.bf16.msra.mxu0 %v5061
    %5309 = vmatprep.subr.bf16.mxu0 %v5058
    %5310 = vmatpush1.bf16.msra.mxu0 %v5057
    %5311 = vmatprep.subr.bf16.mxu0 %v5054
    %5312 = vmatpush1.bf16.msra.mxu0 %v5053
    %5313 = vmatprep.subr.bf16.mxu0 %v5050
    %5314 = vmatpush1.bf16.msra.mxu0 %v5049
    %5315 = vmatprep.subr.bf16.mxu0 %v5046
    %5316 = vmatpush1.bf16.msra.mxu0 %v5045
    %5317 = vmatprep.subr.bf16.mxu0 %v5106
    %5318 = vmatpush2.bf16.msra.mxu0 %v5105
    %5319 = vmatprep.subr.bf16.mxu0 %v5102
    %5320 = vmatpush2.bf16.msra.mxu0 %v5101
    %5321 = vmatprep.subr.bf16.mxu0 %v5098
    %5322 = vmatpush2.bf16.msra.mxu0 %v5097
    %5323 = vmatprep.subr.bf16.mxu0 %v5094
    %5324 = vmatpush2.bf16.msra.mxu0 %v5093
    %5325 = vmatprep.subr.bf16.mxu0 %v5090
    %5326 = vmatpush2.bf16.msra.mxu0 %v5089
    %5327 = vmatprep.subr.bf16.mxu0 %v5086
    %5328 = vmatpush2.bf16.msra.mxu0 %v5085
    %5329 = vmatprep.subr.bf16.mxu0 %v5082
    %5330 = vmatpush2.bf16.msra.mxu0 %v5081
    %5331 = vmatprep.subr.bf16.mxu0 %v5078
    %5332 = vmatpush2.bf16.msra.mxu0 %v5077
    %5333 = vmatprep.mubr.bf16.mxu0 %v4508
    %5334 = vmatmul.mubr.bf16.gmra.mxu0 %v4507
    %v5335 = vpop.f32.mrf.mxu0
    %v5336 = vadd.f32 %v4644, %v5335
    %v5337 = vpop.f32.mrf.mxu0
    %v5338 = vadd.f32 %v4648, %v5337
    %v5339 = vpop.f32.mrf.mxu0
    %v5340 = vpop.f32.mrf.mxu0
    %5341 = vdwg.mxu0
    %5342 = vmatprep.subr.bf16.mxu0 %v5138
    %5343 = vmatpush1.bf16.msra.mxu0 %v5137
    %5344 = vmatprep.subr.bf16.mxu0 %v5134
    %5345 = vmatpush1.bf16.msra.mxu0 %v5133
    %5346 = vmatprep.subr.bf16.mxu0 %v5130
    %5347 = vmatpush1.bf16.msra.mxu0 %v5129
    %5348 = vmatprep.subr.bf16.mxu0 %v5126
    %5349 = vmatpush1.bf16.msra.mxu0 %v5125
    %5350 = vmatprep.subr.bf16.mxu0 %v5122
    %5351 = vmatpush1.bf16.msra.mxu0 %v5121
    %5352 = vmatprep.subr.bf16.mxu0 %v5118
    %5353 = vmatpush1.bf16.msra.mxu0 %v5117
    %5354 = vmatprep.subr.bf16.mxu0 %v5114
    %5355 = vmatpush1.bf16.msra.mxu0 %v5113
    %5356 = vmatprep.subr.bf16.mxu0 %v5110
    %5357 = vmatpush1.bf16.msra.mxu0 %v5109
    %5358 = vmatprep.subr.bf16.mxu0 %v5170
    %5359 = vmatpush2.bf16.msra.mxu0 %v5169
    %5360 = vmatprep.subr.bf16.mxu0 %v5166
    %5361 = vmatpush2.bf16.msra.mxu0 %v5165
    %5362 = vmatprep.subr.bf16.mxu0 %v5162
    %5363 = vmatpush2.bf16.msra.mxu0 %v5161
    %5364 = vmatprep.subr.bf16.mxu0 %v5158
    %5365 = vmatpush2.bf16.msra.mxu0 %v5157
    %5366 = vmatprep.subr.bf16.mxu0 %v5154
    %5367 = vmatpush2.bf16.msra.mxu0 %v5153
    %5368 = vmatprep.subr.bf16.mxu0 %v5150
    %5369 = vmatpush2.bf16.msra.mxu0 %v5149
    %5370 = vmatprep.subr.bf16.mxu0 %v5146
    %5371 = vmatpush2.bf16.msra.mxu0 %v5145
    %5372 = vmatprep.subr.bf16.mxu0 %v5142
    %5373 = vmatpush2.bf16.msra.mxu0 %v5141
    %5374 = vmatprep.mubr.bf16.mxu0 %v4510
    %5375 = vmatmul.mubr.bf16.gmra.mxu0 %v4509
    %v5376 = vpop.f32.mrf.mxu0
    %v5377 = vadd.f32 %v5336, %v5376
    %v5378 = vpop.f32.mrf.mxu0
    %v5379 = vadd.f32 %v5338, %v5378
    %v5380 = vpop.f32.mrf.mxu0
    %v5381 = vpop.f32.mrf.mxu0
    %5382 = vdwg.mxu0
    %5383 = vmatprep.subr.bf16.mxu0 %v5076
    %5384 = vmatpush1.bf16.msra.mxu0 %v5075
    %5385 = vmatprep.subr.bf16.mxu0 %v5072
    %5386 = vmatpush1.bf16.msra.mxu0 %v5071
    %5387 = vmatprep.subr.bf16.mxu0 %v5068
    %5388 = vmatpush1.bf16.msra.mxu0 %v5067
    %5389 = vmatprep.subr.bf16.mxu0 %v5064
    %5390 = vmatpush1.bf16.msra.mxu0 %v5063
    %5391 = vmatprep.subr.bf16.mxu0 %v5060
    %5392 = vmatpush1.bf16.msra.mxu0 %v5059
    %5393 = vmatprep.subr.bf16.mxu0 %v5056
    %5394 = vmatpush1.bf16.msra.mxu0 %v5055
    %5395 = vmatprep.subr.bf16.mxu0 %v5052
    %5396 = vmatpush1.bf16.msra.mxu0 %v5051
    %5397 = vmatprep.subr.bf16.mxu0 %v5048
    %5398 = vmatpush1.bf16.msra.mxu0 %v5047
    %5399 = vmatprep.subr.bf16.mxu0 %v5108
    %5400 = vmatpush2.bf16.msra.mxu0 %v5107
    %5401 = vmatprep.subr.bf16.mxu0 %v5104
    %5402 = vmatpush2.bf16.msra.mxu0 %v5103
    %5403 = vmatprep.subr.bf16.mxu0 %v5100
    %5404 = vmatpush2.bf16.msra.mxu0 %v5099
    %5405 = vmatprep.subr.bf16.mxu0 %v5096
    %5406 = vmatpush2.bf16.msra.mxu0 %v5095
    %5407 = vmatprep.subr.bf16.mxu0 %v5092
    %5408 = vmatpush2.bf16.msra.mxu0 %v5091
    %5409 = vmatprep.subr.bf16.mxu0 %v5088
    %5410 = vmatpush2.bf16.msra.mxu0 %v5087
    %5411 = vmatprep.subr.bf16.mxu0 %v5084
    %5412 = vmatpush2.bf16.msra.mxu0 %v5083
    %5413 = vmatprep.subr.bf16.mxu0 %v5080
    %5414 = vmatpush2.bf16.msra.mxu0 %v5079
    %5415 = vmatprep.mubr.bf16.mxu0 %v4508
    %5416 = vmatmul.mubr.bf16.gmra.mxu0 %v4507
    %v5417 = vpop.f32.mrf.mxu0
    %v5418 = vadd.f32 %v4652, %v5417
    %v5419 = vpop.f32.mrf.mxu0
    %v5420 = vadd.f32 %v4656, %v5419
    %v5421 = vpop.f32.mrf.mxu0
    %v5422 = vpop.f32.mrf.mxu0
    %5423 = vdwg.mxu0
    %5424 = vmatprep.subr.bf16.mxu0 %v5140
    %5425 = vmatpush1.bf16.msra.mxu0 %v5139
    %5426 = vmatprep.subr.bf16.mxu0 %v5136
    %5427 = vmatpush1.bf16.msra.mxu0 %v5135
    %5428 = vmatprep.subr.bf16.mxu0 %v5132
    %5429 = vmatpush1.bf16.msra.mxu0 %v5131
    %5430 = vmatprep.subr.bf16.mxu0 %v5128
    %5431 = vmatpush1.bf16.msra.mxu0 %v5127
    %5432 = vmatprep.subr.bf16.mxu0 %v5124
    %5433 = vmatpush1.bf16.msra.mxu0 %v5123
    %5434 = vmatprep.subr.bf16.mxu0 %v5120
    %5435 = vmatpush1.bf16.msra.mxu0 %v5119
    %5436 = vmatprep.subr.bf16.mxu0 %v5116
    %5437 = vmatpush1.bf16.msra.mxu0 %v5115
    %5438 = vmatprep.subr.bf16.mxu0 %v5112
    %5439 = vmatpush1.bf16.msra.mxu0 %v5111
    %5440 = vmatprep.subr.bf16.mxu0 %v5172
    %5441 = vmatpush2.bf16.msra.mxu0 %v5171
    %5442 = vmatprep.subr.bf16.mxu0 %v5168
    %5443 = vmatpush2.bf16.msra.mxu0 %v5167
    %5444 = vmatprep.subr.bf16.mxu0 %v5164
    %5445 = vmatpush2.bf16.msra.mxu0 %v5163
    %5446 = vmatprep.subr.bf16.mxu0 %v5160
    %5447 = vmatpush2.bf16.msra.mxu0 %v5159
    %5448 = vmatprep.subr.bf16.mxu0 %v5156
    %5449 = vmatpush2.bf16.msra.mxu0 %v5155
    %5450 = vmatprep.subr.bf16.mxu0 %v5152
    %5451 = vmatpush2.bf16.msra.mxu0 %v5151
    %5452 = vmatprep.subr.bf16.mxu0 %v5148
    %5453 = vmatpush2.bf16.msra.mxu0 %v5147
    %5454 = vmatprep.subr.bf16.mxu0 %v5144
    %5455 = vmatpush2.bf16.msra.mxu0 %v5143
    %5456 = vmatprep.mubr.bf16.mxu0 %v4510
    %5457 = vmatmul.mubr.bf16.gmra.mxu0 %v4509
    %v5458 = vpop.f32.mrf.mxu0
    %v5459 = vadd.f32 %v5418, %v5458
    %v5460 = vpop.f32.mrf.mxu0
    %v5461 = vadd.f32 %v5420, %v5460
    %v5462 = vpop.f32.mrf.mxu0
    %v5463 = vpop.f32.mrf.mxu0
    %5464 = vdwg.mxu0
    %v5465 = vmax.f32 %v5377, 0.0
    %v5466 = vmax.f32 %v5379, 0.0
    %v5467 = vmax.f32 %v5459, 0.0
    %v5468 = vmax.f32 %v5461, 0.0
    %v5469 = vld [vmem:[#allocation10] sm:$0xf]
    %v5471 = vlaneseq
    %v5472 = vshrl.u32 %v5471, 7
    %v5473 = vsub.s32 0, %v5472
    %v5474 = vrot.slane %v5469, %v5473
    %v5475 = vlaneseq
    %v5476 = vshrl.u32 %v5475, 7
    %v5477 = vsub.s32 1, %v5476
    %v5478 = vrot.slane %v5469, %v5477
    %v5479 = vlaneseq
    %v5480 = vshrl.u32 %v5479, 7
    %v5481 = vsub.s32 2, %v5480
    %v5482 = vrot.slane %v5469, %v5481
    %v5483 = vlaneseq
    %v5484 = vshrl.u32 %v5483, 7
    %v5485 = vsub.s32 3, %v5484
    %v5486 = vrot.slane %v5469, %v5485
    %v5491 = vmul.f32 %v5465, %v5474
    %v5492 = vmul.f32 %v5466, %v5478
    %v5493 = vmul.f32 %v5467, %v5482
    %v5494 = vmul.f32 %v5468, %v5486
    %v5495 = vadd.f32 %v5491, %v5492
    %v5496 = vadd.f32 %v5495, %v5493
    %v5497 = vadd.f32 %v5496, %v5494
    %5498 = vadd.xlane.f32.xlu0 %v5497
    %v5499 = vpop.xlane.xlu0 %5498
    %v5500 = vld [vmem:[#allocation2] sm:$0x1]
    %v5502 = vlaneseq
    %v5503 = vshrl.u32 %v5502, 7
    %v5504 = vsub.s32 0, %v5503
    %v5505 = vrot.slane %v5500, %v5504
    %v5507 = vadd.f32 %v5499, %v5505
    %vm5508 = vcmask 7168
    %5509 = vst.msk [vmem:[%s7] sm:$0xff] %vm5508, %v5507
    // Predicated region
    $region50: #{net_forward.1} parent=1 // pred_check
      _
    $region51: #{net_forward.1} parent=1 // pred_check_branch
      %5511 = sbr.rel (0) target = $region53
    $region52: #{net_forward.1} parent=1 // pred_region
      _
    $region53: #{net_forward.1} parent=1 // pred_fallthru
      _
    // Predicated region
    $region54: #{net_forward.1} parent=1 // pred_check
      _
    $region55: #{net_forward.1} parent=1 // pred_check_branch
      %5513 = sbr.rel (0) target = $region57
    $region56: #{net_forward.1} parent=1 // pred_region
      _
    $region57: #{net_forward.1} parent=1 // pred_fallthru
      _
    %5514 = vsyncpa [#allocation4], 1
    %5515 = vsyncpa [#allocation6], 1
    %5516 = vsyncpa [#allocation9], 1

</llo_original>
